<compile_context>
chip_gen: v7x
topology: tpu7x:2x2x1
jax: 0.10.0
libtpu: 0.0.40
codegen_flags: <defaults>
</compile_context>

<pallas_src>
import functools

import jax
import jax.numpy as jnp
from jax.experimental import pallas as pl
from jax.experimental.pallas import tpu as pltpu


# ----------------------------------------------------------------------------
# Tile selection helpers
# ----------------------------------------------------------------------------

def _pick_tile(d, cap, align):
    """Largest tile <= cap that is a multiple of `align` and divides d.
    Falls back to the full dimension (always legal as a block shape)."""
    if d <= cap:
        return d
    t = (cap // align) * align
    while t >= align:
        if d % t == 0:
            return t
        t -= align
    return d


def _pick_leading(d, cap):
    if d <= cap:
        return d
    for t in range(cap, 0, -1):
        if d % t == 0:
            return t
    return d


# ----------------------------------------------------------------------------
# Tiled linear (matmul + bias [+ relu] [+ residual]) — P1/P3/P9 pattern
# ----------------------------------------------------------------------------

def _matmul_kernel(x_ref, w_ref, b_ref, o_ref, acc_ref, *, activation):
    @pl.when(pl.program_id(2) == 0)
    def _():
        acc_ref[...] = jnp.zeros_like(acc_ref)

    acc_ref[...] += jnp.dot(
        x_ref[...].astype(jnp.bfloat16), w_ref[...],
        preferred_element_type=jnp.float32)

    @pl.when(pl.program_id(2) == pl.num_programs(2) - 1)
    def _():
        r = acc_ref[...] + b_ref[...]
        if activation == "relu":
            r = jnp.maximum(r, 0.0)
        o_ref[...] = r


def _matmul_res_kernel(x_ref, w_ref, b_ref, r_ref, o_ref, acc_ref, *, activation):
    @pl.when(pl.program_id(2) == 0)
    def _():
        acc_ref[...] = jnp.zeros_like(acc_ref)

    acc_ref[...] += jnp.dot(
        x_ref[...].astype(jnp.bfloat16), w_ref[...],
        preferred_element_type=jnp.float32)

    @pl.when(pl.program_id(2) == pl.num_programs(2) - 1)
    def _():
        r = acc_ref[...] + b_ref[...]
        if activation == "relu":
            r = jnp.maximum(r, 0.0)
        o_ref[...] = r + r_ref[...]


def linear(x2d, w, b, activation=None, residual=None):
    """x2d: (M, K) f32, w: (K, N) bf16, b: (N,) f32. Returns (M, N) f32."""
    M, K = x2d.shape
    K2, N = w.shape
    assert K == K2
    # v7x-safe tiles (well under 64 MiB VMEM, double-buffered).
    # On v5e tn naturally clamps to <=512; 128-multiples keep the MXU fed.
    tm = _pick_tile(M, 256, 8)
    tn = _pick_tile(N, 512, 128)
    tk = _pick_tile(K, 512, 128)
    grid = (M // tm, N // tn, K // tk)

    in_specs = [
        pl.BlockSpec((tm, tk), lambda i, j, k: (i, k)),
        pl.BlockSpec((tk, tn), lambda i, j, k: (k, j)),
        pl.BlockSpec((1, tn), lambda i, j, k: (0, j)),
    ]
    args = [x2d, w, b.reshape(1, N)]
    if residual is not None:
        in_specs.append(pl.BlockSpec((tm, tn), lambda i, j, k: (i, j)))
        args.append(residual)
        kernel = functools.partial(_matmul_res_kernel, activation=activation)
    else:
        kernel = functools.partial(_matmul_kernel, activation=activation)

    return pl.pallas_call(
        kernel,
        out_shape=jax.ShapeDtypeStruct((M, N), jnp.float32),
        grid=grid,
        in_specs=in_specs,
        out_specs=pl.BlockSpec((tm, tn), lambda i, j, k: (i, j)),
        scratch_shapes=[pltpu.VMEM((tm, tn), jnp.float32)],
        compiler_params=pltpu.CompilerParams(
            dimension_semantics=("parallel", "parallel", "arbitrary"),
            vmem_limit_bytes=32 * 1024 * 1024,
        ),
    )(*args)


# ----------------------------------------------------------------------------
# Fused LayerNorm + linear (+relu) — LN prologue inside the matmul kernel
# ----------------------------------------------------------------------------

def _ln_linear_kernel(x_ref, g_ref, bl_ref, w_ref, b_ref, o_ref, *, activation):
    x = x_ref[...]
    mu = jnp.mean(x, axis=-1, keepdims=True)
    var = jnp.mean(jnp.square(x - mu), axis=-1, keepdims=True)
    xn = (x - mu) * jax.lax.rsqrt(var + 1e-5) * g_ref[...] + bl_ref[...]
    acc = jnp.dot(xn.astype(jnp.bfloat16), w_ref[...],
                  preferred_element_type=jnp.float32) + b_ref[...]
    if activation == "relu":
        acc = jnp.maximum(acc, 0.0)
    o_ref[...] = acc


def ln_linear(x2d, ln, w, b, activation=None):
    M, D = x2d.shape
    _, N = w.shape
    tm = _pick_tile(M, 256, 8)
    kernel = functools.partial(_ln_linear_kernel, activation=activation)
    return pl.pallas_call(
        kernel,
        out_shape=jax.ShapeDtypeStruct((M, N), jnp.float32),
        grid=(M // tm,),
        in_specs=[
            pl.BlockSpec((tm, D), lambda i: (i, 0)),
            pl.BlockSpec((1, D), lambda i: (0, 0)),
            pl.BlockSpec((1, D), lambda i: (0, 0)),
            pl.BlockSpec((D, N), lambda i: (0, 0)),
            pl.BlockSpec((1, N), lambda i: (0, 0)),
        ],
        out_specs=pl.BlockSpec((tm, N), lambda i: (i, 0)),
        compiler_params=pltpu.CompilerParams(
            dimension_semantics=("parallel",)),
    )(x2d, ln["g"].reshape(1, D), ln["b"].reshape(1, D), w, b.reshape(1, N))


# ----------------------------------------------------------------------------
# Fused LN + FFN (FF1 + ReLU + FF2) + residual
# ----------------------------------------------------------------------------

def _ln_ffn_kernel(x_ref, g_ref, bl_ref, w1_ref, b1_ref, w2_ref, b2_ref,
                   r_ref, o_ref):
    x = x_ref[...]
    mu = jnp.mean(x, axis=-1, keepdims=True)
    var = jnp.mean(jnp.square(x - mu), axis=-1, keepdims=True)
    xn = (x - mu) * jax.lax.rsqrt(var + 1e-5) * g_ref[...] + bl_ref[...]
    h = jnp.dot(xn.astype(jnp.bfloat16), w1_ref[...],
                preferred_element_type=jnp.float32) + b1_ref[...]
    h = jnp.maximum(h, 0.0)
    y = jnp.dot(h.astype(jnp.bfloat16), w2_ref[...],
                preferred_element_type=jnp.float32) + b2_ref[...]
    o_ref[...] = y + r_ref[...]


def ln_ffn(x2d, ln, ff1, ff2, residual):
    M, D = x2d.shape
    dff = ff1["w"].shape[1]
    tm = _pick_tile(M, 256, 8)
    return pl.pallas_call(
        _ln_ffn_kernel,
        out_shape=jax.ShapeDtypeStruct((M, D), jnp.float32),
        grid=(M // tm,),
        in_specs=[
            pl.BlockSpec((tm, D), lambda i: (i, 0)),
            pl.BlockSpec((1, D), lambda i: (0, 0)),
            pl.BlockSpec((1, D), lambda i: (0, 0)),
            pl.BlockSpec((D, dff), lambda i: (0, 0)),
            pl.BlockSpec((1, dff), lambda i: (0, 0)),
            pl.BlockSpec((dff, D), lambda i: (0, 0)),
            pl.BlockSpec((1, D), lambda i: (0, 0)),
            pl.BlockSpec((tm, D), lambda i: (i, 0)),
        ],
        out_specs=pl.BlockSpec((tm, D), lambda i: (i, 0)),
        compiler_params=pltpu.CompilerParams(
            dimension_semantics=("parallel",)),
    )(x2d, ln["g"].reshape(1, D), ln["b"].reshape(1, D),
      ff1["w"], ff1["b"].reshape(1, dff),
      ff2["w"], ff2["b"].reshape(1, D), residual)


# ----------------------------------------------------------------------------
# Fused dec_norm + output MLP head (256 -> 256 -> 1)
# ----------------------------------------------------------------------------

def _ln_mlp_kernel(x_ref, g_ref, bl_ref, w1_ref, b1_ref, w2_ref, b2_ref,
                   w3_ref, b3_ref, o_ref):
    x = x_ref[...]
    mu = jnp.mean(x, axis=-1, keepdims=True)
    var = jnp.mean(jnp.square(x - mu), axis=-1, keepdims=True)
    xn = (x - mu) * jax.lax.rsqrt(var + 1e-5) * g_ref[...] + bl_ref[...]
    h = jnp.maximum(jnp.dot(xn.astype(jnp.bfloat16), w1_ref[...],
                            preferred_element_type=jnp.float32) + b1_ref[...], 0.0)
    h = jnp.maximum(jnp.dot(h.astype(jnp.bfloat16), w2_ref[...],
                            preferred_element_type=jnp.float32) + b2_ref[...], 0.0)
    o_ref[...] = jnp.dot(h.astype(jnp.bfloat16), w3_ref[...],
                         preferred_element_type=jnp.float32) + b3_ref[...]


def ln_mlp_head(x2d, ln, mlp1, mlp2, mlp3):
    M, D = x2d.shape
    H1 = mlp1["w"].shape[1]
    H2 = mlp2["w"].shape[1]
    tm = _pick_tile(M, 256, 8)
    return pl.pallas_call(
        _ln_mlp_kernel,
        out_shape=jax.ShapeDtypeStruct((M, 1), jnp.float32),
        grid=(M // tm,),
        in_specs=[
            pl.BlockSpec((tm, D), lambda i: (i, 0)),
            pl.BlockSpec((1, D), lambda i: (0, 0)),
            pl.BlockSpec((1, D), lambda i: (0, 0)),
            pl.BlockSpec((D, H1), lambda i: (0, 0)),
            pl.BlockSpec((1, H1), lambda i: (0, 0)),
            pl.BlockSpec((H1, H2), lambda i: (0, 0)),
            pl.BlockSpec((1, H2), lambda i: (0, 0)),
            pl.BlockSpec((H2, 1), lambda i: (0, 0)),
            pl.BlockSpec((1, 1), lambda i: (0, 0)),
        ],
        out_specs=pl.BlockSpec((tm, 1), lambda i: (i, 0)),
        compiler_params=pltpu.CompilerParams(
            dimension_semantics=("parallel",)),
    )(x2d, ln["g"].reshape(1, D), ln["b"].reshape(1, D),
      mlp1["w"], mlp1["b"].reshape(1, H1),
      mlp2["w"], mlp2["b"].reshape(1, H2),
      mlp3["w"], mlp3["b"].reshape(1, 1))


# ----------------------------------------------------------------------------
# Standalone LayerNorm (final encoder-stack norm)
# ----------------------------------------------------------------------------

def _layernorm_kernel(x_ref, g_ref, b_ref, o_ref):
    x = x_ref[...]
    mu = jnp.mean(x, axis=-1, keepdims=True)
    var = jnp.mean(jnp.square(x - mu), axis=-1, keepdims=True)
    o_ref[...] = (x - mu) * jax.lax.rsqrt(var + 1e-5) * g_ref[...] + b_ref[...]


def layer_norm(x2d, ln):
    M, D = x2d.shape
    tm = _pick_tile(M, 256, 8)
    return pl.pallas_call(
        _layernorm_kernel,
        out_shape=jax.ShapeDtypeStruct((M, D), jnp.float32),
        grid=(M // tm,),
        in_specs=[
            pl.BlockSpec((tm, D), lambda i: (i, 0)),
            pl.BlockSpec((1, D), lambda i: (0, 0)),
            pl.BlockSpec((1, D), lambda i: (0, 0)),
        ],
        out_specs=pl.BlockSpec((tm, D), lambda i: (i, 0)),
        compiler_params=pltpu.CompilerParams(
            dimension_semantics=("parallel",)),
    )(x2d, ln["g"].reshape(1, D), ln["b"].reshape(1, D))


# ----------------------------------------------------------------------------
# Attention: all heads per grid step, in-kernel causal mask, approx reciprocal
# ----------------------------------------------------------------------------

def _attention_kernel(q_ref, k_ref, v_ref, o_ref, *, scale, causal):
    q = q_ref[...].astype(jnp.bfloat16)            # (hb, Lq, Dh)
    k = k_ref[...].astype(jnp.bfloat16)            # (hb, Lk, Dh)
    v = v_ref[...].astype(jnp.bfloat16)            # (hb, Lk, Dh)
    s = jnp.einsum("bqd,bkd->bqk", q, k,
                   preferred_element_type=jnp.float32) * scale
    if causal:
        Lq, Lk = s.shape[1], s.shape[2]
        row = jax.lax.broadcasted_iota(jnp.int32, (Lq, Lk), 0)
        col = jax.lax.broadcasted_iota(jnp.int32, (Lq, Lk), 1)
        s = jnp.where((col <= row)[None, :, :], s, -1e30)
    m = jnp.max(s, axis=-1, keepdims=True)
    p = jnp.exp(s - m)
    denom = jnp.sum(p, axis=-1, keepdims=True)
    o = jnp.einsum("bqk,bkd->bqd", p.astype(jnp.bfloat16), v,
                   preferred_element_type=jnp.float32)
    o_ref[...] = o * pl.reciprocal(denom, approx=True)


def attention(q, k, v, scale, causal=False):
    """q: (BH, Lq, Dh), k/v: (BH, Lk, Dh) f32. Returns (BH, Lq, Dh) f32."""
    BH, Lq, Dh = q.shape
    Lk = k.shape[1]
    hb = _pick_leading(BH, 8)
    kernel = functools.partial(_attention_kernel, scale=scale, causal=causal)
    return pl.pallas_call(
        kernel,
        out_shape=jax.ShapeDtypeStruct((BH, Lq, Dh), jnp.float32),
        grid=(BH // hb,),
        in_specs=[
            pl.BlockSpec((hb, Lq, Dh), lambda i: (i, 0, 0)),
            pl.BlockSpec((hb, Lk, Dh), lambda i: (i, 0, 0)),
            pl.BlockSpec((hb, Lk, Dh), lambda i: (i, 0, 0)),
        ],
        out_specs=pl.BlockSpec((hb, Lq, Dh), lambda i: (i, 0, 0)),
        compiler_params=pltpu.CompilerParams(
            dimension_semantics=("parallel",)),
    )(q, k, v)


# ----------------------------------------------------------------------------
# Transformer blocks (glue in JAX, compute in fused Pallas kernels)
# ----------------------------------------------------------------------------

def _split_heads(x2d, L, B, nhead, Dh):
    # (L*B, nhead*Dh) -> (B*nhead, L, Dh)
    return x2d.reshape(L, B * nhead, Dh).transpose(1, 0, 2)


def _merge_heads(o, L, B, nhead, Dh):
    # (B*nhead, L, Dh) -> (L*B, nhead*Dh)
    return o.transpose(1, 0, 2).reshape(L * B, nhead * Dh)


def encoder_layer(src, p, nhead):
    L, B, D = src.shape
    Dh = D // nhead
    scale = 1.0 / (Dh ** 0.5)
    src2d = src.reshape(L * B, D)

    # pre-LN self-attention: fused LN + QKV projection
    qkv = ln_linear(src2d, p["ln1"], p["self_attn"]["w_qkv"], p["self_attn"]["b_qkv"])
    q = _split_heads(qkv[:, :D], L, B, nhead, Dh)
    k = _split_heads(qkv[:, D:2 * D], L, B, nhead, Dh)
    v = _split_heads(qkv[:, 2 * D:], L, B, nhead, Dh)
    o = attention(q, k, v, scale, causal=False)
    o = _merge_heads(o, L, B, nhead, Dh)
    src2d = linear(o, p["self_attn"]["wo"], p["self_attn"]["bo"], residual=src2d)

    # pre-LN FFN, fused (LN + FF1 + ReLU + FF2 + residual)
    src2d = ln_ffn(src2d, p["ln2"], p["ff1"], p["ff2"], residual=src2d)
    return src2d.reshape(L, B, D)


def decoder_layer(tgt, memory, p, nhead):
    L, B, D = tgt.shape
    Ls = memory.shape[0]
    Dh = D // nhead
    scale = 1.0 / (Dh ** 0.5)
    tgt2d = tgt.reshape(L * B, D)
    mem2d = memory.reshape(Ls * B, D)

    # causal self-attention
    qkv = ln_linear(tgt2d, p["ln1"], p["self_attn"]["w_qkv"], p["self_attn"]["b_qkv"])
    q = _split_heads(qkv[:, :D], L, B, nhead, Dh)
    k = _split_heads(qkv[:, D:2 * D], L, B, nhead, Dh)
    v = _split_heads(qkv[:, 2 * D:], L, B, nhead, Dh)
    o = attention(q, k, v, scale, causal=True)
    o = _merge_heads(o, L, B, nhead, Dh)
    tgt2d = linear(o, p["self_attn"]["wo"], p["self_attn"]["bo"], residual=tgt2d)

    # cross-attention (query = LN(tgt), key/value = encoder memory)
    q = ln_linear(tgt2d, p["ln2"], p["cross_attn"]["wq"], p["cross_attn"]["bq"])
    kv = linear(mem2d, p["cross_attn"]["w_kv"], p["cross_attn"]["b_kv"])
    q = _split_heads(q, L, B, nhead, Dh)
    k = _split_heads(kv[:, :D], Ls, B, nhead, Dh)
    v = _split_heads(kv[:, D:], Ls, B, nhead, Dh)
    o = attention(q, k, v, scale, causal=False)
    o = _merge_heads(o, L, B, nhead, Dh)
    tgt2d = linear(o, p["cross_attn"]["wo"], p["cross_attn"]["bo"], residual=tgt2d)

    # FFN
    tgt2d = ln_ffn(tgt2d, p["ln3"], p["ff1"], p["ff2"], residual=tgt2d)
    return tgt2d.reshape(L, B, D)


def transformer_forward(source, target, tp, nhead):
    memory = source
    for lp in tp["encoder_layers"]:
        memory = encoder_layer(memory, lp, nhead)
    Le, B, D = memory.shape
    memory = layer_norm(memory.reshape(Le * B, D), tp["enc_norm"]).reshape(Le, B, D)
    out = target
    for lp in tp["decoder_layers"]:
        out = decoder_layer(out, memory, lp, nhead)
    # NOTE: dec_norm is fused into the output MLP head kernel.
    return out


# ----------------------------------------------------------------------------
# QTransformerModel forward (state_action_input=True path)
# ----------------------------------------------------------------------------

def q_transformer_forward(params, observation_state, observation_demo, action, nhead):
    """
    observation_state: (T, B, state_size)
    observation_demo : (T, B, demo_len * state_size)
    action           : (T, B, action_size)
    Returns (q_values (T, B), rnn_state)
    """
    T, B, state_size = observation_state.shape
    d_model = params["state_transform"]["w"].shape[1]

    if T == 1:  # matches the torch branch: zeros output + dummy rnn_state
        return jnp.zeros((T, B), jnp.float32), jnp.zeros((1, B, 1), jnp.float32)

    # demonstration.view(T, B, -1, state_size)[0].permute(1, 0, 2)
    demo = observation_demo.reshape(T, B, -1, state_size)[0].transpose(1, 0, 2)
    Ld = demo.shape[0]

    source = linear(
        demo.reshape(Ld * B, state_size),
        params["state_transform"]["w"], params["state_transform"]["b"],
    ).reshape(Ld, B, d_model)

    sa = jnp.concatenate([observation_state, action], axis=-1)
    target = linear(
        sa.reshape(T * B, sa.shape[-1]),
        params["state_action_transform"]["w"], params["state_action_transform"]["b"],
    ).reshape(T, B, d_model)

    out = transformer_forward(source, target, params["transformer"], nhead)

    # fused dec_norm + MlpModel(d_model, [256, 256], 1)
    q = ln_mlp_head(out.reshape(T * B, d_model), params["transformer"]["dec_norm"],
                    params["mlp1"], params["mlp2"], params["mlp3"])
    q = q.reshape(T, B)   # squeeze(-1).view(T*B) + restore_leading_dims
    return q, None


# ----------------------------------------------------------------------------
# Deterministic parameter initialization (weights bf16, LN/bias f32)
# ----------------------------------------------------------------------------

def _init_linear(key, in_dim, out_dim):
    w = (jax.random.normal(key, (in_dim, out_dim), jnp.float32) * 0.02).astype(jnp.bfloat16)
    return {"w": w, "b": jnp.zeros((out_dim,), jnp.float32)}


def _init_ln(dim):
    return {"g": jnp.ones((dim,), jnp.float32), "b": jnp.zeros((dim,), jnp.float32)}


def _init_self_attn(key, d):
    k1, k2 = jax.random.split(key)
    qkv = _init_linear(k1, d, 3 * d)
    out = _init_linear(k2, d, d)
    return {"w_qkv": qkv["w"], "b_qkv": qkv["b"], "wo": out["w"], "bo": out["b"]}


def _init_cross_attn(key, d):
    k1, k2, k3 = jax.random.split(key, 3)
    q = _init_linear(k1, d, d)
    kv = _init_linear(k2, d, 2 * d)
    out = _init_linear(k3, d, d)
    return {"wq": q["w"], "bq": q["b"], "w_kv": kv["w"], "b_kv": kv["b"],
            "wo": out["w"], "bo": out["b"]}


def _init_encoder_layer(key, d_model, dff):
    ks = jax.random.split(key, 3)
    return {
        "ln1": _init_ln(d_model), "self_attn": _init_self_attn(ks[0], d_model),
        "ln2": _init_ln(d_model),
        "ff1": _init_linear(ks[1], d_model, dff),
        "ff2": _init_linear(ks[2], dff, d_model),
    }


def _init_decoder_layer(key, d_model, dff):
    ks = jax.random.split(key, 4)
    return {
        "ln1": _init_ln(d_model), "self_attn": _init_self_attn(ks[0], d_model),
        "ln2": _init_ln(d_model), "cross_attn": _init_cross_attn(ks[1], d_model),
        "ln3": _init_ln(d_model),
        "ff1": _init_linear(ks[2], d_model, dff),
        "ff2": _init_linear(ks[3], dff, d_model),
    }


def init_params(key, state_size, action_size, d_model, dff, n_enc, n_dec,
                mlp_hidden=(256, 256)):
    keys = jax.random.split(key, 5 + n_enc + n_dec)
    transformer = {
        "encoder_layers": [_init_encoder_layer(keys[5 + i], d_model, dff)
                           for i in range(n_enc)],
        "decoder_layers": [_init_decoder_layer(keys[5 + n_enc + i], d_model, dff)
                           for i in range(n_dec)],
        "enc_norm": _init_ln(d_model),
        "dec_norm": _init_ln(d_model),
    }
    return {
        "state_transform": _init_linear(keys[0], state_size, d_model),
        "state_action_transform": _init_linear(keys[1], state_size + action_size, d_model),
        "transformer": transformer,
        "mlp1": _init_linear(keys[2], d_model, mlp_hidden[0]),
        "mlp2": _init_linear(keys[3], mlp_hidden[0], mlp_hidden[1]),
        "mlp3": _init_linear(keys[4], mlp_hidden[1], 1),
    }


# ----------------------------------------------------------------------------
# Demo
# ----------------------------------------------------------------------------

if __name__ == "__main__":
    # Small "medium"-style config (scaled down for the demo).
    T, B = 8, 2
    state_size, action_size = 16, 4
    demo_len = 6
    d_model, nhead, dff = 32, 2, 64
    n_enc, n_dec = 2, 2

    root = jax.random.PRNGKey(0)
    kp, k1, k2, k3 = jax.random.split(root, 4)

    params = init_params(kp, state_size, action_size, d_model, dff, n_enc, n_dec)

    obs_state = jax.random.normal(k1, (T, B, state_size), jnp.float32)
    obs_demo = jax.random.normal(k2, (T, B, demo_len * state_size), jnp.float32)
    action = jax.random.normal(k3, (T, B, action_size), jnp.float32)

    fwd = jax.jit(lambda p, s, d, a: q_transformer_forward(p, s, d, a, nhead))
    q_values, rnn_state = fwd(params, obs_state, obs_demo, action)
    q_values = jax.block_until_ready(q_values)

    assert q_values.shape == (T, B)
    assert bool(jnp.all(jnp.isfinite(q_values)))
    print("KERNEL_OK")
</pallas_src>

<mosaic_0001>
module attributes {stable_mosaic.version = 11 : i64} {
  func.func @_matmul_kernel(%arg0: i32, %arg1: i32, %arg2: i32, %arg3: memref<16x20xf32, #tpu.memory_space<vmem>>, %arg4: memref<20x32xbf16, #tpu.memory_space<vmem>>, %arg5: memref<1x32xf32, #tpu.memory_space<vmem>>, %arg6: memref<16x32xf32, #tpu.memory_space<vmem>>, %arg7: memref<16x32xf32, #tpu.memory_space<vmem>>) attributes {dimension_semantics = [#tpu.dimension_semantics<parallel>, #tpu.dimension_semantics<parallel>, #tpu.dimension_semantics<arbitrary>], iteration_bounds = array<i64: 1, 1, 1>, scalar_prefetch = 0 : i64, scratch_operands = 1 : i64, tpu.core_type = #tpu.core_type<tc>, window_params = [{transform_indices = @transform_0, window_bounds = array<i64: 16, 20>}, {transform_indices = @transform_1, window_bounds = array<i64: 20, 32>}, {transform_indices = @transform_2, window_bounds = array<i64: 1, 32>}, {transform_indices = @transform_3, window_bounds = array<i64: 16, 32>}]} {
    %c0_i32 = arith.constant 0 : i32
    %0 = arith.cmpi eq, %arg2, %c0_i32 : i32
    %1 = arith.extui %0 : i1 to i32
    %c0_i32_0 = arith.constant 0 : i32
    %2 = arith.cmpi ne, %1, %c0_i32_0 : i32
    scf.if %2 {
      %cst_10 = arith.constant 0.000000e+00 : f32
      %13 = vector.broadcast %cst_10 : f32 to vector<16x32xf32>
      %c0_11 = arith.constant 0 : index
      %c0_12 = arith.constant 0 : index
      %14 = vector.load %arg7[%c0_11, %c0_12] : memref<16x32xf32, #tpu.memory_space<vmem>>, vector<16x32xf32>
      tpu.vector_store %arg7[%c0_11, %c0_12], %13 {strides = array<i32>} : memref<16x32xf32, #tpu.memory_space<vmem>>, vector<16x32xf32>,
    } else {
    }
    %c0 = arith.constant 0 : index
    %c0_1 = arith.constant 0 : index
    %3 = vector.load %arg7[%c0, %c0_1] : memref<16x32xf32, #tpu.memory_space<vmem>>, vector<16x32xf32>
    %c0_2 = arith.constant 0 : index
    %c0_3 = arith.constant 0 : index
    %4 = vector.load %arg3[%c0_2, %c0_3] : memref<16x20xf32, #tpu.memory_space<vmem>>, vector<16x20xf32>
    %5 = arith.truncf %4 : vector<16x20xf32> to vector<16x20xbf16>
    %c0_4 = arith.constant 0 : index
    %c0_5 = arith.constant 0 : index
    %6 = vector.load %arg4[%c0_4, %c0_5] : memref<20x32xbf16, #tpu.memory_space<vmem>>, vector<20x32xbf16>
    %cst = arith.constant dense<0.000000e+00> : vector<16x32xf32>
    %7 = tpu.matmul %5, %6, %cst {dimension_numbers = #tpu.dot_dimension_numbers<[1], [0], [0], [1], [0, 0, 1, 1], [], []>} : vector<16x20xbf16>, vector<20x32xbf16>, vector<16x32xf32> -> vector<16x32xf32>
    %8 = arith.addf %3, %7 : vector<16x32xf32>
    %c0_6 = arith.constant 0 : index
    %c0_7 = arith.constant 0 : index
    %9 = vector.load %arg7[%c0_6, %c0_7] : memref<16x32xf32, #tpu.memory_space<vmem>>, vector<16x32xf32>
    tpu.vector_store %arg7[%c0_6, %c0_7], %8 {strides = array<i32>} : memref<16x32xf32, #tpu.memory_space<vmem>>, vector<16x32xf32>,
    %c0_i32_8 = arith.constant 0 : i32
    %10 = arith.cmpi eq, %arg2, %c0_i32_8 : i32
    %11 = arith.extui %10 : i1 to i32
    %c0_i32_9 = arith.constant 0 : i32
    %12 = arith.cmpi ne, %11, %c0_i32_9 : i32
    scf.if %12 {
      %c0_10 = arith.constant 0 : index
      %c0_11 = arith.constant 0 : index
      %13 = vector.load %arg7[%c0_10, %c0_11] : memref<16x32xf32, #tpu.memory_space<vmem>>, vector<16x32xf32>
      %c0_12 = arith.constant 0 : index
      %c0_13 = arith.constant 0 : index
      %14 = vector.load %arg5[%c0_12, %c0_13] : memref<1x32xf32, #tpu.memory_space<vmem>>, vector<1x32xf32>
      %15 = vector.broadcast %14 : vector<1x32xf32> to vector<16x32xf32>
      %16 = arith.addf %13, %15 : vector<16x32xf32>
      %c0_14 = arith.constant 0 : index
      %c0_15 = arith.constant 0 : index
      %17 = vector.load %arg6[%c0_14, %c0_15] : memref<16x32xf32, #tpu.memory_space<vmem>>, vector<16x32xf32>
      tpu.vector_store %arg6[%c0_14, %c0_15], %16 {strides = array<i32>} : memref<16x32xf32, #tpu.memory_space<vmem>>, vector<16x32xf32>,
    } else {
    }
    return
  }
  func.func @transform_0(%arg0: i32, %arg1: i32, %arg2: i32) -> (i32, i32) {
    %c0_i32 = arith.constant 0 : i32
    return %arg0, %arg2 : i32, i32
  }
  func.func @transform_1(%arg0: i32, %arg1: i32, %arg2: i32) -> (i32, i32) {
    %c0_i32 = arith.constant 0 : i32
    return %arg2, %arg1 : i32, i32
  }
  func.func @transform_2(%arg0: i32, %arg1: i32, %arg2: i32) -> (i32, i32) {
    %c0_i32 = arith.constant 0 : i32
    %c0_i32_0 = arith.constant 0 : i32
    return %c0_i32, %arg1 : i32, i32
  }
  func.func @transform_3(%arg0: i32, %arg1: i32, %arg2: i32) -> (i32, i32) {
    %c0_i32 = arith.constant 0 : i32
    return %arg0, %arg1 : i32, i32
  }
}

module attributes {stable_mosaic.version = 11 : i64} {
  func.func @_ln_linear_kernel(%arg0: i32, %arg1: memref<16x32xf32, #tpu.memory_space<vmem>>, %arg2: memref<1x32xf32, #tpu.memory_space<vmem>>, %arg3: memref<1x32xf32, #tpu.memory_space<vmem>>, %arg4: memref<32x96xbf16, #tpu.memory_space<vmem>>, %arg5: memref<1x96xf32, #tpu.memory_space<vmem>>, %arg6: memref<16x96xf32, #tpu.memory_space<vmem>>) attributes {dimension_semantics = [#tpu.dimension_semantics<parallel>], iteration_bounds = array<i64: 1>, scalar_prefetch = 0 : i64, scratch_operands = 0 : i64, tpu.core_type = #tpu.core_type<tc>, window_params = [{transform_indices = @transform_0, window_bounds = array<i64: 16, 32>}, {pipeline_mode = #tpu.pipeline_mode<synchronous>, transform_indices = @transform_1, window_bounds = array<i64: 1, 32>}, {pipeline_mode = #tpu.pipeline_mode<synchronous>, transform_indices = @transform_2, window_bounds = array<i64: 1, 32>}, {pipeline_mode = #tpu.pipeline_mode<synchronous>, transform_indices = @transform_3, window_bounds = array<i64: 32, 96>}, {pipeline_mode = #tpu.pipeline_mode<synchronous>, transform_indices = @transform_4, window_bounds = array<i64: 1, 96>}, {transform_indices = @transform_5, window_bounds = array<i64: 16, 96>}]} {
    %c0 = arith.constant 0 : index
    %c0_0 = arith.constant 0 : index
    %0 = vector.load %arg1[%c0, %c0_0] : memref<16x32xf32, #tpu.memory_space<vmem>>, vector<16x32xf32>
    %cst = arith.constant dense<0.000000e+00> : vector<16xf32>
    %1 = vector.multi_reduction <add>, %0, %cst [1] : vector<16x32xf32> to vector<16xf32>
    %2 = vector.shape_cast %1 : vector<16xf32> to vector<16x1xf32>
    %cst_1 = arith.constant 3.200000e+01 : f32
    %3 = vector.broadcast %cst_1 : f32 to vector<16x1xf32>
    %4 = arith.divf %2, %3 : vector<16x1xf32>
    %5 = vector.broadcast %4 : vector<16x1xf32> to vector<16x32xf32>
    %6 = arith.subf %0, %5 : vector<16x32xf32>
    %7 = arith.mulf %6, %6 : vector<16x32xf32>
    %cst_2 = arith.constant dense<0.000000e+00> : vector<16xf32>
    %8 = vector.multi_reduction <add>, %7, %cst_2 [1] : vector<16x32xf32> to vector<16xf32>
    %9 = vector.shape_cast %8 : vector<16xf32> to vector<16x1xf32>
    %cst_3 = arith.constant 3.200000e+01 : f32
    %10 = vector.broadcast %cst_3 : f32 to vector<16x1xf32>
    %11 = arith.divf %9, %10 : vector<16x1xf32>
    %12 = vector.broadcast %4 : vector<16x1xf32> to vector<16x32xf32>
    %13 = arith.subf %0, %12 : vector<16x32xf32>
    %cst_4 = arith.constant 9.99999974E-6 : f32
    %14 = vector.broadcast %cst_4 : f32 to vector<16x1xf32>
    %15 = arith.addf %11, %14 : vector<16x1xf32>
    %16 = math.rsqrt %15 : vector<16x1xf32>
    %17 = vector.broadcast %16 : vector<16x1xf32> to vector<16x32xf32>
    %18 = arith.mulf %13, %17 : vector<16x32xf32>
    %c0_5 = arith.constant 0 : index
    %c0_6 = arith.constant 0 : index
    %19 = vector.load %arg2[%c0_5, %c0_6] : memref<1x32xf32, #tpu.memory_space<vmem>>, vector<1x32xf32>
    %20 = vector.broadcast %19 : vector<1x32xf32> to vector<16x32xf32>
    %21 = arith.mulf %18, %20 : vector<16x32xf32>
    %c0_7 = arith.constant 0 : index
    %c0_8 = arith.constant 0 : index
    %22 = vector.load %arg3[%c0_7, %c0_8] : memref<1x32xf32, #tpu.memory_space<vmem>>, vector<1x32xf32>
    %23 = vector.broadcast %22 : vector<1x32xf32> to vector<16x32xf32>
    %24 = arith.addf %21, %23 : vector<16x32xf32>
    %25 = arith.truncf %24 : vector<16x32xf32> to vector<16x32xbf16>
    %c0_9 = arith.constant 0 : index
    %c0_10 = arith.constant 0 : index
    %26 = vector.load %arg4[%c0_9, %c0_10] : memref<32x96xbf16, #tpu.memory_space<vmem>>, vector<32x96xbf16>
    %cst_11 = arith.constant dense<0.000000e+00> : vector<16x96xf32>
    %27 = tpu.matmul %25, %26, %cst_11 {dimension_numbers = #tpu.dot_dimension_numbers<[1], [0], [0], [1], [0, 0, 1, 1], [], []>} : vector<16x32xbf16>, vector<32x96xbf16>, vector<16x96xf32> -> vector<16x96xf32>
    %c0_12 = arith.constant 0 : index
    %c0_13 = arith.constant 0 : index
    %28 = vector.load %arg5[%c0_12, %c0_13] : memref<1x96xf32, #tpu.memory_space<vmem>>, vector<1x96xf32>
    %29 = vector.broadcast %28 : vector<1x96xf32> to vector<16x96xf32>
    %30 = arith.addf %27, %29 : vector<16x96xf32>
    %c0_14 = arith.constant 0 : index
    %c0_15 = arith.constant 0 : index
    %31 = vector.load %arg6[%c0_14, %c0_15] : memref<16x96xf32, #tpu.memory_space<vmem>>, vector<16x96xf32>
    tpu.vector_store %arg6[%c0_14, %c0_15], %30 {strides = array<i32>} : memref<16x96xf32, #tpu.memory_space<vmem>>, vector<16x96xf32>,
    return
  }
  func.func @transform_0(%arg0: i32) -> (i32, i32) {
    %c0_i32 = arith.constant 0 : i32
    %c0_i32_0 = arith.constant 0 : i32
    return %arg0, %c0_i32 : i32, i32
  }
  func.func @transform_1(%arg0: i32) -> (i32, i32) {
    %c0_i32 = arith.constant 0 : i32
    %c0_i32_0 = arith.constant 0 : i32
    %c0_i32_1 = arith.constant 0 : i32
    return %c0_i32, %c0_i32_0 : i32, i32
  }
  func.func @transform_2(%arg0: i32) -> (i32, i32) {
    %c0_i32 = arith.constant 0 : i32
    %c0_i32_0 = arith.constant 0 : i32
    %c0_i32_1 = arith.constant 0 : i32
    return %c0_i32, %c0_i32_0 : i32, i32
  }
  func.func @transform_3(%arg0: i32) -> (i32, i32) {
    %c0_i32 = arith.constant 0 : i32
    %c0_i32_0 = arith.constant 0 : i32
    %c0_i32_1 = arith.constant 0 : i32
    return %c0_i32, %c0_i32_0 : i32, i32
  }
  func.func @transform_4(%arg0: i32) -> (i32, i32) {
    %c0_i32 = arith.constant 0 : i32
    %c0_i32_0 = arith.constant 0 : i32
    %c0_i32_1 = arith.constant 0 : i32
    return %c0_i32, %c0_i32_0 : i32, i32
  }
  func.func @transform_5(%arg0: i32) -> (i32, i32) {
    %c0_i32 = arith.constant 0 : i32
    %c0_i32_0 = arith.constant 0 : i32
    return %arg0, %c0_i32 : i32, i32
  }
}

module attributes {stable_mosaic.version = 11 : i64} {
  func.func @_attention_kernel(%arg0: i32, %arg1: memref<4x8x16xf32, #tpu.memory_space<vmem>>, %arg2: memref<4x8x16xf32, #tpu.memory_space<vmem>>, %arg3: memref<4x8x16xf32, #tpu.memory_space<vmem>>, %arg4: memref<4x8x16xf32, #tpu.memory_space<vmem>>) attributes {dimension_semantics = [#tpu.dimension_semantics<parallel>], iteration_bounds = array<i64: 1>, scalar_prefetch = 0 : i64, scratch_operands = 0 : i64, tpu.core_type = #tpu.core_type<tc>, window_params = [{transform_indices = @transform_0, window_bounds = array<i64: 4, 8, 16>}, {transform_indices = @transform_1, window_bounds = array<i64: 4, 8, 16>}, {transform_indices = @transform_2, window_bounds = array<i64: 4, 8, 16>}, {transform_indices = @transform_3, window_bounds = array<i64: 4, 8, 16>}]} {
    %c0 = arith.constant 0 : index
    %c0_0 = arith.constant 0 : index
    %c0_1 = arith.constant 0 : index
    %0 = vector.load %arg1[%c0, %c0_0, %c0_1] : memref<4x8x16xf32, #tpu.memory_space<vmem>>, vector<4x8x16xf32>
    %1 = arith.truncf %0 : vector<4x8x16xf32> to vector<4x8x16xbf16>
    %c0_2 = arith.constant 0 : index
    %c0_3 = arith.constant 0 : index
    %c0_4 = arith.constant 0 : index
    %2 = vector.load %arg2[%c0_2, %c0_3, %c0_4] : memref<4x8x16xf32, #tpu.memory_space<vmem>>, vector<4x8x16xf32>
    %3 = arith.truncf %2 : vector<4x8x16xf32> to vector<4x8x16xbf16>
    %c0_5 = arith.constant 0 : index
    %c0_6 = arith.constant 0 : index
    %c0_7 = arith.constant 0 : index
    %4 = vector.load %arg3[%c0_5, %c0_6, %c0_7] : memref<4x8x16xf32, #tpu.memory_space<vmem>>, vector<4x8x16xf32>
    %5 = arith.truncf %4 : vector<4x8x16xf32> to vector<4x8x16xbf16>
    "tpu.trace_start"() <{level = 10 : i32, message = "bqd,bkd->bqk"}> : () -> ()
    %cst = arith.constant dense<0.000000e+00> : vector<4x8x8xf32>
    %6 = tpu.matmul %1, %3, %cst {dimension_numbers = #tpu.dot_dimension_numbers<[2], [2], [1], [1], [0, 0, 0, 1, 1, 1], [0], [0]>} : vector<4x8x16xbf16>, vector<4x8x16xbf16>, vector<4x8x8xf32> -> vector<4x8x8xf32>
    "tpu.trace_stop"() : () -> ()
    %cst_8 = arith.constant 2.500000e-01 : f32
    %7 = vector.broadcast %cst_8 : f32 to vector<4x8x8xf32>
    %8 = arith.mulf %6, %7 : vector<4x8x8xf32>
    %9 = tpu.iota {dimensions = array<i32: 0>} : vector<8x8xi32>
    %10 = tpu.iota {dimensions = array<i32: 1>} : vector<8x8xi32>
    %11 = arith.cmpi sle, %10, %9 : vector<8x8xi32>
    %12 = vector.shape_cast %11 : vector<8x8xi1> to vector<1x8x8xi1>
    %cst_9 = arith.constant -1.000000e+30 : f32
    %13 = vector.shape_cast %12 : vector<1x8x8xi1> to vector<1x8x8xi1>
    %14 = vector.broadcast %13 : vector<1x8x8xi1> to vector<4x8x8xi1>
    %15 = vector.broadcast %cst_9 : f32 to vector<4x8x8xf32>
    %16 = arith.select %14, %8, %15 : vector<4x8x8xi1>, vector<4x8x8xf32>
    %cst_10 = arith.constant dense<0xFF800000> : vector<4x8xf32>
    %17 = vector.multi_reduction <maximumf>, %16, %cst_10 [2] : vector<4x8x8xf32> to vector<4x8xf32>
    %18 = vector.shape_cast %17 : vector<4x8xf32> to vector<4x8x1xf32>
    %19 = vector.broadcast %18 : vector<4x8x1xf32> to vector<4x8x8xf32>
    %20 = arith.subf %16, %19 : vector<4x8x8xf32>
    %21 = math.exp %20 : vector<4x8x8xf32>
    %cst_11 = arith.constant dense<0.000000e+00> : vector<4x8xf32>
    %22 = vector.multi_reduction <add>, %21, %cst_11 [2] : vector<4x8x8xf32> to vector<4x8xf32>
    %23 = vector.shape_cast %22 : vector<4x8xf32> to vector<4x8x1xf32>
    %24 = arith.truncf %21 : vector<4x8x8xf32> to vector<4x8x8xbf16>
    "tpu.trace_start"() <{level = 10 : i32, message = "bqk,bkd->bqd"}> : () -> ()
    %cst_12 = arith.constant dense<0.000000e+00> : vector<4x8x16xf32>
    %25 = tpu.matmul %24, %5, %cst_12 {dimension_numbers = #tpu.dot_dimension_numbers<[2], [1], [1], [2], [0, 0, 0, 1, 1, 2], [0], [0]>} : vector<4x8x8xbf16>, vector<4x8x16xbf16>, vector<4x8x16xf32> -> vector<4x8x16xf32>
    "tpu.trace_stop"() : () -> ()
    %26 = tpu.reciprocal %23 {approx = true} : vector<4x8x1xf32> -> vector<4x8x1xf32>
    %27 = vector.broadcast %26 : vector<4x8x1xf32> to vector<4x8x16xf32>
    %28 = arith.mulf %25, %27 : vector<4x8x16xf32>
    %c0_13 = arith.constant 0 : index
    %c0_14 = arith.constant 0 : index
    %c0_15 = arith.constant 0 : index
    %29 = vector.load %arg4[%c0_13, %c0_14, %c0_15] : memref<4x8x16xf32, #tpu.memory_space<vmem>>, vector<4x8x16xf32>
    tpu.vector_store %arg4[%c0_13, %c0_14, %c0_15], %28 {strides = array<i32>} : memref<4x8x16xf32, #tpu.memory_space<vmem>>, vector<4x8x16xf32>,
    return
  }
  func.func @transform_0(%arg0: i32) -> (i32, i32, i32) {
    %c0_i32 = arith.constant 0 : i32
    %c0_i32_0 = arith.constant 0 : i32
    %c0_i32_1 = arith.constant 0 : i32
    return %arg0, %c0_i32, %c0_i32_0 : i32, i32, i32
  }
  func.func @transform_1(%arg0: i32) -> (i32, i32, i32) {
    %c0_i32 = arith.constant 0 : i32
    %c0_i32_0 = arith.constant 0 : i32
    %c0_i32_1 = arith.constant 0 : i32
    return %arg0, %c0_i32, %c0_i32_0 : i32, i32, i32
  }
  func.func @transform_2(%arg0: i32) -> (i32, i32, i32) {
    %c0_i32 = arith.constant 0 : i32
    %c0_i32_0 = arith.constant 0 : i32
    %c0_i32_1 = arith.constant 0 : i32
    return %arg0, %c0_i32, %c0_i32_0 : i32, i32, i32
  }
  func.func @transform_3(%arg0: i32) -> (i32, i32, i32) {
    %c0_i32 = arith.constant 0 : i32
    %c0_i32_0 = arith.constant 0 : i32
    %c0_i32_1 = arith.constant 0 : i32
    return %arg0, %c0_i32, %c0_i32_0 : i32, i32, i32
  }
}

module attributes {stable_mosaic.version = 11 : i64} {
  func.func @_matmul_res_kernel(%arg0: i32, %arg1: i32, %arg2: i32, %arg3: memref<16x32xf32, #tpu.memory_space<vmem>>, %arg4: memref<32x32xbf16, #tpu.memory_space<vmem>>, %arg5: memref<1x32xf32, #tpu.memory_space<vmem>>, %arg6: memref<16x32xf32, #tpu.memory_space<vmem>>, %arg7: memref<16x32xf32, #tpu.memory_space<vmem>>, %arg8: memref<16x32xf32, #tpu.memory_space<vmem>>) attributes {dimension_semantics = [#tpu.dimension_semantics<parallel>, #tpu.dimension_semantics<parallel>, #tpu.dimension_semantics<arbitrary>], iteration_bounds = array<i64: 1, 1, 1>, scalar_prefetch = 0 : i64, scratch_operands = 1 : i64, tpu.core_type = #tpu.core_type<tc>, window_params = [{transform_indices = @transform_0, window_bounds = array<i64: 16, 32>}, {transform_indices = @transform_1, window_bounds = array<i64: 32, 32>}, {transform_indices = @transform_2, window_bounds = array<i64: 1, 32>}, {transform_indices = @transform_3, window_bounds = array<i64: 16, 32>}, {transform_indices = @transform_4, window_bounds = array<i64: 16, 32>}]} {
    %c0_i32 = arith.constant 0 : i32
    %0 = arith.cmpi eq, %arg2, %c0_i32 : i32
    %1 = arith.extui %0 : i1 to i32
    %c0_i32_0 = arith.constant 0 : i32
    %2 = arith.cmpi ne, %1, %c0_i32_0 : i32
    scf.if %2 {
      %cst_10 = arith.constant 0.000000e+00 : f32
      %13 = vector.broadcast %cst_10 : f32 to vector<16x32xf32>
      %c0_11 = arith.constant 0 : index
      %c0_12 = arith.constant 0 : index
      %14 = vector.load %arg8[%c0_11, %c0_12] : memref<16x32xf32, #tpu.memory_space<vmem>>, vector<16x32xf32>
      tpu.vector_store %arg8[%c0_11, %c0_12], %13 {strides = array<i32>} : memref<16x32xf32, #tpu.memory_space<vmem>>, vector<16x32xf32>,
    } else {
    }
    %c0 = arith.constant 0 : index
    %c0_1 = arith.constant 0 : index
    %3 = vector.load %arg8[%c0, %c0_1] : memref<16x32xf32, #tpu.memory_space<vmem>>, vector<16x32xf32>
    %c0_2 = arith.constant 0 : index
    %c0_3 = arith.constant 0 : index
    %4 = vector.load %arg3[%c0_2, %c0_3] : memref<16x32xf32, #tpu.memory_space<vmem>>, vector<16x32xf32>
    %5 = arith.truncf %4 : vector<16x32xf32> to vector<16x32xbf16>
    %c0_4 = arith.constant 0 : index
    %c0_5 = arith.constant 0 : index
    %6 = vector.load %arg4[%c0_4, %c0_5] : memref<32x32xbf16, #tpu.memory_space<vmem>>, vector<32x32xbf16>
    %cst = arith.constant dense<0.000000e+00> : vector<16x32xf32>
    %7 = tpu.matmul %5, %6, %cst {dimension_numbers = #tpu.dot_dimension_numbers<[1], [0], [0], [1], [0, 0, 1, 1], [], []>} : vector<16x32xbf16>, vector<32x32xbf16>, vector<16x32xf32> -> vector<16x32xf32>
    %8 = arith.addf %3, %7 : vector<16x32xf32>
    %c0_6 = arith.constant 0 : index
    %c0_7 = arith.constant 0 : index
    %9 = vector.load %arg8[%c0_6, %c0_7] : memref<16x32xf32, #tpu.memory_space<vmem>>, vector<16x32xf32>
    tpu.vector_store %arg8[%c0_6, %c0_7], %8 {strides = array<i32>} : memref<16x32xf32, #tpu.memory_space<vmem>>, vector<16x32xf32>,
    %c0_i32_8 = arith.constant 0 : i32
    %10 = arith.cmpi eq, %arg2, %c0_i32_8 : i32
    %11 = arith.extui %10 : i1 to i32
    %c0_i32_9 = arith.constant 0 : i32
    %12 = arith.cmpi ne, %11, %c0_i32_9 : i32
    scf.if %12 {
      %c0_10 = arith.constant 0 : index
      %c0_11 = arith.constant 0 : index
      %13 = vector.load %arg8[%c0_10, %c0_11] : memref<16x32xf32, #tpu.memory_space<vmem>>, vector<16x32xf32>
      %c0_12 = arith.constant 0 : index
      %c0_13 = arith.constant 0 : index
      %14 = vector.load %arg5[%c0_12, %c0_13] : memref<1x32xf32, #tpu.memory_space<vmem>>, vector<1x32xf32>
      %15 = vector.broadcast %14 : vector<1x32xf32> to vector<16x32xf32>
      %16 = arith.addf %13, %15 : vector<16x32xf32>
      %c0_14 = arith.constant 0 : index
      %c0_15 = arith.constant 0 : index
      %17 = vector.load %arg6[%c0_14, %c0_15] : memref<16x32xf32, #tpu.memory_space<vmem>>, vector<16x32xf32>
      %18 = arith.addf %16, %17 : vector<16x32xf32>
      %c0_16 = arith.constant 0 : index
      %c0_17 = arith.constant 0 : index
      %19 = vector.load %arg7[%c0_16, %c0_17] : memref<16x32xf32, #tpu.memory_space<vmem>>, vector<16x32xf32>
      tpu.vector_store %arg7[%c0_16, %c0_17], %18 {strides = array<i32>} : memref<16x32xf32, #tpu.memory_space<vmem>>, vector<16x32xf32>,
    } else {
    }
    return
  }
  func.func @transform_0(%arg0: i32, %arg1: i32, %arg2: i32) -> (i32, i32) {
    %c0_i32 = arith.constant 0 : i32
    return %arg0, %arg2 : i32, i32
  }
  func.func @transform_1(%arg0: i32, %arg1: i32, %arg2: i32) -> (i32, i32) {
    %c0_i32 = arith.constant 0 : i32
    return %arg2, %arg1 : i32, i32
  }
  func.func @transform_2(%arg0: i32, %arg1: i32, %arg2: i32) -> (i32, i32) {
    %c0_i32 = arith.constant 0 : i32
    %c0_i32_0 = arith.constant 0 : i32
    return %c0_i32, %arg1 : i32, i32
  }
  func.func @transform_3(%arg0: i32, %arg1: i32, %arg2: i32) -> (i32, i32) {
    %c0_i32 = arith.constant 0 : i32
    return %arg0, %arg1 : i32, i32
  }
  func.func @transform_4(%arg0: i32, %arg1: i32, %arg2: i32) -> (i32, i32) {
    %c0_i32 = arith.constant 0 : i32
    return %arg0, %arg1 : i32, i32
  }
}

module attributes {stable_mosaic.version = 11 : i64} {
  func.func @_ln_linear_kernel(%arg0: i32, %arg1: memref<16x32xf32, #tpu.memory_space<vmem>>, %arg2: memref<1x32xf32, #tpu.memory_space<vmem>>, %arg3: memref<1x32xf32, #tpu.memory_space<vmem>>, %arg4: memref<32x32xbf16, #tpu.memory_space<vmem>>, %arg5: memref<1x32xf32, #tpu.memory_space<vmem>>, %arg6: memref<16x32xf32, #tpu.memory_space<vmem>>) attributes {dimension_semantics = [#tpu.dimension_semantics<parallel>], iteration_bounds = array<i64: 1>, scalar_prefetch = 0 : i64, scratch_operands = 0 : i64, tpu.core_type = #tpu.core_type<tc>, window_params = [{transform_indices = @transform_0, window_bounds = array<i64: 16, 32>}, {pipeline_mode = #tpu.pipeline_mode<synchronous>, transform_indices = @transform_1, window_bounds = array<i64: 1, 32>}, {pipeline_mode = #tpu.pipeline_mode<synchronous>, transform_indices = @transform_2, window_bounds = array<i64: 1, 32>}, {pipeline_mode = #tpu.pipeline_mode<synchronous>, transform_indices = @transform_3, window_bounds = array<i64: 32, 32>}, {pipeline_mode = #tpu.pipeline_mode<synchronous>, transform_indices = @transform_4, window_bounds = array<i64: 1, 32>}, {transform_indices = @transform_5, window_bounds = array<i64: 16, 32>}]} {
    %c0 = arith.constant 0 : index
    %c0_0 = arith.constant 0 : index
    %0 = vector.load %arg1[%c0, %c0_0] : memref<16x32xf32, #tpu.memory_space<vmem>>, vector<16x32xf32>
    %cst = arith.constant dense<0.000000e+00> : vector<16xf32>
    %1 = vector.multi_reduction <add>, %0, %cst [1] : vector<16x32xf32> to vector<16xf32>
    %2 = vector.shape_cast %1 : vector<16xf32> to vector<16x1xf32>
    %cst_1 = arith.constant 3.200000e+01 : f32
    %3 = vector.broadcast %cst_1 : f32 to vector<16x1xf32>
    %4 = arith.divf %2, %3 : vector<16x1xf32>
    %5 = vector.broadcast %4 : vector<16x1xf32> to vector<16x32xf32>
    %6 = arith.subf %0, %5 : vector<16x32xf32>
    %7 = arith.mulf %6, %6 : vector<16x32xf32>
    %cst_2 = arith.constant dense<0.000000e+00> : vector<16xf32>
    %8 = vector.multi_reduction <add>, %7, %cst_2 [1] : vector<16x32xf32> to vector<16xf32>
    %9 = vector.shape_cast %8 : vector<16xf32> to vector<16x1xf32>
    %cst_3 = arith.constant 3.200000e+01 : f32
    %10 = vector.broadcast %cst_3 : f32 to vector<16x1xf32>
    %11 = arith.divf %9, %10 : vector<16x1xf32>
    %12 = vector.broadcast %4 : vector<16x1xf32> to vector<16x32xf32>
    %13 = arith.subf %0, %12 : vector<16x32xf32>
    %cst_4 = arith.constant 9.99999974E-6 : f32
    %14 = vector.broadcast %cst_4 : f32 to vector<16x1xf32>
    %15 = arith.addf %11, %14 : vector<16x1xf32>
    %16 = math.rsqrt %15 : vector<16x1xf32>
    %17 = vector.broadcast %16 : vector<16x1xf32> to vector<16x32xf32>
    %18 = arith.mulf %13, %17 : vector<16x32xf32>
    %c0_5 = arith.constant 0 : index
    %c0_6 = arith.constant 0 : index
    %19 = vector.load %arg2[%c0_5, %c0_6] : memref<1x32xf32, #tpu.memory_space<vmem>>, vector<1x32xf32>
    %20 = vector.broadcast %19 : vector<1x32xf32> to vector<16x32xf32>
    %21 = arith.mulf %18, %20 : vector<16x32xf32>
    %c0_7 = arith.constant 0 : index
    %c0_8 = arith.constant 0 : index
    %22 = vector.load %arg3[%c0_7, %c0_8] : memref<1x32xf32, #tpu.memory_space<vmem>>, vector<1x32xf32>
    %23 = vector.broadcast %22 : vector<1x32xf32> to vector<16x32xf32>
    %24 = arith.addf %21, %23 : vector<16x32xf32>
    %25 = arith.truncf %24 : vector<16x32xf32> to vector<16x32xbf16>
    %c0_9 = arith.constant 0 : index
    %c0_10 = arith.constant 0 : index
    %26 = vector.load %arg4[%c0_9, %c0_10] : memref<32x32xbf16, #tpu.memory_space<vmem>>, vector<32x32xbf16>
    %cst_11 = arith.constant dense<0.000000e+00> : vector<16x32xf32>
    %27 = tpu.matmul %25, %26, %cst_11 {dimension_numbers = #tpu.dot_dimension_numbers<[1], [0], [0], [1], [0, 0, 1, 1], [], []>} : vector<16x32xbf16>, vector<32x32xbf16>, vector<16x32xf32> -> vector<16x32xf32>
    %c0_12 = arith.constant 0 : index
    %c0_13 = arith.constant 0 : index
    %28 = vector.load %arg5[%c0_12, %c0_13] : memref<1x32xf32, #tpu.memory_space<vmem>>, vector<1x32xf32>
    %29 = vector.broadcast %28 : vector<1x32xf32> to vector<16x32xf32>
    %30 = arith.addf %27, %29 : vector<16x32xf32>
    %c0_14 = arith.constant 0 : index
    %c0_15 = arith.constant 0 : index
    %31 = vector.load %arg6[%c0_14, %c0_15] : memref<16x32xf32, #tpu.memory_space<vmem>>, vector<16x32xf32>
    tpu.vector_store %arg6[%c0_14, %c0_15], %30 {strides = array<i32>} : memref<16x32xf32, #tpu.memory_space<vmem>>, vector<16x32xf32>,
    return
  }
  func.func @transform_0(%arg0: i32) -> (i32, i32) {
    %c0_i32 = arith.constant 0 : i32
    %c0_i32_0 = arith.constant 0 : i32
    return %arg0, %c0_i32 : i32, i32
  }
  func.func @transform_1(%arg0: i32) -> (i32, i32) {
    %c0_i32 = arith.constant 0 : i32
    %c0_i32_0 = arith.constant 0 : i32
    %c0_i32_1 = arith.constant 0 : i32
    return %c0_i32, %c0_i32_0 : i32, i32
  }
  func.func @transform_2(%arg0: i32) -> (i32, i32) {
    %c0_i32 = arith.constant 0 : i32
    %c0_i32_0 = arith.constant 0 : i32
    %c0_i32_1 = arith.constant 0 : i32
    return %c0_i32, %c0_i32_0 : i32, i32
  }
  func.func @transform_3(%arg0: i32) -> (i32, i32) {
    %c0_i32 = arith.constant 0 : i32
    %c0_i32_0 = arith.constant 0 : i32
    %c0_i32_1 = arith.constant 0 : i32
    return %c0_i32, %c0_i32_0 : i32, i32
  }
  func.func @transform_4(%arg0: i32) -> (i32, i32) {
    %c0_i32 = arith.constant 0 : i32
    %c0_i32_0 = arith.constant 0 : i32
    %c0_i32_1 = arith.constant 0 : i32
    return %c0_i32, %c0_i32_0 : i32, i32
  }
  func.func @transform_5(%arg0: i32) -> (i32, i32) {
    %c0_i32 = arith.constant 0 : i32
    %c0_i32_0 = arith.constant 0 : i32
    return %arg0, %c0_i32 : i32, i32
  }
}

module attributes {stable_mosaic.version = 11 : i64} {
  func.func @_matmul_kernel(%arg0: i32, %arg1: i32, %arg2: i32, %arg3: memref<12x16xf32, #tpu.memory_space<vmem>>, %arg4: memref<16x32xbf16, #tpu.memory_space<vmem>>, %arg5: memref<1x32xf32, #tpu.memory_space<vmem>>, %arg6: memref<12x32xf32, #tpu.memory_space<vmem>>, %arg7: memref<12x32xf32, #tpu.memory_space<vmem>>) attributes {dimension_semantics = [#tpu.dimension_semantics<parallel>, #tpu.dimension_semantics<parallel>, #tpu.dimension_semantics<arbitrary>], iteration_bounds = array<i64: 1, 1, 1>, scalar_prefetch = 0 : i64, scratch_operands = 1 : i64, tpu.core_type = #tpu.core_type<tc>, window_params = [{transform_indices = @transform_0, window_bounds = array<i64: 12, 16>}, {transform_indices = @transform_1, window_bounds = array<i64: 16, 32>}, {transform_indices = @transform_2, window_bounds = array<i64: 1, 32>}, {transform_indices = @transform_3, window_bounds = array<i64: 12, 32>}]} {
    %c0_i32 = arith.constant 0 : i32
    %0 = arith.cmpi eq, %arg2, %c0_i32 : i32
    %1 = arith.extui %0 : i1 to i32
    %c0_i32_0 = arith.constant 0 : i32
    %2 = arith.cmpi ne, %1, %c0_i32_0 : i32
    scf.if %2 {
      %cst_10 = arith.constant 0.000000e+00 : f32
      %13 = vector.broadcast %cst_10 : f32 to vector<12x32xf32>
      %c0_11 = arith.constant 0 : index
      %c0_12 = arith.constant 0 : index
      %14 = vector.load %arg7[%c0_11, %c0_12] : memref<12x32xf32, #tpu.memory_space<vmem>>, vector<12x32xf32>
      tpu.vector_store %arg7[%c0_11, %c0_12], %13 {strides = array<i32>} : memref<12x32xf32, #tpu.memory_space<vmem>>, vector<12x32xf32>,
    } else {
    }
    %c0 = arith.constant 0 : index
    %c0_1 = arith.constant 0 : index
    %3 = vector.load %arg7[%c0, %c0_1] : memref<12x32xf32, #tpu.memory_space<vmem>>, vector<12x32xf32>
    %c0_2 = arith.constant 0 : index
    %c0_3 = arith.constant 0 : index
    %4 = vector.load %arg3[%c0_2, %c0_3] : memref<12x16xf32, #tpu.memory_space<vmem>>, vector<12x16xf32>
    %5 = arith.truncf %4 : vector<12x16xf32> to vector<12x16xbf16>
    %c0_4 = arith.constant 0 : index
    %c0_5 = arith.constant 0 : index
    %6 = vector.load %arg4[%c0_4, %c0_5] : memref<16x32xbf16, #tpu.memory_space<vmem>>, vector<16x32xbf16>
    %cst = arith.constant dense<0.000000e+00> : vector<12x32xf32>
    %7 = tpu.matmul %5, %6, %cst {dimension_numbers = #tpu.dot_dimension_numbers<[1], [0], [0], [1], [0, 0, 1, 1], [], []>} : vector<12x16xbf16>, vector<16x32xbf16>, vector<12x32xf32> -> vector<12x32xf32>
    %8 = arith.addf %3, %7 : vector<12x32xf32>
    %c0_6 = arith.constant 0 : index
    %c0_7 = arith.constant 0 : index
    %9 = vector.load %arg7[%c0_6, %c0_7] : memref<12x32xf32, #tpu.memory_space<vmem>>, vector<12x32xf32>
    tpu.vector_store %arg7[%c0_6, %c0_7], %8 {strides = array<i32>} : memref<12x32xf32, #tpu.memory_space<vmem>>, vector<12x32xf32>,
    %c0_i32_8 = arith.constant 0 : i32
    %10 = arith.cmpi eq, %arg2, %c0_i32_8 : i32
    %11 = arith.extui %10 : i1 to i32
    %c0_i32_9 = arith.constant 0 : i32
    %12 = arith.cmpi ne, %11, %c0_i32_9 : i32
    scf.if %12 {
      %c0_10 = arith.constant 0 : index
      %c0_11 = arith.constant 0 : index
      %13 = vector.load %arg7[%c0_10, %c0_11] : memref<12x32xf32, #tpu.memory_space<vmem>>, vector<12x32xf32>
      %c0_12 = arith.constant 0 : index
      %c0_13 = arith.constant 0 : index
      %14 = vector.load %arg5[%c0_12, %c0_13] : memref<1x32xf32, #tpu.memory_space<vmem>>, vector<1x32xf32>
      %15 = vector.broadcast %14 : vector<1x32xf32> to vector<12x32xf32>
      %16 = arith.addf %13, %15 : vector<12x32xf32>
      %c0_14 = arith.constant 0 : index
      %c0_15 = arith.constant 0 : index
      %17 = vector.load %arg6[%c0_14, %c0_15] : memref<12x32xf32, #tpu.memory_space<vmem>>, vector<12x32xf32>
      tpu.vector_store %arg6[%c0_14, %c0_15], %16 {strides = array<i32>} : memref<12x32xf32, #tpu.memory_space<vmem>>, vector<12x32xf32>,
    } else {
    }
    return
  }
  func.func @transform_0(%arg0: i32, %arg1: i32, %arg2: i32) -> (i32, i32) {
    %c0_i32 = arith.constant 0 : i32
    return %arg0, %arg2 : i32, i32
  }
  func.func @transform_1(%arg0: i32, %arg1: i32, %arg2: i32) -> (i32, i32) {
    %c0_i32 = arith.constant 0 : i32
    return %arg2, %arg1 : i32, i32
  }
  func.func @transform_2(%arg0: i32, %arg1: i32, %arg2: i32) -> (i32, i32) {
    %c0_i32 = arith.constant 0 : i32
    %c0_i32_0 = arith.constant 0 : i32
    return %c0_i32, %arg1 : i32, i32
  }
  func.func @transform_3(%arg0: i32, %arg1: i32, %arg2: i32) -> (i32, i32) {
    %c0_i32 = arith.constant 0 : i32
    return %arg0, %arg1 : i32, i32
  }
}

module attributes {stable_mosaic.version = 11 : i64} {
  func.func @_ln_linear_kernel(%arg0: i32, %arg1: memref<12x32xf32, #tpu.memory_space<vmem>>, %arg2: memref<1x32xf32, #tpu.memory_space<vmem>>, %arg3: memref<1x32xf32, #tpu.memory_space<vmem>>, %arg4: memref<32x96xbf16, #tpu.memory_space<vmem>>, %arg5: memref<1x96xf32, #tpu.memory_space<vmem>>, %arg6: memref<12x96xf32, #tpu.memory_space<vmem>>) attributes {dimension_semantics = [#tpu.dimension_semantics<parallel>], iteration_bounds = array<i64: 1>, scalar_prefetch = 0 : i64, scratch_operands = 0 : i64, tpu.core_type = #tpu.core_type<tc>, window_params = [{transform_indices = @transform_0, window_bounds = array<i64: 12, 32>}, {pipeline_mode = #tpu.pipeline_mode<synchronous>, transform_indices = @transform_1, window_bounds = array<i64: 1, 32>}, {pipeline_mode = #tpu.pipeline_mode<synchronous>, transform_indices = @transform_2, window_bounds = array<i64: 1, 32>}, {pipeline_mode = #tpu.pipeline_mode<synchronous>, transform_indices = @transform_3, window_bounds = array<i64: 32, 96>}, {pipeline_mode = #tpu.pipeline_mode<synchronous>, transform_indices = @transform_4, window_bounds = array<i64: 1, 96>}, {transform_indices = @transform_5, window_bounds = array<i64: 12, 96>}]} {
    %c0 = arith.constant 0 : index
    %c0_0 = arith.constant 0 : index
    %0 = vector.load %arg1[%c0, %c0_0] : memref<12x32xf32, #tpu.memory_space<vmem>>, vector<12x32xf32>
    %cst = arith.constant dense<0.000000e+00> : vector<12xf32>
    %1 = vector.multi_reduction <add>, %0, %cst [1] : vector<12x32xf32> to vector<12xf32>
    %2 = vector.shape_cast %1 : vector<12xf32> to vector<12x1xf32>
    %cst_1 = arith.constant 3.200000e+01 : f32
    %3 = vector.broadcast %cst_1 : f32 to vector<12x1xf32>
    %4 = arith.divf %2, %3 : vector<12x1xf32>
    %5 = vector.broadcast %4 : vector<12x1xf32> to vector<12x32xf32>
    %6 = arith.subf %0, %5 : vector<12x32xf32>
    %7 = arith.mulf %6, %6 : vector<12x32xf32>
    %cst_2 = arith.constant dense<0.000000e+00> : vector<12xf32>
    %8 = vector.multi_reduction <add>, %7, %cst_2 [1] : vector<12x32xf32> to vector<12xf32>
    %9 = vector.shape_cast %8 : vector<12xf32> to vector<12x1xf32>
    %cst_3 = arith.constant 3.200000e+01 : f32
    %10 = vector.broadcast %cst_3 : f32 to vector<12x1xf32>
    %11 = arith.divf %9, %10 : vector<12x1xf32>
    %12 = vector.broadcast %4 : vector<12x1xf32> to vector<12x32xf32>
    %13 = arith.subf %0, %12 : vector<12x32xf32>
    %cst_4 = arith.constant 9.99999974E-6 : f32
    %14 = vector.broadcast %cst_4 : f32 to vector<12x1xf32>
    %15 = arith.addf %11, %14 : vector<12x1xf32>
    %16 = math.rsqrt %15 : vector<12x1xf32>
    %17 = vector.broadcast %16 : vector<12x1xf32> to vector<12x32xf32>
    %18 = arith.mulf %13, %17 : vector<12x32xf32>
    %c0_5 = arith.constant 0 : index
    %c0_6 = arith.constant 0 : index
    %19 = vector.load %arg2[%c0_5, %c0_6] : memref<1x32xf32, #tpu.memory_space<vmem>>, vector<1x32xf32>
    %20 = vector.broadcast %19 : vector<1x32xf32> to vector<12x32xf32>
    %21 = arith.mulf %18, %20 : vector<12x32xf32>
    %c0_7 = arith.constant 0 : index
    %c0_8 = arith.constant 0 : index
    %22 = vector.load %arg3[%c0_7, %c0_8] : memref<1x32xf32, #tpu.memory_space<vmem>>, vector<1x32xf32>
    %23 = vector.broadcast %22 : vector<1x32xf32> to vector<12x32xf32>
    %24 = arith.addf %21, %23 : vector<12x32xf32>
    %25 = arith.truncf %24 : vector<12x32xf32> to vector<12x32xbf16>
    %c0_9 = arith.constant 0 : index
    %c0_10 = arith.constant 0 : index
    %26 = vector.load %arg4[%c0_9, %c0_10] : memref<32x96xbf16, #tpu.memory_space<vmem>>, vector<32x96xbf16>
    %cst_11 = arith.constant dense<0.000000e+00> : vector<12x96xf32>
    %27 = tpu.matmul %25, %26, %cst_11 {dimension_numbers = #tpu.dot_dimension_numbers<[1], [0], [0], [1], [0, 0, 1, 1], [], []>} : vector<12x32xbf16>, vector<32x96xbf16>, vector<12x96xf32> -> vector<12x96xf32>
    %c0_12 = arith.constant 0 : index
    %c0_13 = arith.constant 0 : index
    %28 = vector.load %arg5[%c0_12, %c0_13] : memref<1x96xf32, #tpu.memory_space<vmem>>, vector<1x96xf32>
    %29 = vector.broadcast %28 : vector<1x96xf32> to vector<12x96xf32>
    %30 = arith.addf %27, %29 : vector<12x96xf32>
    %c0_14 = arith.constant 0 : index
    %c0_15 = arith.constant 0 : index
    %31 = vector.load %arg6[%c0_14, %c0_15] : memref<12x96xf32, #tpu.memory_space<vmem>>, vector<12x96xf32>
    tpu.vector_store %arg6[%c0_14, %c0_15], %30 {strides = array<i32>} : memref<12x96xf32, #tpu.memory_space<vmem>>, vector<12x96xf32>,
    return
  }
  func.func @transform_0(%arg0: i32) -> (i32, i32) {
    %c0_i32 = arith.constant 0 : i32
    %c0_i32_0 = arith.constant 0 : i32
    return %arg0, %c0_i32 : i32, i32
  }
  func.func @transform_1(%arg0: i32) -> (i32, i32) {
    %c0_i32 = arith.constant 0 : i32
    %c0_i32_0 = arith.constant 0 : i32
    %c0_i32_1 = arith.constant 0 : i32
    return %c0_i32, %c0_i32_0 : i32, i32
  }
  func.func @transform_2(%arg0: i32) -> (i32, i32) {
    %c0_i32 = arith.constant 0 : i32
    %c0_i32_0 = arith.constant 0 : i32
    %c0_i32_1 = arith.constant 0 : i32
    return %c0_i32, %c0_i32_0 : i32, i32
  }
  func.func @transform_3(%arg0: i32) -> (i32, i32) {
    %c0_i32 = arith.constant 0 : i32
    %c0_i32_0 = arith.constant 0 : i32
    %c0_i32_1 = arith.constant 0 : i32
    return %c0_i32, %c0_i32_0 : i32, i32
  }
  func.func @transform_4(%arg0: i32) -> (i32, i32) {
    %c0_i32 = arith.constant 0 : i32
    %c0_i32_0 = arith.constant 0 : i32
    %c0_i32_1 = arith.constant 0 : i32
    return %c0_i32, %c0_i32_0 : i32, i32
  }
  func.func @transform_5(%arg0: i32) -> (i32, i32) {
    %c0_i32 = arith.constant 0 : i32
    %c0_i32_0 = arith.constant 0 : i32
    return %arg0, %c0_i32 : i32, i32
  }
}

module attributes {stable_mosaic.version = 11 : i64} {
  func.func @_attention_kernel(%arg0: i32, %arg1: memref<4x6x16xf32, #tpu.memory_space<vmem>>, %arg2: memref<4x6x16xf32, #tpu.memory_space<vmem>>, %arg3: memref<4x6x16xf32, #tpu.memory_space<vmem>>, %arg4: memref<4x6x16xf32, #tpu.memory_space<vmem>>) attributes {dimension_semantics = [#tpu.dimension_semantics<parallel>], iteration_bounds = array<i64: 1>, scalar_prefetch = 0 : i64, scratch_operands = 0 : i64, tpu.core_type = #tpu.core_type<tc>, window_params = [{transform_indices = @transform_0, window_bounds = array<i64: 4, 6, 16>}, {transform_indices = @transform_1, window_bounds = array<i64: 4, 6, 16>}, {transform_indices = @transform_2, window_bounds = array<i64: 4, 6, 16>}, {transform_indices = @transform_3, window_bounds = array<i64: 4, 6, 16>}]} {
    %c0 = arith.constant 0 : index
    %c0_0 = arith.constant 0 : index
    %c0_1 = arith.constant 0 : index
    %0 = vector.load %arg1[%c0, %c0_0, %c0_1] : memref<4x6x16xf32, #tpu.memory_space<vmem>>, vector<4x6x16xf32>
    %1 = arith.truncf %0 : vector<4x6x16xf32> to vector<4x6x16xbf16>
    %c0_2 = arith.constant 0 : index
    %c0_3 = arith.constant 0 : index
    %c0_4 = arith.constant 0 : index
    %2 = vector.load %arg2[%c0_2, %c0_3, %c0_4] : memref<4x6x16xf32, #tpu.memory_space<vmem>>, vector<4x6x16xf32>
    %3 = arith.truncf %2 : vector<4x6x16xf32> to vector<4x6x16xbf16>
    %c0_5 = arith.constant 0 : index
    %c0_6 = arith.constant 0 : index
    %c0_7 = arith.constant 0 : index
    %4 = vector.load %arg3[%c0_5, %c0_6, %c0_7] : memref<4x6x16xf32, #tpu.memory_space<vmem>>, vector<4x6x16xf32>
    %5 = arith.truncf %4 : vector<4x6x16xf32> to vector<4x6x16xbf16>
    "tpu.trace_start"() <{level = 10 : i32, message = "bqd,bkd->bqk"}> : () -> ()
    %cst = arith.constant dense<0.000000e+00> : vector<4x6x6xf32>
    %6 = tpu.matmul %1, %3, %cst {dimension_numbers = #tpu.dot_dimension_numbers<[2], [2], [1], [1], [0, 0, 0, 1, 1, 1], [0], [0]>} : vector<4x6x16xbf16>, vector<4x6x16xbf16>, vector<4x6x6xf32> -> vector<4x6x6xf32>
    "tpu.trace_stop"() : () -> ()
    %cst_8 = arith.constant 2.500000e-01 : f32
    %7 = vector.broadcast %cst_8 : f32 to vector<4x6x6xf32>
    %8 = arith.mulf %6, %7 : vector<4x6x6xf32>
    %cst_9 = arith.constant dense<0xFF800000> : vector<4x6xf32>
    %9 = vector.multi_reduction <maximumf>, %8, %cst_9 [2] : vector<4x6x6xf32> to vector<4x6xf32>
    %10 = vector.shape_cast %9 : vector<4x6xf32> to vector<4x6x1xf32>
    %11 = vector.broadcast %10 : vector<4x6x1xf32> to vector<4x6x6xf32>
    %12 = arith.subf %8, %11 : vector<4x6x6xf32>
    %13 = math.exp %12 : vector<4x6x6xf32>
    %cst_10 = arith.constant dense<0.000000e+00> : vector<4x6xf32>
    %14 = vector.multi_reduction <add>, %13, %cst_10 [2] : vector<4x6x6xf32> to vector<4x6xf32>
    %15 = vector.shape_cast %14 : vector<4x6xf32> to vector<4x6x1xf32>
    %16 = arith.truncf %13 : vector<4x6x6xf32> to vector<4x6x6xbf16>
    "tpu.trace_start"() <{level = 10 : i32, message = "bqk,bkd->bqd"}> : () -> ()
    %cst_11 = arith.constant dense<0.000000e+00> : vector<4x6x16xf32>
    %17 = tpu.matmul %16, %5, %cst_11 {dimension_numbers = #tpu.dot_dimension_numbers<[2], [1], [1], [2], [0, 0, 0, 1, 1, 2], [0], [0]>} : vector<4x6x6xbf16>, vector<4x6x16xbf16>, vector<4x6x16xf32> -> vector<4x6x16xf32>
    "tpu.trace_stop"() : () -> ()
    %18 = tpu.reciprocal %15 {approx = true} : vector<4x6x1xf32> -> vector<4x6x1xf32>
    %19 = vector.broadcast %18 : vector<4x6x1xf32> to vector<4x6x16xf32>
    %20 = arith.mulf %17, %19 : vector<4x6x16xf32>
    %c0_12 = arith.constant 0 : index
    %c0_13 = arith.constant 0 : index
    %c0_14 = arith.constant 0 : index
    %21 = vector.load %arg4[%c0_12, %c0_13, %c0_14] : memref<4x6x16xf32, #tpu.memory_space<vmem>>, vector<4x6x16xf32>
    tpu.vector_store %arg4[%c0_12, %c0_13, %c0_14], %20 {strides = array<i32>} : memref<4x6x16xf32, #tpu.memory_space<vmem>>, vector<4x6x16xf32>,
    return
  }
  func.func @transform_0(%arg0: i32) -> (i32, i32, i32) {
    %c0_i32 = arith.constant 0 : i32
    %c0_i32_0 = arith.constant 0 : i32
    %c0_i32_1 = arith.constant 0 : i32
    return %arg0, %c0_i32, %c0_i32_0 : i32, i32, i32
  }
  func.func @transform_1(%arg0: i32) -> (i32, i32, i32) {
    %c0_i32 = arith.constant 0 : i32
    %c0_i32_0 = arith.constant 0 : i32
    %c0_i32_1 = arith.constant 0 : i32
    return %arg0, %c0_i32, %c0_i32_0 : i32, i32, i32
  }
  func.func @transform_2(%arg0: i32) -> (i32, i32, i32) {
    %c0_i32 = arith.constant 0 : i32
    %c0_i32_0 = arith.constant 0 : i32
    %c0_i32_1 = arith.constant 0 : i32
    return %arg0, %c0_i32, %c0_i32_0 : i32, i32, i32
  }
  func.func @transform_3(%arg0: i32) -> (i32, i32, i32) {
    %c0_i32 = arith.constant 0 : i32
    %c0_i32_0 = arith.constant 0 : i32
    %c0_i32_1 = arith.constant 0 : i32
    return %arg0, %c0_i32, %c0_i32_0 : i32, i32, i32
  }
}

module attributes {stable_mosaic.version = 11 : i64} {
  func.func @_matmul_res_kernel(%arg0: i32, %arg1: i32, %arg2: i32, %arg3: memref<12x32xf32, #tpu.memory_space<vmem>>, %arg4: memref<32x32xbf16, #tpu.memory_space<vmem>>, %arg5: memref<1x32xf32, #tpu.memory_space<vmem>>, %arg6: memref<12x32xf32, #tpu.memory_space<vmem>>, %arg7: memref<12x32xf32, #tpu.memory_space<vmem>>, %arg8: memref<12x32xf32, #tpu.memory_space<vmem>>) attributes {dimension_semantics = [#tpu.dimension_semantics<parallel>, #tpu.dimension_semantics<parallel>, #tpu.dimension_semantics<arbitrary>], iteration_bounds = array<i64: 1, 1, 1>, scalar_prefetch = 0 : i64, scratch_operands = 1 : i64, tpu.core_type = #tpu.core_type<tc>, window_params = [{transform_indices = @transform_0, window_bounds = array<i64: 12, 32>}, {transform_indices = @transform_1, window_bounds = array<i64: 32, 32>}, {transform_indices = @transform_2, window_bounds = array<i64: 1, 32>}, {transform_indices = @transform_3, window_bounds = array<i64: 12, 32>}, {transform_indices = @transform_4, window_bounds = array<i64: 12, 32>}]} {
    %c0_i32 = arith.constant 0 : i32
    %0 = arith.cmpi eq, %arg2, %c0_i32 : i32
    %1 = arith.extui %0 : i1 to i32
    %c0_i32_0 = arith.constant 0 : i32
    %2 = arith.cmpi ne, %1, %c0_i32_0 : i32
    scf.if %2 {
      %cst_10 = arith.constant 0.000000e+00 : f32
      %13 = vector.broadcast %cst_10 : f32 to vector<12x32xf32>
      %c0_11 = arith.constant 0 : index
      %c0_12 = arith.constant 0 : index
      %14 = vector.load %arg8[%c0_11, %c0_12] : memref<12x32xf32, #tpu.memory_space<vmem>>, vector<12x32xf32>
      tpu.vector_store %arg8[%c0_11, %c0_12], %13 {strides = array<i32>} : memref<12x32xf32, #tpu.memory_space<vmem>>, vector<12x32xf32>,
    } else {
    }
    %c0 = arith.constant 0 : index
    %c0_1 = arith.constant 0 : index
    %3 = vector.load %arg8[%c0, %c0_1] : memref<12x32xf32, #tpu.memory_space<vmem>>, vector<12x32xf32>
    %c0_2 = arith.constant 0 : index
    %c0_3 = arith.constant 0 : index
    %4 = vector.load %arg3[%c0_2, %c0_3] : memref<12x32xf32, #tpu.memory_space<vmem>>, vector<12x32xf32>
    %5 = arith.truncf %4 : vector<12x32xf32> to vector<12x32xbf16>
    %c0_4 = arith.constant 0 : index
    %c0_5 = arith.constant 0 : index
    %6 = vector.load %arg4[%c0_4, %c0_5] : memref<32x32xbf16, #tpu.memory_space<vmem>>, vector<32x32xbf16>
    %cst = arith.constant dense<0.000000e+00> : vector<12x32xf32>
    %7 = tpu.matmul %5, %6, %cst {dimension_numbers = #tpu.dot_dimension_numbers<[1], [0], [0], [1], [0, 0, 1, 1], [], []>} : vector<12x32xbf16>, vector<32x32xbf16>, vector<12x32xf32> -> vector<12x32xf32>
    %8 = arith.addf %3, %7 : vector<12x32xf32>
    %c0_6 = arith.constant 0 : index
    %c0_7 = arith.constant 0 : index
    %9 = vector.load %arg8[%c0_6, %c0_7] : memref<12x32xf32, #tpu.memory_space<vmem>>, vector<12x32xf32>
    tpu.vector_store %arg8[%c0_6, %c0_7], %8 {strides = array<i32>} : memref<12x32xf32, #tpu.memory_space<vmem>>, vector<12x32xf32>,
    %c0_i32_8 = arith.constant 0 : i32
    %10 = arith.cmpi eq, %arg2, %c0_i32_8 : i32
    %11 = arith.extui %10 : i1 to i32
    %c0_i32_9 = arith.constant 0 : i32
    %12 = arith.cmpi ne, %11, %c0_i32_9 : i32
    scf.if %12 {
      %c0_10 = arith.constant 0 : index
      %c0_11 = arith.constant 0 : index
      %13 = vector.load %arg8[%c0_10, %c0_11] : memref<12x32xf32, #tpu.memory_space<vmem>>, vector<12x32xf32>
      %c0_12 = arith.constant 0 : index
      %c0_13 = arith.constant 0 : index
      %14 = vector.load %arg5[%c0_12, %c0_13] : memref<1x32xf32, #tpu.memory_space<vmem>>, vector<1x32xf32>
      %15 = vector.broadcast %14 : vector<1x32xf32> to vector<12x32xf32>
      %16 = arith.addf %13, %15 : vector<12x32xf32>
      %c0_14 = arith.constant 0 : index
      %c0_15 = arith.constant 0 : index
      %17 = vector.load %arg6[%c0_14, %c0_15] : memref<12x32xf32, #tpu.memory_space<vmem>>, vector<12x32xf32>
      %18 = arith.addf %16, %17 : vector<12x32xf32>
      %c0_16 = arith.constant 0 : index
      %c0_17 = arith.constant 0 : index
      %19 = vector.load %arg7[%c0_16, %c0_17] : memref<12x32xf32, #tpu.memory_space<vmem>>, vector<12x32xf32>
      tpu.vector_store %arg7[%c0_16, %c0_17], %18 {strides = array<i32>} : memref<12x32xf32, #tpu.memory_space<vmem>>, vector<12x32xf32>,
    } else {
    }
    return
  }
  func.func @transform_0(%arg0: i32, %arg1: i32, %arg2: i32) -> (i32, i32) {
    %c0_i32 = arith.constant 0 : i32
    return %arg0, %arg2 : i32, i32
  }
  func.func @transform_1(%arg0: i32, %arg1: i32, %arg2: i32) -> (i32, i32) {
    %c0_i32 = arith.constant 0 : i32
    return %arg2, %arg1 : i32, i32
  }
  func.func @transform_2(%arg0: i32, %arg1: i32, %arg2: i32) -> (i32, i32) {
    %c0_i32 = arith.constant 0 : i32
    %c0_i32_0 = arith.constant 0 : i32
    return %c0_i32, %arg1 : i32, i32
  }
  func.func @transform_3(%arg0: i32, %arg1: i32, %arg2: i32) -> (i32, i32) {
    %c0_i32 = arith.constant 0 : i32
    return %arg0, %arg1 : i32, i32
  }
  func.func @transform_4(%arg0: i32, %arg1: i32, %arg2: i32) -> (i32, i32) {
    %c0_i32 = arith.constant 0 : i32
    return %arg0, %arg1 : i32, i32
  }
}

module attributes {stable_mosaic.version = 11 : i64} {
  func.func @_ln_ffn_kernel(%arg0: i32, %arg1: memref<12x32xf32, #tpu.memory_space<vmem>>, %arg2: memref<1x32xf32, #tpu.memory_space<vmem>>, %arg3: memref<1x32xf32, #tpu.memory_space<vmem>>, %arg4: memref<32x64xbf16, #tpu.memory_space<vmem>>, %arg5: memref<1x64xf32, #tpu.memory_space<vmem>>, %arg6: memref<64x32xbf16, #tpu.memory_space<vmem>>, %arg7: memref<1x32xf32, #tpu.memory_space<vmem>>, %arg8: memref<12x32xf32, #tpu.memory_space<vmem>>, %arg9: memref<12x32xf32, #tpu.memory_space<vmem>>) attributes {dimension_semantics = [#tpu.dimension_semantics<parallel>], iteration_bounds = array<i64: 1>, scalar_prefetch = 0 : i64, scratch_operands = 0 : i64, tpu.core_type = #tpu.core_type<tc>, window_params = [{transform_indices = @transform_0, window_bounds = array<i64: 12, 32>}, {pipeline_mode = #tpu.pipeline_mode<synchronous>, transform_indices = @transform_1, window_bounds = array<i64: 1, 32>}, {pipeline_mode = #tpu.pipeline_mode<synchronous>, transform_indices = @transform_2, window_bounds = array<i64: 1, 32>}, {pipeline_mode = #tpu.pipeline_mode<synchronous>, transform_indices = @transform_3, window_bounds = array<i64: 32, 64>}, {pipeline_mode = #tpu.pipeline_mode<synchronous>, transform_indices = @transform_4, window_bounds = array<i64: 1, 64>}, {pipeline_mode = #tpu.pipeline_mode<synchronous>, transform_indices = @transform_5, window_bounds = array<i64: 64, 32>}, {pipeline_mode = #tpu.pipeline_mode<synchronous>, transform_indices = @transform_6, window_bounds = array<i64: 1, 32>}, {transform_indices = @transform_7, window_bounds = array<i64: 12, 32>}, {transform_indices = @transform_8, window_bounds = array<i64: 12, 32>}]} {
    %c0 = arith.constant 0 : index
    %c0_0 = arith.constant 0 : index
    %0 = vector.load %arg1[%c0, %c0_0] : memref<12x32xf32, #tpu.memory_space<vmem>>, vector<12x32xf32>
    %cst = arith.constant dense<0.000000e+00> : vector<12xf32>
    %1 = vector.multi_reduction <add>, %0, %cst [1] : vector<12x32xf32> to vector<12xf32>
    %2 = vector.shape_cast %1 : vector<12xf32> to vector<12x1xf32>
    %cst_1 = arith.constant 3.200000e+01 : f32
    %3 = vector.broadcast %cst_1 : f32 to vector<12x1xf32>
    %4 = arith.divf %2, %3 : vector<12x1xf32>
    %5 = vector.broadcast %4 : vector<12x1xf32> to vector<12x32xf32>
    %6 = arith.subf %0, %5 : vector<12x32xf32>
    %7 = arith.mulf %6, %6 : vector<12x32xf32>
    %cst_2 = arith.constant dense<0.000000e+00> : vector<12xf32>
    %8 = vector.multi_reduction <add>, %7, %cst_2 [1] : vector<12x32xf32> to vector<12xf32>
    %9 = vector.shape_cast %8 : vector<12xf32> to vector<12x1xf32>
    %cst_3 = arith.constant 3.200000e+01 : f32
    %10 = vector.broadcast %cst_3 : f32 to vector<12x1xf32>
    %11 = arith.divf %9, %10 : vector<12x1xf32>
    %12 = vector.broadcast %4 : vector<12x1xf32> to vector<12x32xf32>
    %13 = arith.subf %0, %12 : vector<12x32xf32>
    %cst_4 = arith.constant 9.99999974E-6 : f32
    %14 = vector.broadcast %cst_4 : f32 to vector<12x1xf32>
    %15 = arith.addf %11, %14 : vector<12x1xf32>
    %16 = math.rsqrt %15 : vector<12x1xf32>
    %17 = vector.broadcast %16 : vector<12x1xf32> to vector<12x32xf32>
    %18 = arith.mulf %13, %17 : vector<12x32xf32>
    %c0_5 = arith.constant 0 : index
    %c0_6 = arith.constant 0 : index
    %19 = vector.load %arg2[%c0_5, %c0_6] : memref<1x32xf32, #tpu.memory_space<vmem>>, vector<1x32xf32>
    %20 = vector.broadcast %19 : vector<1x32xf32> to vector<12x32xf32>
    %21 = arith.mulf %18, %20 : vector<12x32xf32>
    %c0_7 = arith.constant 0 : index
    %c0_8 = arith.constant 0 : index
    %22 = vector.load %arg3[%c0_7, %c0_8] : memref<1x32xf32, #tpu.memory_space<vmem>>, vector<1x32xf32>
    %23 = vector.broadcast %22 : vector<1x32xf32> to vector<12x32xf32>
    %24 = arith.addf %21, %23 : vector<12x32xf32>
    %25 = arith.truncf %24 : vector<12x32xf32> to vector<12x32xbf16>
    %c0_9 = arith.constant 0 : index
    %c0_10 = arith.constant 0 : index
    %26 = vector.load %arg4[%c0_9, %c0_10] : memref<32x64xbf16, #tpu.memory_space<vmem>>, vector<32x64xbf16>
    %cst_11 = arith.constant dense<0.000000e+00> : vector<12x64xf32>
    %27 = tpu.matmul %25, %26, %cst_11 {dimension_numbers = #tpu.dot_dimension_numbers<[1], [0], [0], [1], [0, 0, 1, 1], [], []>} : vector<12x32xbf16>, vector<32x64xbf16>, vector<12x64xf32> -> vector<12x64xf32>
    %c0_12 = arith.constant 0 : index
    %c0_13 = arith.constant 0 : index
    %28 = vector.load %arg5[%c0_12, %c0_13] : memref<1x64xf32, #tpu.memory_space<vmem>>, vector<1x64xf32>
    %29 = vector.broadcast %28 : vector<1x64xf32> to vector<12x64xf32>
    %30 = arith.addf %27, %29 : vector<12x64xf32>
    %cst_14 = arith.constant 0.000000e+00 : f32
    %31 = vector.broadcast %cst_14 : f32 to vector<12x64xf32>
    %32 = arith.maximumf %30, %31 : vector<12x64xf32>
    %33 = arith.truncf %32 : vector<12x64xf32> to vector<12x64xbf16>
    %c0_15 = arith.constant 0 : index
    %c0_16 = arith.constant 0 : index
    %34 = vector.load %arg6[%c0_15, %c0_16] : memref<64x32xbf16, #tpu.memory_space<vmem>>, vector<64x32xbf16>
    %cst_17 = arith.constant dense<0.000000e+00> : vector<12x32xf32>
    %35 = tpu.matmul %33, %34, %cst_17 {dimension_numbers = #tpu.dot_dimension_numbers<[1], [0], [0], [1], [0, 0, 1, 1], [], []>} : vector<12x64xbf16>, vector<64x32xbf16>, vector<12x32xf32> -> vector<12x32xf32>
    %c0_18 = arith.constant 0 : index
    %c0_19 = arith.constant 0 : index
    %36 = vector.load %arg7[%c0_18, %c0_19] : memref<1x32xf32, #tpu.memory_space<vmem>>, vector<1x32xf32>
    %37 = vector.broadcast %36 : vector<1x32xf32> to vector<12x32xf32>
    %38 = arith.addf %35, %37 : vector<12x32xf32>
    %c0_20 = arith.constant 0 : index
    %c0_21 = arith.constant 0 : index
    %39 = vector.load %arg8[%c0_20, %c0_21] : memref<12x32xf32, #tpu.memory_space<vmem>>, vector<12x32xf32>
    %40 = arith.addf %38, %39 : vector<12x32xf32>
    %c0_22 = arith.constant 0 : index
    %c0_23 = arith.constant 0 : index
    %41 = vector.load %arg9[%c0_22, %c0_23] : memref<12x32xf32, #tpu.memory_space<vmem>>, vector<12x32xf32>
    tpu.vector_store %arg9[%c0_22, %c0_23], %40 {strides = array<i32>} : memref<12x32xf32, #tpu.memory_space<vmem>>, vector<12x32xf32>,
    return
  }
  func.func @transform_0(%arg0: i32) -> (i32, i32) {
    %c0_i32 = arith.constant 0 : i32
    %c0_i32_0 = arith.constant 0 : i32
    return %arg0, %c0_i32 : i32, i32
  }
  func.func @transform_1(%arg0: i32) -> (i32, i32) {
    %c0_i32 = arith.constant 0 : i32
    %c0_i32_0 = arith.constant 0 : i32
    %c0_i32_1 = arith.constant 0 : i32
    return %c0_i32, %c0_i32_0 : i32, i32
  }
  func.func @transform_2(%arg0: i32) -> (i32, i32) {
    %c0_i32 = arith.constant 0 : i32
    %c0_i32_0 = arith.constant 0 : i32
    %c0_i32_1 = arith.constant 0 : i32
    return %c0_i32, %c0_i32_0 : i32, i32
  }
  func.func @transform_3(%arg0: i32) -> (i32, i32) {
    %c0_i32 = arith.constant 0 : i32
    %c0_i32_0 = arith.constant 0 : i32
    %c0_i32_1 = arith.constant 0 : i32
    return %c0_i32, %c0_i32_0 : i32, i32
  }
  func.func @transform_4(%arg0: i32) -> (i32, i32) {
    %c0_i32 = arith.constant 0 : i32
    %c0_i32_0 = arith.constant 0 : i32
    %c0_i32_1 = arith.constant 0 : i32
    return %c0_i32, %c0_i32_0 : i32, i32
  }
  func.func @transform_5(%arg0: i32) -> (i32, i32) {
    %c0_i32 = arith.constant 0 : i32
    %c0_i32_0 = arith.constant 0 : i32
    %c0_i32_1 = arith.constant 0 : i32
    return %c0_i32, %c0_i32_0 : i32, i32
  }
  func.func @transform_6(%arg0: i32) -> (i32, i32) {
    %c0_i32 = arith.constant 0 : i32
    %c0_i32_0 = arith.constant 0 : i32
    %c0_i32_1 = arith.constant 0 : i32
    return %c0_i32, %c0_i32_0 : i32, i32
  }
  func.func @transform_7(%arg0: i32) -> (i32, i32) {
    %c0_i32 = arith.constant 0 : i32
    %c0_i32_0 = arith.constant 0 : i32
    return %arg0, %c0_i32 : i32, i32
  }
  func.func @transform_8(%arg0: i32) -> (i32, i32) {
    %c0_i32 = arith.constant 0 : i32
    %c0_i32_0 = arith.constant 0 : i32
    return %arg0, %c0_i32 : i32, i32
  }
}

module attributes {stable_mosaic.version = 11 : i64} {
  func.func @_layernorm_kernel(%arg0: i32, %arg1: memref<12x32xf32, #tpu.memory_space<vmem>>, %arg2: memref<1x32xf32, #tpu.memory_space<vmem>>, %arg3: memref<1x32xf32, #tpu.memory_space<vmem>>, %arg4: memref<12x32xf32, #tpu.memory_space<vmem>>) attributes {dimension_semantics = [#tpu.dimension_semantics<parallel>], iteration_bounds = array<i64: 1>, scalar_prefetch = 0 : i64, scratch_operands = 0 : i64, tpu.core_type = #tpu.core_type<tc>, window_params = [{transform_indices = @transform_0, window_bounds = array<i64: 12, 32>}, {pipeline_mode = #tpu.pipeline_mode<synchronous>, transform_indices = @transform_1, window_bounds = array<i64: 1, 32>}, {pipeline_mode = #tpu.pipeline_mode<synchronous>, transform_indices = @transform_2, window_bounds = array<i64: 1, 32>}, {transform_indices = @transform_3, window_bounds = array<i64: 12, 32>}]} {
    %c0 = arith.constant 0 : index
    %c0_0 = arith.constant 0 : index
    %0 = vector.load %arg1[%c0, %c0_0] : memref<12x32xf32, #tpu.memory_space<vmem>>, vector<12x32xf32>
    %cst = arith.constant dense<0.000000e+00> : vector<12xf32>
    %1 = vector.multi_reduction <add>, %0, %cst [1] : vector<12x32xf32> to vector<12xf32>
    %2 = vector.shape_cast %1 : vector<12xf32> to vector<12x1xf32>
    %cst_1 = arith.constant 3.200000e+01 : f32
    %3 = vector.broadcast %cst_1 : f32 to vector<12x1xf32>
    %4 = arith.divf %2, %3 : vector<12x1xf32>
    %5 = vector.broadcast %4 : vector<12x1xf32> to vector<12x32xf32>
    %6 = arith.subf %0, %5 : vector<12x32xf32>
    %7 = arith.mulf %6, %6 : vector<12x32xf32>
    %cst_2 = arith.constant dense<0.000000e+00> : vector<12xf32>
    %8 = vector.multi_reduction <add>, %7, %cst_2 [1] : vector<12x32xf32> to vector<12xf32>
    %9 = vector.shape_cast %8 : vector<12xf32> to vector<12x1xf32>
    %cst_3 = arith.constant 3.200000e+01 : f32
    %10 = vector.broadcast %cst_3 : f32 to vector<12x1xf32>
    %11 = arith.divf %9, %10 : vector<12x1xf32>
    %12 = vector.broadcast %4 : vector<12x1xf32> to vector<12x32xf32>
    %13 = arith.subf %0, %12 : vector<12x32xf32>
    %cst_4 = arith.constant 9.99999974E-6 : f32
    %14 = vector.broadcast %cst_4 : f32 to vector<12x1xf32>
    %15 = arith.addf %11, %14 : vector<12x1xf32>
    %16 = math.rsqrt %15 : vector<12x1xf32>
    %17 = vector.broadcast %16 : vector<12x1xf32> to vector<12x32xf32>
    %18 = arith.mulf %13, %17 : vector<12x32xf32>
    %c0_5 = arith.constant 0 : index
    %c0_6 = arith.constant 0 : index
    %19 = vector.load %arg2[%c0_5, %c0_6] : memref<1x32xf32, #tpu.memory_space<vmem>>, vector<1x32xf32>
    %20 = vector.broadcast %19 : vector<1x32xf32> to vector<12x32xf32>
    %21 = arith.mulf %18, %20 : vector<12x32xf32>
    %c0_7 = arith.constant 0 : index
    %c0_8 = arith.constant 0 : index
    %22 = vector.load %arg3[%c0_7, %c0_8] : memref<1x32xf32, #tpu.memory_space<vmem>>, vector<1x32xf32>
    %23 = vector.broadcast %22 : vector<1x32xf32> to vector<12x32xf32>
    %24 = arith.addf %21, %23 : vector<12x32xf32>
    %c0_9 = arith.constant 0 : index
    %c0_10 = arith.constant 0 : index
    %25 = vector.load %arg4[%c0_9, %c0_10] : memref<12x32xf32, #tpu.memory_space<vmem>>, vector<12x32xf32>
    tpu.vector_store %arg4[%c0_9, %c0_10], %24 {strides = array<i32>} : memref<12x32xf32, #tpu.memory_space<vmem>>, vector<12x32xf32>,
    return
  }
  func.func @transform_0(%arg0: i32) -> (i32, i32) {
    %c0_i32 = arith.constant 0 : i32
    %c0_i32_0 = arith.constant 0 : i32
    return %arg0, %c0_i32 : i32, i32
  }
  func.func @transform_1(%arg0: i32) -> (i32, i32) {
    %c0_i32 = arith.constant 0 : i32
    %c0_i32_0 = arith.constant 0 : i32
    %c0_i32_1 = arith.constant 0 : i32
    return %c0_i32, %c0_i32_0 : i32, i32
  }
  func.func @transform_2(%arg0: i32) -> (i32, i32) {
    %c0_i32 = arith.constant 0 : i32
    %c0_i32_0 = arith.constant 0 : i32
    %c0_i32_1 = arith.constant 0 : i32
    return %c0_i32, %c0_i32_0 : i32, i32
  }
  func.func @transform_3(%arg0: i32) -> (i32, i32) {
    %c0_i32 = arith.constant 0 : i32
    %c0_i32_0 = arith.constant 0 : i32
    return %arg0, %c0_i32 : i32, i32
  }
}

module attributes {stable_mosaic.version = 11 : i64} {
  func.func @_matmul_kernel(%arg0: i32, %arg1: i32, %arg2: i32, %arg3: memref<12x32xf32, #tpu.memory_space<vmem>>, %arg4: memref<32x64xbf16, #tpu.memory_space<vmem>>, %arg5: memref<1x64xf32, #tpu.memory_space<vmem>>, %arg6: memref<12x64xf32, #tpu.memory_space<vmem>>, %arg7: memref<12x64xf32, #tpu.memory_space<vmem>>) attributes {dimension_semantics = [#tpu.dimension_semantics<parallel>, #tpu.dimension_semantics<parallel>, #tpu.dimension_semantics<arbitrary>], iteration_bounds = array<i64: 1, 1, 1>, scalar_prefetch = 0 : i64, scratch_operands = 1 : i64, tpu.core_type = #tpu.core_type<tc>, window_params = [{transform_indices = @transform_0, window_bounds = array<i64: 12, 32>}, {transform_indices = @transform_1, window_bounds = array<i64: 32, 64>}, {transform_indices = @transform_2, window_bounds = array<i64: 1, 64>}, {transform_indices = @transform_3, window_bounds = array<i64: 12, 64>}]} {
    %c0_i32 = arith.constant 0 : i32
    %0 = arith.cmpi eq, %arg2, %c0_i32 : i32
    %1 = arith.extui %0 : i1 to i32
    %c0_i32_0 = arith.constant 0 : i32
    %2 = arith.cmpi ne, %1, %c0_i32_0 : i32
    scf.if %2 {
      %cst_10 = arith.constant 0.000000e+00 : f32
      %13 = vector.broadcast %cst_10 : f32 to vector<12x64xf32>
      %c0_11 = arith.constant 0 : index
      %c0_12 = arith.constant 0 : index
      %14 = vector.load %arg7[%c0_11, %c0_12] : memref<12x64xf32, #tpu.memory_space<vmem>>, vector<12x64xf32>
      tpu.vector_store %arg7[%c0_11, %c0_12], %13 {strides = array<i32>} : memref<12x64xf32, #tpu.memory_space<vmem>>, vector<12x64xf32>,
    } else {
    }
    %c0 = arith.constant 0 : index
    %c0_1 = arith.constant 0 : index
    %3 = vector.load %arg7[%c0, %c0_1] : memref<12x64xf32, #tpu.memory_space<vmem>>, vector<12x64xf32>
    %c0_2 = arith.constant 0 : index
    %c0_3 = arith.constant 0 : index
    %4 = vector.load %arg3[%c0_2, %c0_3] : memref<12x32xf32, #tpu.memory_space<vmem>>, vector<12x32xf32>
    %5 = arith.truncf %4 : vector<12x32xf32> to vector<12x32xbf16>
    %c0_4 = arith.constant 0 : index
    %c0_5 = arith.constant 0 : index
    %6 = vector.load %arg4[%c0_4, %c0_5] : memref<32x64xbf16, #tpu.memory_space<vmem>>, vector<32x64xbf16>
    %cst = arith.constant dense<0.000000e+00> : vector<12x64xf32>
    %7 = tpu.matmul %5, %6, %cst {dimension_numbers = #tpu.dot_dimension_numbers<[1], [0], [0], [1], [0, 0, 1, 1], [], []>} : vector<12x32xbf16>, vector<32x64xbf16>, vector<12x64xf32> -> vector<12x64xf32>
    %8 = arith.addf %3, %7 : vector<12x64xf32>
    %c0_6 = arith.constant 0 : index
    %c0_7 = arith.constant 0 : index
    %9 = vector.load %arg7[%c0_6, %c0_7] : memref<12x64xf32, #tpu.memory_space<vmem>>, vector<12x64xf32>
    tpu.vector_store %arg7[%c0_6, %c0_7], %8 {strides = array<i32>} : memref<12x64xf32, #tpu.memory_space<vmem>>, vector<12x64xf32>,
    %c0_i32_8 = arith.constant 0 : i32
    %10 = arith.cmpi eq, %arg2, %c0_i32_8 : i32
    %11 = arith.extui %10 : i1 to i32
    %c0_i32_9 = arith.constant 0 : i32
    %12 = arith.cmpi ne, %11, %c0_i32_9 : i32
    scf.if %12 {
      %c0_10 = arith.constant 0 : index
      %c0_11 = arith.constant 0 : index
      %13 = vector.load %arg7[%c0_10, %c0_11] : memref<12x64xf32, #tpu.memory_space<vmem>>, vector<12x64xf32>
      %c0_12 = arith.constant 0 : index
      %c0_13 = arith.constant 0 : index
      %14 = vector.load %arg5[%c0_12, %c0_13] : memref<1x64xf32, #tpu.memory_space<vmem>>, vector<1x64xf32>
      %15 = vector.broadcast %14 : vector<1x64xf32> to vector<12x64xf32>
      %16 = arith.addf %13, %15 : vector<12x64xf32>
      %c0_14 = arith.constant 0 : index
      %c0_15 = arith.constant 0 : index
      %17 = vector.load %arg6[%c0_14, %c0_15] : memref<12x64xf32, #tpu.memory_space<vmem>>, vector<12x64xf32>
      tpu.vector_store %arg6[%c0_14, %c0_15], %16 {strides = array<i32>} : memref<12x64xf32, #tpu.memory_space<vmem>>, vector<12x64xf32>,
    } else {
    }
    return
  }
  func.func @transform_0(%arg0: i32, %arg1: i32, %arg2: i32) -> (i32, i32) {
    %c0_i32 = arith.constant 0 : i32
    return %arg0, %arg2 : i32, i32
  }
  func.func @transform_1(%arg0: i32, %arg1: i32, %arg2: i32) -> (i32, i32) {
    %c0_i32 = arith.constant 0 : i32
    return %arg2, %arg1 : i32, i32
  }
  func.func @transform_2(%arg0: i32, %arg1: i32, %arg2: i32) -> (i32, i32) {
    %c0_i32 = arith.constant 0 : i32
    %c0_i32_0 = arith.constant 0 : i32
    return %c0_i32, %arg1 : i32, i32
  }
  func.func @transform_3(%arg0: i32, %arg1: i32, %arg2: i32) -> (i32, i32) {
    %c0_i32 = arith.constant 0 : i32
    return %arg0, %arg1 : i32, i32
  }
}

module attributes {stable_mosaic.version = 11 : i64} {
  func.func @_attention_kernel(%arg0: i32, %arg1: memref<4x8x16xf32, #tpu.memory_space<vmem>>, %arg2: memref<4x6x16xf32, #tpu.memory_space<vmem>>, %arg3: memref<4x6x16xf32, #tpu.memory_space<vmem>>, %arg4: memref<4x8x16xf32, #tpu.memory_space<vmem>>) attributes {dimension_semantics = [#tpu.dimension_semantics<parallel>], iteration_bounds = array<i64: 1>, scalar_prefetch = 0 : i64, scratch_operands = 0 : i64, tpu.core_type = #tpu.core_type<tc>, window_params = [{transform_indices = @transform_0, window_bounds = array<i64: 4, 8, 16>}, {transform_indices = @transform_1, window_bounds = array<i64: 4, 6, 16>}, {transform_indices = @transform_2, window_bounds = array<i64: 4, 6, 16>}, {transform_indices = @transform_3, window_bounds = array<i64: 4, 8, 16>}]} {
    %c0 = arith.constant 0 : index
    %c0_0 = arith.constant 0 : index
    %c0_1 = arith.constant 0 : index
    %0 = vector.load %arg1[%c0, %c0_0, %c0_1] : memref<4x8x16xf32, #tpu.memory_space<vmem>>, vector<4x8x16xf32>
    %1 = arith.truncf %0 : vector<4x8x16xf32> to vector<4x8x16xbf16>
    %c0_2 = arith.constant 0 : index
    %c0_3 = arith.constant 0 : index
    %c0_4 = arith.constant 0 : index
    %2 = vector.load %arg2[%c0_2, %c0_3, %c0_4] : memref<4x6x16xf32, #tpu.memory_space<vmem>>, vector<4x6x16xf32>
    %3 = arith.truncf %2 : vector<4x6x16xf32> to vector<4x6x16xbf16>
    %c0_5 = arith.constant 0 : index
    %c0_6 = arith.constant 0 : index
    %c0_7 = arith.constant 0 : index
    %4 = vector.load %arg3[%c0_5, %c0_6, %c0_7] : memref<4x6x16xf32, #tpu.memory_space<vmem>>, vector<4x6x16xf32>
    %5 = arith.truncf %4 : vector<4x6x16xf32> to vector<4x6x16xbf16>
    "tpu.trace_start"() <{level = 10 : i32, message = "bqd,bkd->bqk"}> : () -> ()
    %cst = arith.constant dense<0.000000e+00> : vector<4x8x6xf32>
    %6 = tpu.matmul %1, %3, %cst {dimension_numbers = #tpu.dot_dimension_numbers<[2], [2], [1], [1], [0, 0, 0, 1, 1, 1], [0], [0]>} : vector<4x8x16xbf16>, vector<4x6x16xbf16>, vector<4x8x6xf32> -> vector<4x8x6xf32>
    "tpu.trace_stop"() : () -> ()
    %cst_8 = arith.constant 2.500000e-01 : f32
    %7 = vector.broadcast %cst_8 : f32 to vector<4x8x6xf32>
    %8 = arith.mulf %6, %7 : vector<4x8x6xf32>
    %cst_9 = arith.constant dense<0xFF800000> : vector<4x8xf32>
    %9 = vector.multi_reduction <maximumf>, %8, %cst_9 [2] : vector<4x8x6xf32> to vector<4x8xf32>
    %10 = vector.shape_cast %9 : vector<4x8xf32> to vector<4x8x1xf32>
    %11 = vector.broadcast %10 : vector<4x8x1xf32> to vector<4x8x6xf32>
    %12 = arith.subf %8, %11 : vector<4x8x6xf32>
    %13 = math.exp %12 : vector<4x8x6xf32>
    %cst_10 = arith.constant dense<0.000000e+00> : vector<4x8xf32>
    %14 = vector.multi_reduction <add>, %13, %cst_10 [2] : vector<4x8x6xf32> to vector<4x8xf32>
    %15 = vector.shape_cast %14 : vector<4x8xf32> to vector<4x8x1xf32>
    %16 = arith.truncf %13 : vector<4x8x6xf32> to vector<4x8x6xbf16>
    "tpu.trace_start"() <{level = 10 : i32, message = "bqk,bkd->bqd"}> : () -> ()
    %cst_11 = arith.constant dense<0.000000e+00> : vector<4x8x16xf32>
    %17 = tpu.matmul %16, %5, %cst_11 {dimension_numbers = #tpu.dot_dimension_numbers<[2], [1], [1], [2], [0, 0, 0, 1, 1, 2], [0], [0]>} : vector<4x8x6xbf16>, vector<4x6x16xbf16>, vector<4x8x16xf32> -> vector<4x8x16xf32>
    "tpu.trace_stop"() : () -> ()
    %18 = tpu.reciprocal %15 {approx = true} : vector<4x8x1xf32> -> vector<4x8x1xf32>
    %19 = vector.broadcast %18 : vector<4x8x1xf32> to vector<4x8x16xf32>
    %20 = arith.mulf %17, %19 : vector<4x8x16xf32>
    %c0_12 = arith.constant 0 : index
    %c0_13 = arith.constant 0 : index
    %c0_14 = arith.constant 0 : index
    %21 = vector.load %arg4[%c0_12, %c0_13, %c0_14] : memref<4x8x16xf32, #tpu.memory_space<vmem>>, vector<4x8x16xf32>
    tpu.vector_store %arg4[%c0_12, %c0_13, %c0_14], %20 {strides = array<i32>} : memref<4x8x16xf32, #tpu.memory_space<vmem>>, vector<4x8x16xf32>,
    return
  }
  func.func @transform_0(%arg0: i32) -> (i32, i32, i32) {
    %c0_i32 = arith.constant 0 : i32
    %c0_i32_0 = arith.constant 0 : i32
    %c0_i32_1 = arith.constant 0 : i32
    return %arg0, %c0_i32, %c0_i32_0 : i32, i32, i32
  }
  func.func @transform_1(%arg0: i32) -> (i32, i32, i32) {
    %c0_i32 = arith.constant 0 : i32
    %c0_i32_0 = arith.constant 0 : i32
    %c0_i32_1 = arith.constant 0 : i32
    return %arg0, %c0_i32, %c0_i32_0 : i32, i32, i32
  }
  func.func @transform_2(%arg0: i32) -> (i32, i32, i32) {
    %c0_i32 = arith.constant 0 : i32
    %c0_i32_0 = arith.constant 0 : i32
    %c0_i32_1 = arith.constant 0 : i32
    return %arg0, %c0_i32, %c0_i32_0 : i32, i32, i32
  }
  func.func @transform_3(%arg0: i32) -> (i32, i32, i32) {
    %c0_i32 = arith.constant 0 : i32
    %c0_i32_0 = arith.constant 0 : i32
    %c0_i32_1 = arith.constant 0 : i32
    return %arg0, %c0_i32, %c0_i32_0 : i32, i32, i32
  }
}

module attributes {stable_mosaic.version = 11 : i64} {
  func.func @_ln_ffn_kernel(%arg0: i32, %arg1: memref<16x32xf32, #tpu.memory_space<vmem>>, %arg2: memref<1x32xf32, #tpu.memory_space<vmem>>, %arg3: memref<1x32xf32, #tpu.memory_space<vmem>>, %arg4: memref<32x64xbf16, #tpu.memory_space<vmem>>, %arg5: memref<1x64xf32, #tpu.memory_space<vmem>>, %arg6: memref<64x32xbf16, #tpu.memory_space<vmem>>, %arg7: memref<1x32xf32, #tpu.memory_space<vmem>>, %arg8: memref<16x32xf32, #tpu.memory_space<vmem>>, %arg9: memref<16x32xf32, #tpu.memory_space<vmem>>) attributes {dimension_semantics = [#tpu.dimension_semantics<parallel>], iteration_bounds = array<i64: 1>, scalar_prefetch = 0 : i64, scratch_operands = 0 : i64, tpu.core_type = #tpu.core_type<tc>, window_params = [{transform_indices = @transform_0, window_bounds = array<i64: 16, 32>}, {pipeline_mode = #tpu.pipeline_mode<synchronous>, transform_indices = @transform_1, window_bounds = array<i64: 1, 32>}, {pipeline_mode = #tpu.pipeline_mode<synchronous>, transform_indices = @transform_2, window_bounds = array<i64: 1, 32>}, {pipeline_mode = #tpu.pipeline_mode<synchronous>, transform_indices = @transform_3, window_bounds = array<i64: 32, 64>}, {pipeline_mode = #tpu.pipeline_mode<synchronous>, transform_indices = @transform_4, window_bounds = array<i64: 1, 64>}, {pipeline_mode = #tpu.pipeline_mode<synchronous>, transform_indices = @transform_5, window_bounds = array<i64: 64, 32>}, {pipeline_mode = #tpu.pipeline_mode<synchronous>, transform_indices = @transform_6, window_bounds = array<i64: 1, 32>}, {transform_indices = @transform_7, window_bounds = array<i64: 16, 32>}, {transform_indices = @transform_8, window_bounds = array<i64: 16, 32>}]} {
    %c0 = arith.constant 0 : index
    %c0_0 = arith.constant 0 : index
    %0 = vector.load %arg1[%c0, %c0_0] : memref<16x32xf32, #tpu.memory_space<vmem>>, vector<16x32xf32>
    %cst = arith.constant dense<0.000000e+00> : vector<16xf32>
    %1 = vector.multi_reduction <add>, %0, %cst [1] : vector<16x32xf32> to vector<16xf32>
    %2 = vector.shape_cast %1 : vector<16xf32> to vector<16x1xf32>
    %cst_1 = arith.constant 3.200000e+01 : f32
    %3 = vector.broadcast %cst_1 : f32 to vector<16x1xf32>
    %4 = arith.divf %2, %3 : vector<16x1xf32>
    %5 = vector.broadcast %4 : vector<16x1xf32> to vector<16x32xf32>
    %6 = arith.subf %0, %5 : vector<16x32xf32>
    %7 = arith.mulf %6, %6 : vector<16x32xf32>
    %cst_2 = arith.constant dense<0.000000e+00> : vector<16xf32>
    %8 = vector.multi_reduction <add>, %7, %cst_2 [1] : vector<16x32xf32> to vector<16xf32>
    %9 = vector.shape_cast %8 : vector<16xf32> to vector<16x1xf32>
    %cst_3 = arith.constant 3.200000e+01 : f32
    %10 = vector.broadcast %cst_3 : f32 to vector<16x1xf32>
    %11 = arith.divf %9, %10 : vector<16x1xf32>
    %12 = vector.broadcast %4 : vector<16x1xf32> to vector<16x32xf32>
    %13 = arith.subf %0, %12 : vector<16x32xf32>
    %cst_4 = arith.constant 9.99999974E-6 : f32
    %14 = vector.broadcast %cst_4 : f32 to vector<16x1xf32>
    %15 = arith.addf %11, %14 : vector<16x1xf32>
    %16 = math.rsqrt %15 : vector<16x1xf32>
    %17 = vector.broadcast %16 : vector<16x1xf32> to vector<16x32xf32>
    %18 = arith.mulf %13, %17 : vector<16x32xf32>
    %c0_5 = arith.constant 0 : index
    %c0_6 = arith.constant 0 : index
    %19 = vector.load %arg2[%c0_5, %c0_6] : memref<1x32xf32, #tpu.memory_space<vmem>>, vector<1x32xf32>
    %20 = vector.broadcast %19 : vector<1x32xf32> to vector<16x32xf32>
    %21 = arith.mulf %18, %20 : vector<16x32xf32>
    %c0_7 = arith.constant 0 : index
    %c0_8 = arith.constant 0 : index
    %22 = vector.load %arg3[%c0_7, %c0_8] : memref<1x32xf32, #tpu.memory_space<vmem>>, vector<1x32xf32>
    %23 = vector.broadcast %22 : vector<1x32xf32> to vector<16x32xf32>
    %24 = arith.addf %21, %23 : vector<16x32xf32>
    %25 = arith.truncf %24 : vector<16x32xf32> to vector<16x32xbf16>
    %c0_9 = arith.constant 0 : index
    %c0_10 = arith.constant 0 : index
    %26 = vector.load %arg4[%c0_9, %c0_10] : memref<32x64xbf16, #tpu.memory_space<vmem>>, vector<32x64xbf16>
    %cst_11 = arith.constant dense<0.000000e+00> : vector<16x64xf32>
    %27 = tpu.matmul %25, %26, %cst_11 {dimension_numbers = #tpu.dot_dimension_numbers<[1], [0], [0], [1], [0, 0, 1, 1], [], []>} : vector<16x32xbf16>, vector<32x64xbf16>, vector<16x64xf32> -> vector<16x64xf32>
    %c0_12 = arith.constant 0 : index
    %c0_13 = arith.constant 0 : index
    %28 = vector.load %arg5[%c0_12, %c0_13] : memref<1x64xf32, #tpu.memory_space<vmem>>, vector<1x64xf32>
    %29 = vector.broadcast %28 : vector<1x64xf32> to vector<16x64xf32>
    %30 = arith.addf %27, %29 : vector<16x64xf32>
    %cst_14 = arith.constant 0.000000e+00 : f32
    %31 = vector.broadcast %cst_14 : f32 to vector<16x64xf32>
    %32 = arith.maximumf %30, %31 : vector<16x64xf32>
    %33 = arith.truncf %32 : vector<16x64xf32> to vector<16x64xbf16>
    %c0_15 = arith.constant 0 : index
    %c0_16 = arith.constant 0 : index
    %34 = vector.load %arg6[%c0_15, %c0_16] : memref<64x32xbf16, #tpu.memory_space<vmem>>, vector<64x32xbf16>
    %cst_17 = arith.constant dense<0.000000e+00> : vector<16x32xf32>
    %35 = tpu.matmul %33, %34, %cst_17 {dimension_numbers = #tpu.dot_dimension_numbers<[1], [0], [0], [1], [0, 0, 1, 1], [], []>} : vector<16x64xbf16>, vector<64x32xbf16>, vector<16x32xf32> -> vector<16x32xf32>
    %c0_18 = arith.constant 0 : index
    %c0_19 = arith.constant 0 : index
    %36 = vector.load %arg7[%c0_18, %c0_19] : memref<1x32xf32, #tpu.memory_space<vmem>>, vector<1x32xf32>
    %37 = vector.broadcast %36 : vector<1x32xf32> to vector<16x32xf32>
    %38 = arith.addf %35, %37 : vector<16x32xf32>
    %c0_20 = arith.constant 0 : index
    %c0_21 = arith.constant 0 : index
    %39 = vector.load %arg8[%c0_20, %c0_21] : memref<16x32xf32, #tpu.memory_space<vmem>>, vector<16x32xf32>
    %40 = arith.addf %38, %39 : vector<16x32xf32>
    %c0_22 = arith.constant 0 : index
    %c0_23 = arith.constant 0 : index
    %41 = vector.load %arg9[%c0_22, %c0_23] : memref<16x32xf32, #tpu.memory_space<vmem>>, vector<16x32xf32>
    tpu.vector_store %arg9[%c0_22, %c0_23], %40 {strides = array<i32>} : memref<16x32xf32, #tpu.memory_space<vmem>>, vector<16x32xf32>,
    return
  }
  func.func @transform_0(%arg0: i32) -> (i32, i32) {
    %c0_i32 = arith.constant 0 : i32
    %c0_i32_0 = arith.constant 0 : i32
    return %arg0, %c0_i32 : i32, i32
  }
  func.func @transform_1(%arg0: i32) -> (i32, i32) {
    %c0_i32 = arith.constant 0 : i32
    %c0_i32_0 = arith.constant 0 : i32
    %c0_i32_1 = arith.constant 0 : i32
    return %c0_i32, %c0_i32_0 : i32, i32
  }
  func.func @transform_2(%arg0: i32) -> (i32, i32) {
    %c0_i32 = arith.constant 0 : i32
    %c0_i32_0 = arith.constant 0 : i32
    %c0_i32_1 = arith.constant 0 : i32
    return %c0_i32, %c0_i32_0 : i32, i32
  }
  func.func @transform_3(%arg0: i32) -> (i32, i32) {
    %c0_i32 = arith.constant 0 : i32
    %c0_i32_0 = arith.constant 0 : i32
    %c0_i32_1 = arith.constant 0 : i32
    return %c0_i32, %c0_i32_0 : i32, i32
  }
  func.func @transform_4(%arg0: i32) -> (i32, i32) {
    %c0_i32 = arith.constant 0 : i32
    %c0_i32_0 = arith.constant 0 : i32
    %c0_i32_1 = arith.constant 0 : i32
    return %c0_i32, %c0_i32_0 : i32, i32
  }
  func.func @transform_5(%arg0: i32) -> (i32, i32) {
    %c0_i32 = arith.constant 0 : i32
    %c0_i32_0 = arith.constant 0 : i32
    %c0_i32_1 = arith.constant 0 : i32
    return %c0_i32, %c0_i32_0 : i32, i32
  }
  func.func @transform_6(%arg0: i32) -> (i32, i32) {
    %c0_i32 = arith.constant 0 : i32
    %c0_i32_0 = arith.constant 0 : i32
    %c0_i32_1 = arith.constant 0 : i32
    return %c0_i32, %c0_i32_0 : i32, i32
  }
  func.func @transform_7(%arg0: i32) -> (i32, i32) {
    %c0_i32 = arith.constant 0 : i32
    %c0_i32_0 = arith.constant 0 : i32
    return %arg0, %c0_i32 : i32, i32
  }
  func.func @transform_8(%arg0: i32) -> (i32, i32) {
    %c0_i32 = arith.constant 0 : i32
    %c0_i32_0 = arith.constant 0 : i32
    return %arg0, %c0_i32 : i32, i32
  }
}

module attributes {stable_mosaic.version = 11 : i64} {
  func.func @_ln_mlp_kernel(%arg0: i32, %arg1: memref<16x32xf32, #tpu.memory_space<vmem>>, %arg2: memref<1x32xf32, #tpu.memory_space<vmem>>, %arg3: memref<1x32xf32, #tpu.memory_space<vmem>>, %arg4: memref<32x256xbf16, #tpu.memory_space<vmem>>, %arg5: memref<1x256xf32, #tpu.memory_space<vmem>>, %arg6: memref<256x256xbf16, #tpu.memory_space<vmem>>, %arg7: memref<1x256xf32, #tpu.memory_space<vmem>>, %arg8: memref<256x1xbf16, #tpu.memory_space<vmem>>, %arg9: memref<1x1xf32, #tpu.memory_space<vmem>>, %arg10: memref<16x1xf32, #tpu.memory_space<vmem>>) attributes {dimension_semantics = [#tpu.dimension_semantics<parallel>], iteration_bounds = array<i64: 1>, scalar_prefetch = 0 : i64, scratch_operands = 0 : i64, tpu.core_type = #tpu.core_type<tc>, window_params = [{transform_indices = @transform_0, window_bounds = array<i64: 16, 32>}, {pipeline_mode = #tpu.pipeline_mode<synchronous>, transform_indices = @transform_1, window_bounds = array<i64: 1, 32>}, {pipeline_mode = #tpu.pipeline_mode<synchronous>, transform_indices = @transform_2, window_bounds = array<i64: 1, 32>}, {pipeline_mode = #tpu.pipeline_mode<synchronous>, transform_indices = @transform_3, window_bounds = array<i64: 32, 256>}, {pipeline_mode = #tpu.pipeline_mode<synchronous>, transform_indices = @transform_4, window_bounds = array<i64: 1, 256>}, {pipeline_mode = #tpu.pipeline_mode<synchronous>, transform_indices = @transform_5, window_bounds = array<i64: 256, 256>}, {pipeline_mode = #tpu.pipeline_mode<synchronous>, transform_indices = @transform_6, window_bounds = array<i64: 1, 256>}, {pipeline_mode = #tpu.pipeline_mode<synchronous>, transform_indices = @transform_7, window_bounds = array<i64: 256, 1>}, {pipeline_mode = #tpu.pipeline_mode<synchronous>, transform_indices = @transform_8, window_bounds = array<i64: 1, 1>}, {transform_indices = @transform_9, window_bounds = array<i64: 16, 1>}]} {
    %c0 = arith.constant 0 : index
    %c0_0 = arith.constant 0 : index
    %0 = vector.load %arg1[%c0, %c0_0] : memref<16x32xf32, #tpu.memory_space<vmem>>, vector<16x32xf32>
    %cst = arith.constant dense<0.000000e+00> : vector<16xf32>
    %1 = vector.multi_reduction <add>, %0, %cst [1] : vector<16x32xf32> to vector<16xf32>
    %2 = vector.shape_cast %1 : vector<16xf32> to vector<16x1xf32>
    %cst_1 = arith.constant 3.200000e+01 : f32
    %3 = vector.broadcast %cst_1 : f32 to vector<16x1xf32>
    %4 = arith.divf %2, %3 : vector<16x1xf32>
    %5 = vector.broadcast %4 : vector<16x1xf32> to vector<16x32xf32>
    %6 = arith.subf %0, %5 : vector<16x32xf32>
    %7 = arith.mulf %6, %6 : vector<16x32xf32>
    %cst_2 = arith.constant dense<0.000000e+00> : vector<16xf32>
    %8 = vector.multi_reduction <add>, %7, %cst_2 [1] : vector<16x32xf32> to vector<16xf32>
    %9 = vector.shape_cast %8 : vector<16xf32> to vector<16x1xf32>
    %cst_3 = arith.constant 3.200000e+01 : f32
    %10 = vector.broadcast %cst_3 : f32 to vector<16x1xf32>
    %11 = arith.divf %9, %10 : vector<16x1xf32>
    %12 = vector.broadcast %4 : vector<16x1xf32> to vector<16x32xf32>
    %13 = arith.subf %0, %12 : vector<16x32xf32>
    %cst_4 = arith.constant 9.99999974E-6 : f32
    %14 = vector.broadcast %cst_4 : f32 to vector<16x1xf32>
    %15 = arith.addf %11, %14 : vector<16x1xf32>
    %16 = math.rsqrt %15 : vector<16x1xf32>
    %17 = vector.broadcast %16 : vector<16x1xf32> to vector<16x32xf32>
    %18 = arith.mulf %13, %17 : vector<16x32xf32>
    %c0_5 = arith.constant 0 : index
    %c0_6 = arith.constant 0 : index
    %19 = vector.load %arg2[%c0_5, %c0_6] : memref<1x32xf32, #tpu.memory_space<vmem>>, vector<1x32xf32>
    %20 = vector.broadcast %19 : vector<1x32xf32> to vector<16x32xf32>
    %21 = arith.mulf %18, %20 : vector<16x32xf32>
    %c0_7 = arith.constant 0 : index
    %c0_8 = arith.constant 0 : index
    %22 = vector.load %arg3[%c0_7, %c0_8] : memref<1x32xf32, #tpu.memory_space<vmem>>, vector<1x32xf32>
    %23 = vector.broadcast %22 : vector<1x32xf32> to vector<16x32xf32>
    %24 = arith.addf %21, %23 : vector<16x32xf32>
    %25 = arith.truncf %24 : vector<16x32xf32> to vector<16x32xbf16>
    %c0_9 = arith.constant 0 : index
    %c0_10 = arith.constant 0 : index
    %26 = vector.load %arg4[%c0_9, %c0_10] : memref<32x256xbf16, #tpu.memory_space<vmem>>, vector<32x256xbf16>
    %cst_11 = arith.constant dense<0.000000e+00> : vector<16x256xf32>
    %27 = tpu.matmul %25, %26, %cst_11 {dimension_numbers = #tpu.dot_dimension_numbers<[1], [0], [0], [1], [0, 0, 1, 1], [], []>} : vector<16x32xbf16>, vector<32x256xbf16>, vector<16x256xf32> -> vector<16x256xf32>
    %c0_12 = arith.constant 0 : index
    %c0_13 = arith.constant 0 : index
    %28 = vector.load %arg5[%c0_12, %c0_13] : memref<1x256xf32, #tpu.memory_space<vmem>>, vector<1x256xf32>
    %29 = vector.broadcast %28 : vector<1x256xf32> to vector<16x256xf32>
    %30 = arith.addf %27, %29 : vector<16x256xf32>
    %cst_14 = arith.constant 0.000000e+00 : f32
    %31 = vector.broadcast %cst_14 : f32 to vector<16x256xf32>
    %32 = arith.maximumf %30, %31 : vector<16x256xf32>
    %33 = arith.truncf %32 : vector<16x256xf32> to vector<16x256xbf16>
    %c0_15 = arith.constant 0 : index
    %c0_16 = arith.constant 0 : index
    %34 = vector.load %arg6[%c0_15, %c0_16] : memref<256x256xbf16, #tpu.memory_space<vmem>>, vector<256x256xbf16>
    %cst_17 = arith.constant dense<0.000000e+00> : vector<16x256xf32>
    %35 = tpu.matmul %33, %34, %cst_17 {dimension_numbers = #tpu.dot_dimension_numbers<[1], [0], [0], [1], [0, 0, 1, 1], [], []>} : vector<16x256xbf16>, vector<256x256xbf16>, vector<16x256xf32> -> vector<16x256xf32>
    %c0_18 = arith.constant 0 : index
    %c0_19 = arith.constant 0 : index
    %36 = vector.load %arg7[%c0_18, %c0_19] : memref<1x256xf32, #tpu.memory_space<vmem>>, vector<1x256xf32>
    %37 = vector.broadcast %36 : vector<1x256xf32> to vector<16x256xf32>
    %38 = arith.addf %35, %37 : vector<16x256xf32>
    %cst_20 = arith.constant 0.000000e+00 : f32
    %39 = vector.broadcast %cst_20 : f32 to vector<16x256xf32>
    %40 = arith.maximumf %38, %39 : vector<16x256xf32>
    %41 = arith.truncf %40 : vector<16x256xf32> to vector<16x256xbf16>
    %c0_21 = arith.constant 0 : index
    %c0_22 = arith.constant 0 : index
    %42 = vector.load %arg8[%c0_21, %c0_22] : memref<256x1xbf16, #tpu.memory_space<vmem>>, vector<256x1xbf16>
    %cst_23 = arith.constant dense<0.000000e+00> : vector<16x1xf32>
    %43 = tpu.matmul %41, %42, %cst_23 {dimension_numbers = #tpu.dot_dimension_numbers<[1], [0], [0], [1], [0, 0, 1, 1], [], []>} : vector<16x256xbf16>, vector<256x1xbf16>, vector<16x1xf32> -> vector<16x1xf32>
    %c0_24 = arith.constant 0 : index
    %c0_25 = arith.constant 0 : index
    %44 = vector.load %arg9[%c0_24, %c0_25] : memref<1x1xf32, #tpu.memory_space<vmem>>, vector<1x1xf32>
    %45 = vector.broadcast %44 : vector<1x1xf32> to vector<16x1xf32>
    %46 = arith.addf %43, %45 : vector<16x1xf32>
    %c0_26 = arith.constant 0 : index
    %c0_27 = arith.constant 0 : index
    %47 = vector.load %arg10[%c0_26, %c0_27] : memref<16x1xf32, #tpu.memory_space<vmem>>, vector<16x1xf32>
    tpu.vector_store %arg10[%c0_26, %c0_27], %46 {strides = array<i32>} : memref<16x1xf32, #tpu.memory_space<vmem>>, vector<16x1xf32>,
    return
  }
  func.func @transform_0(%arg0: i32) -> (i32, i32) {
    %c0_i32 = arith.constant 0 : i32
    %c0_i32_0 = arith.constant 0 : i32
    return %arg0, %c0_i32 : i32, i32
  }
  func.func @transform_1(%arg0: i32) -> (i32, i32) {
    %c0_i32 = arith.constant 0 : i32
    %c0_i32_0 = arith.constant 0 : i32
    %c0_i32_1 = arith.constant 0 : i32
    return %c0_i32, %c0_i32_0 : i32, i32
  }
  func.func @transform_2(%arg0: i32) -> (i32, i32) {
    %c0_i32 = arith.constant 0 : i32
    %c0_i32_0 = arith.constant 0 : i32
    %c0_i32_1 = arith.constant 0 : i32
    return %c0_i32, %c0_i32_0 : i32, i32
  }
  func.func @transform_3(%arg0: i32) -> (i32, i32) {
    %c0_i32 = arith.constant 0 : i32
    %c0_i32_0 = arith.constant 0 : i32
    %c0_i32_1 = arith.constant 0 : i32
    return %c0_i32, %c0_i32_0 : i32, i32
  }
  func.func @transform_4(%arg0: i32) -> (i32, i32) {
    %c0_i32 = arith.constant 0 : i32
    %c0_i32_0 = arith.constant 0 : i32
    %c0_i32_1 = arith.constant 0 : i32
    return %c0_i32, %c0_i32_0 : i32, i32
  }
  func.func @transform_5(%arg0: i32) -> (i32, i32) {
    %c0_i32 = arith.constant 0 : i32
    %c0_i32_0 = arith.constant 0 : i32
    %c0_i32_1 = arith.constant 0 : i32
    return %c0_i32, %c0_i32_0 : i32, i32
  }
  func.func @transform_6(%arg0: i32) -> (i32, i32) {
    %c0_i32 = arith.constant 0 : i32
    %c0_i32_0 = arith.constant 0 : i32
    %c0_i32_1 = arith.constant 0 : i32
    return %c0_i32, %c0_i32_0 : i32, i32
  }
  func.func @transform_7(%arg0: i32) -> (i32, i32) {
    %c0_i32 = arith.constant 0 : i32
    %c0_i32_0 = arith.constant 0 : i32
    %c0_i32_1 = arith.constant 0 : i32
    return %c0_i32, %c0_i32_0 : i32, i32
  }
  func.func @transform_8(%arg0: i32) -> (i32, i32) {
    %c0_i32 = arith.constant 0 : i32
    %c0_i32_0 = arith.constant 0 : i32
    %c0_i32_1 = arith.constant 0 : i32
    return %c0_i32, %c0_i32_0 : i32, i32
  }
  func.func @transform_9(%arg0: i32) -> (i32, i32) {
    %c0_i32 = arith.constant 0 : i32
    %c0_i32_0 = arith.constant 0 : i32
    return %arg0, %c0_i32 : i32, i32
  }
}

</mosaic_0001>

<llo_original>
// kernel: _lambda_.29
$region0: #{_lambda_.29}
  #allocation0 [shape = 'u32[]', space=smem, size = 0x4, offset = 0x4, fixed_abs, tag = 'smem constant byte address 0x4 - core index']
  #allocation1 [shape = 'u32[144,128]{1,0:T(1,128)}', space=vmem, size = 0x12000, scoped, tag = 'internal scratch']
  #allocation2 [shape = 'f32[16,32]{1,0:T(8,128)}', space=vmem, size = 0x2000, scoped, tag = 'scratch operand']
  %s0 = inlined_call_operand.vmem [shape: f32[16,20], index: 0, kind: input, shape index: {}]
  %s1 = inlined_call_operand.vmem [shape: bf16[20,32], index: 1, kind: input, shape index: {}]
  %s2 = inlined_call_operand.vmem [shape: f32[1,32], index: 2, kind: input, shape index: {}]
  %s3 = inlined_call_operand.vmem [shape: f32[16,32], index: 3, kind: output, shape index: {}]
  %s4 = sld [smem:[#allocation0]]
  $region30: #{_lambda_.29} parent=0
    _
  %s6 = ssub.s32 1, %s4
  %s7 = scalar_select 0, %s6, %s4
  // Predicated region
  $region2: #{_lambda_.29} parent=0 // pred_check
    _
  $region3: #{_lambda_.29} parent=0 // pred_check_branch
    %9 = sbr.rel (0) target = $region5
  $region4: #{_lambda_.29} parent=0 // pred_region
    _
  $region5: #{_lambda_.29} parent=0 // pred_fallthru
    _
  // Predicated region
  $region6: #{_lambda_.29} parent=0 // pred_check
    _
  $region7: #{_lambda_.29} parent=0 // pred_check_branch
    %11 = sbr.rel (0) target = $region9
  $region8: #{_lambda_.29} parent=0 // pred_region
    _
  $region9: #{_lambda_.29} parent=0 // pred_fallthru
    _
  // Predicated region
  $region10: #{_lambda_.29} parent=0 // pred_check
    _
  $region11: #{_lambda_.29} parent=0 // pred_check_branch
    %13 = sbr.rel (0) target = $region13
  $region12: #{_lambda_.29} parent=0 // pred_region
    _
  $region13: #{_lambda_.29} parent=0 // pred_fallthru
    _
  %p15 = scmp.eq.s32.totalorder 0, 0
  // Predicated region
  $region14: #{_lambda_.29} parent=0 // pred_check
    %p16 = pneg %p15
  $region15: #{_lambda_.29} parent=0 // pred_check_branch
    %18 = sbr.rel (%p16) target = $region17
  $region16: #{_lambda_.29} parent=0 // pred_region
    %vm19 = vcmask 261120
    %20 = vst.msk [vmem:[#allocation2] sm:$0xff] %vm19, 0.0
    %21 = vst.msk [vmem:[#allocation2 + $0x8] sm:$0xff] %vm19, 0.0
  $region17: #{_lambda_.29} parent=0 // pred_fallthru
    _
  %v22 = vld [vmem:[#allocation2] sm:$0xff]
  %v23 = vld [vmem:[#allocation2 + $0x8] sm:$0xff]
  %v24 = vld [vmem:[%s0] sm:$0xff]
  %v25 = vld [vmem:[%s0 + $0x8] sm:$0xff]
  %v26 = vpack.c.bf16 %v25, %v24
  %v27 = vld [vmem:[%s1] sm:$0xf]
  %v28 = vld [vmem:[%s1 + $0x4] sm:$0xf]
  %v29 = vld [vmem:[%s1 + $0x8] sm:$0x3]
  %v33 = vunpack.c.l.b16 %v27
  %v34 = vunpack.c.l.b16 %v28
  %v35 = vunpack.c.l.b16 %v29
  %v36 = vpack.c.b16 %v34, %v33
  %v37 = vpack.c.b16 %v35, %v35
  %vm39 = vcmask 162816
  %v41 = vsel %vm39, %v26, 0
  %vm43 = vcmask 1041408
  %v45 = vsel %vm43, %v37, 0
  %47 = vmatprep.subr.bf16.mxu0 0
  %48 = vmatpush1.bf16.msra.mxu0 %v36
  %49 = vmatprep.subr.bf16.mxu0 0
  %50 = vmatpush1.bf16.msra.mxu0 %v45
  %51 = vmatprep.subr.bf16.mxu0 0
  %52 = vmatpush1.bf16.msra.mxu0 0
  %53 = vmatprep.subr.bf16.mxu0 0
  %54 = vmatpush1.bf16.msra.mxu0 0
  %55 = vmatprep.subr.bf16.mxu0 0
  %56 = vmatpush1.bf16.msra.mxu0 0
  %57 = vmatprep.subr.bf16.mxu0 0
  %58 = vmatpush1.bf16.msra.mxu0 0
  %59 = vmatprep.subr.bf16.mxu0 0
  %60 = vmatpush1.bf16.msra.mxu0 0
  %61 = vmatprep.subr.bf16.mxu0 0
  %62 = vmatpush1.bf16.msra.mxu0 0
  %63 = vmatprep.subr.bf16.mxu0 0
  %64 = vmatpush1.bf16.msra.mxu0 0
  %65 = vmatprep.subr.bf16.mxu0 0
  %66 = vmatpush1.bf16.msra.mxu0 0
  %67 = vmatprep.subr.bf16.mxu0 0
  %68 = vmatpush1.bf16.msra.mxu0 0
  %69 = vmatprep.subr.bf16.mxu0 0
  %70 = vmatpush1.bf16.msra.mxu0 0
  %71 = vmatprep.subr.bf16.mxu0 0
  %72 = vmatpush1.bf16.msra.mxu0 0
  %73 = vmatprep.subr.bf16.mxu0 0
  %74 = vmatpush1.bf16.msra.mxu0 0
  %75 = vmatprep.subr.bf16.mxu0 0
  %76 = vmatpush1.bf16.msra.mxu0 0
  %77 = vmatprep.subr.bf16.mxu0 0
  %78 = vmatpush1.bf16.msra.mxu0 0
  %79 = vmatprep.mubr.bf16.mxu0 0
  %80 = vmatmul.mubr.bf16.gmra.mrb[0].mxu0 %v41
  %v81 = vpop.f32.mrb[0].mxu0
  %v82 = vadd.f32 0.0, %v81
  %v83 = vpop.f32.mrb[0].mxu0
  %v84 = vpop.f32.mrb[0].mxu0
  %v85 = vadd.f32 0.0, %v84
  %v86 = vpop.f32.mrb[0].mxu0
  %87 = vdwg.mxu0
  %v88 = vadd.f32 %v22, %v82
  %v89 = vadd.f32 %v23, %v85
  %vm90 = vcmask 261120
  %91 = vst.msk [vmem:[#allocation2] sm:$0xff] %vm90, %v88
  %92 = vst.msk [vmem:[#allocation2 + $0x8] sm:$0xff] %vm90, %v89
  // Predicated region
  $region18: #{_lambda_.29} parent=0 // pred_check
    %p93 = pneg %p15
  $region19: #{_lambda_.29} parent=0 // pred_check_branch
    %95 = sbr.rel (%p93) target = $region21
  $region20: #{_lambda_.29} parent=0 // pred_region
    %v96 = vld [vmem:[#allocation2] sm:$0xff]
    %v97 = vld [vmem:[#allocation2 + $0x8] sm:$0xff]
    %v98 = vld [vmem:[%s2] sm:$0x1]
    %v100 = vlaneseq
    %v101 = vshrl.u32 %v100, 7
    %v102 = vsub.s32 0, %v101
    %v103 = vrot.slane %v98, %v102
    %v105 = vadd.f32 %v96, %v103
    %v106 = vadd.f32 %v97, %v103
    %107 = vst.msk [vmem:[%s3] sm:$0xff] %vm90, %v105
    %108 = vst.msk [vmem:[%s3 + $0x8] sm:$0xff] %vm90, %v106
  $region21: #{_lambda_.29} parent=0 // pred_fallthru
    _
  // Predicated region
  $region22: #{_lambda_.29} parent=0 // pred_check
    _
  $region23: #{_lambda_.29} parent=0 // pred_check_branch
    %110 = sbr.rel (0) target = $region25
  $region24: #{_lambda_.29} parent=0 // pred_region
    _
  $region25: #{_lambda_.29} parent=0 // pred_fallthru
    _
  // Predicated region
  $region26: #{_lambda_.29} parent=0 // pred_check
    _
  $region27: #{_lambda_.29} parent=0 // pred_check_branch
    %112 = sbr.rel (0) target = $region29
  $region28: #{_lambda_.29} parent=0 // pred_region
    _
  $region29: #{_lambda_.29} parent=0 // pred_fallthru
    _

// kernel: _lambda_.39
$region0: #{_lambda_.39}
  #allocation0 [shape = 'u32[]', space=smem, size = 0x4, offset = 0x4, fixed_abs, tag = 'smem constant byte address 0x4 - core index']
  #allocation1 [shape = 'u32[144,128]{1,0:T(1,128)}', space=vmem, size = 0x12000, scoped, tag = 'internal scratch']
  %s0 = inlined_call_operand.vmem [shape: f32[16,32], index: 0, kind: input, shape index: {}]
  %s1 = inlined_call_operand.vmem [shape: f32[1,32], index: 1, kind: input, shape index: {}]
  %s2 = inlined_call_operand.vmem [shape: f32[1,32], index: 2, kind: input, shape index: {}]
  %s3 = inlined_call_operand.vmem [shape: bf16[32,96], index: 3, kind: input, shape index: {}]
  %s4 = inlined_call_operand.vmem [shape: f32[1,96], index: 4, kind: input, shape index: {}]
  %s5 = inlined_call_operand.vmem [shape: f32[16,96], index: 5, kind: output, shape index: {}]
  %s6 = sld [smem:[#allocation0]]
  $region30: #{_lambda_.39} parent=0
    _
  %s8 = ssub.s32 1, %s6
  %s9 = scalar_select 0, %s8, %s6
  // Predicated region
  $region2: #{_lambda_.39} parent=0 // pred_check
    _
  $region3: #{_lambda_.39} parent=0 // pred_check_branch
    %11 = sbr.rel (0) target = $region5
  $region4: #{_lambda_.39} parent=0 // pred_region
    _
  $region5: #{_lambda_.39} parent=0 // pred_fallthru
    _
  // Predicated region
  $region6: #{_lambda_.39} parent=0 // pred_check
    _
  $region7: #{_lambda_.39} parent=0 // pred_check_branch
    %13 = sbr.rel (0) target = $region9
  $region8: #{_lambda_.39} parent=0 // pred_region
    _
  $region9: #{_lambda_.39} parent=0 // pred_fallthru
    _
  // Predicated region
  $region10: #{_lambda_.39} parent=0 // pred_check
    _
  $region11: #{_lambda_.39} parent=0 // pred_check_branch
    %15 = sbr.rel (0) target = $region13
  $region12: #{_lambda_.39} parent=0 // pred_region
    _
  $region13: #{_lambda_.39} parent=0 // pred_fallthru
    _
  // Predicated region
  $region14: #{_lambda_.39} parent=0 // pred_check
    _
  $region15: #{_lambda_.39} parent=0 // pred_check_branch
    %17 = sbr.rel (0) target = $region17
  $region16: #{_lambda_.39} parent=0 // pred_region
    _
  $region17: #{_lambda_.39} parent=0 // pred_fallthru
    _
  // Predicated region
  $region18: #{_lambda_.39} parent=0 // pred_check
    _
  $region19: #{_lambda_.39} parent=0 // pred_check_branch
    %19 = sbr.rel (0) target = $region21
  $region20: #{_lambda_.39} parent=0 // pred_region
    _
  $region21: #{_lambda_.39} parent=0 // pred_fallthru
    _
  %v21 = vld [vmem:[%s0] sm:$0xff]
  %v22 = vld [vmem:[%s0 + $0x8] sm:$0xff]
  %vm23 = vcmask 261120
  %v24 = vsel %vm23, %v21, 0.0
  %25 = vadd.xlane.f32.xlu0 %v24
  %v26 = vpop.xlane.xlu0 %25
  %v27 = vsel %vm23, %v22, 0.0
  %28 = vadd.xlane.f32.xlu0 %v27
  %v29 = vpop.xlane.xlu0 %28
  %v30 = vrcp.pop 32.0
  %v31 = vmul.f32 %v26, %v30
  %v32 = vmul.f32 %v29, %v30
  %v33 = vsub.f32 %v21, %v31
  %v34 = vsub.f32 %v22, %v32
  %v35 = vmul.f32 %v33, %v33
  %v36 = vmul.f32 %v34, %v34
  %v37 = vsel %vm23, %v35, 0.0
  %38 = vadd.xlane.f32.xlu0 %v37
  %v39 = vpop.xlane.xlu0 %38
  %v40 = vsel %vm23, %v36, 0.0
  %41 = vadd.xlane.f32.xlu0 %v40
  %v42 = vpop.xlane.xlu0 %41
  %v43 = vmul.f32 %v39, %v30
  %v44 = vmul.f32 %v42, %v30
  %v45 = vadd.f32 %v43, 1e-05
  %v46 = vadd.f32 %v44, 1e-05
  %v47 = vrsqrt.pop %v45
  %v48 = vrsqrt.pop %v46
  %v49 = vmul.f32 %v33, %v47
  %v50 = vmul.f32 %v34, %v48
  %v51 = vld [vmem:[%s1] sm:$0x1]
  %v53 = vlaneseq
  %v54 = vshrl.u32 %v53, 7
  %v55 = vsub.s32 0, %v54
  %v56 = vrot.slane %v51, %v55
  %v58 = vmul.f32 %v49, %v56
  %v59 = vmul.f32 %v50, %v56
  %v60 = vld [vmem:[%s2] sm:$0x1]
  %v62 = vlaneseq
  %v63 = vshrl.u32 %v62, 7
  %v64 = vsub.s32 0, %v63
  %v65 = vrot.slane %v60, %v64
  %v67 = vadd.f32 %v58, %v65
  %v68 = vadd.f32 %v59, %v65
  %v69 = vpack.c.bf16 %v68, %v67
  %v70 = vld [vmem:[%s3] sm:$0xf]
  %v71 = vld [vmem:[%s3 + $0x4] sm:$0xf]
  %v72 = vld [vmem:[%s3 + $0x8] sm:$0xf]
  %v73 = vld [vmem:[%s3 + $0xc] sm:$0xf]
  %v74 = vld [vmem:[%s4] sm:$0x1]
  %v76 = vlaneseq
  %v77 = vshrl.u32 %v76, 7
  %v78 = vsub.s32 0, %v77
  %v79 = vrot.slane %v74, %v78
  %v85 = vunpack.c.l.b16 %v70
  %v86 = vunpack.c.l.b16 %v71
  %v87 = vunpack.c.l.b16 %v72
  %v88 = vunpack.c.l.b16 %v73
  %v89 = vpack.c.b16 %v86, %v85
  %v90 = vpack.c.b16 %v88, %v87
  %v94 = vsel %vm23, %v69, 0
  %96 = vmatprep.subr.bf16.mxu0 0
  %97 = vmatpush1.bf16.msra.mxu0 %v89
  %98 = vmatprep.subr.bf16.mxu0 0
  %99 = vmatpush1.bf16.msra.mxu0 %v90
  %100 = vmatprep.subr.bf16.mxu0 0
  %101 = vmatpush1.bf16.msra.mxu0 0
  %102 = vmatprep.subr.bf16.mxu0 0
  %103 = vmatpush1.bf16.msra.mxu0 0
  %104 = vmatprep.subr.bf16.mxu0 0
  %105 = vmatpush1.bf16.msra.mxu0 0
  %106 = vmatprep.subr.bf16.mxu0 0
  %107 = vmatpush1.bf16.msra.mxu0 0
  %108 = vmatprep.subr.bf16.mxu0 0
  %109 = vmatpush1.bf16.msra.mxu0 0
  %110 = vmatprep.subr.bf16.mxu0 0
  %111 = vmatpush1.bf16.msra.mxu0 0
  %112 = vmatprep.subr.bf16.mxu0 0
  %113 = vmatpush1.bf16.msra.mxu0 0
  %114 = vmatprep.subr.bf16.mxu0 0
  %115 = vmatpush1.bf16.msra.mxu0 0
  %116 = vmatprep.subr.bf16.mxu0 0
  %117 = vmatpush1.bf16.msra.mxu0 0
  %118 = vmatprep.subr.bf16.mxu0 0
  %119 = vmatpush1.bf16.msra.mxu0 0
  %120 = vmatprep.subr.bf16.mxu0 0
  %121 = vmatpush1.bf16.msra.mxu0 0
  %122 = vmatprep.subr.bf16.mxu0 0
  %123 = vmatpush1.bf16.msra.mxu0 0
  %124 = vmatprep.subr.bf16.mxu0 0
  %125 = vmatpush1.bf16.msra.mxu0 0
  %126 = vmatprep.subr.bf16.mxu0 0
  %127 = vmatpush1.bf16.msra.mxu0 0
  %128 = vmatprep.mubr.bf16.mxu0 0
  %129 = vmatmul.mubr.bf16.gmra.mrb[0].mxu0 %v94
  %v130 = vpop.f32.mrb[0].mxu0
  %v131 = vadd.f32 %v79, %v130
  %v132 = vpop.f32.mrb[0].mxu0
  %v133 = vpop.f32.mrb[0].mxu0
  %v134 = vadd.f32 %v79, %v133
  %v135 = vpop.f32.mrb[0].mxu0
  %136 = vdwg.mxu0
  %vm137 = vcmask 785408
  %138 = vst.msk [vmem:[%s5] sm:$0xff] %vm137, %v131
  %139 = vst.msk [vmem:[%s5 + $0x8] sm:$0xff] %vm137, %v134
  // Predicated region
  $region22: #{_lambda_.39} parent=0 // pred_check
    _
  $region23: #{_lambda_.39} parent=0 // pred_check_branch
    %141 = sbr.rel (0) target = $region25
  $region24: #{_lambda_.39} parent=0 // pred_region
    _
  $region25: #{_lambda_.39} parent=0 // pred_fallthru
    _
  // Predicated region
  $region26: #{_lambda_.39} parent=0 // pred_check
    _
  $region27: #{_lambda_.39} parent=0 // pred_check_branch
    %143 = sbr.rel (0) target = $region29
  $region28: #{_lambda_.39} parent=0 // pred_region
    _
  $region29: #{_lambda_.39} parent=0 // pred_fallthru
    _

// kernel: squeeze.1
$region0: #{squeeze.1}
  %s0 = inlined_call_operand.vmem [shape: f32[1,2,96], index: 0, kind: input, shape index: {}]
  %s1 = inlined_call_operand.vmem [shape: f32[2,6,16], index: 1, kind: output, shape index: {}]
  $region1: #{squeeze.1} parent=0
    #allocation0 [shape = 'u8[4096]{0}', space=vmem, size = 0x1000, scoped, tag = 'scoped mem for input reshape']
    %s3 = sshllo.u32 0, 2
    %v4 = vld [vmem:[%s0] sm:%s3]
    %5 = vst [vmem:[#allocation0] sm:%s3] %v4
    %v6 = vld [vmem:[#allocation0] sm:$0x3]
    %vm7 = vcmask 130048
    %8 = vst.msk [vmem:[%s1] ss:$8 sm:$0x3] %vm7, %v6
    %v9 = vld [vmem:[#allocation0] sm:$0x3]
    %10 = vrot.lane.b32.xlu0 %v9, 112
    %v11 = vpop.permute.xlu0 %10
    %vm12 = vcmask 130048
    %s13 = scalar_lea.vmem %s1, 1
    %14 = vst.msk [vmem:[%s13] ss:$8 sm:$0x3] %vm12, %v11
    %v15 = vld [vmem:[#allocation0] sm:$0x3]
    %16 = vrot.lane.b32.xlu0 %v15, 96
    %v17 = vpop.permute.xlu0 %16
    %vm18 = vcmask 130048
    %s19 = scalar_lea.vmem %s1, 2
    %20 = vst.msk [vmem:[%s19] ss:$8 sm:$0x3] %vm18, %v17
    %v21 = vld [vmem:[#allocation0] sm:$0x3]
    %22 = vrot.lane.b32.xlu0 %v21, 80
    %v23 = vpop.permute.xlu0 %22
    %vm24 = vcmask 130048
    %s25 = scalar_lea.vmem %s1, 3
    %26 = vst.msk [vmem:[%s25] ss:$8 sm:$0x3] %vm24, %v23
    %v27 = vld [vmem:[#allocation0] sm:$0x3]
    %28 = vrot.lane.b32.xlu0 %v27, 64
    %v29 = vpop.permute.xlu0 %28
    %vm30 = vcmask 130048
    %s31 = scalar_lea.vmem %s1, 4
    %32 = vst.msk [vmem:[%s31] ss:$8 sm:$0x3] %vm30, %v29
    %v33 = vld [vmem:[#allocation0] sm:$0x3]
    %34 = vrot.lane.b32.xlu0 %v33, 48
    %v35 = vpop.permute.xlu0 %34
    %vm36 = vcmask 130048
    %s37 = scalar_lea.vmem %s1, 5
    %38 = vst.msk [vmem:[%s37] ss:$8 sm:$0x3] %vm36, %v35

// kernel: _lambda_.40
$region0: #{_lambda_.40}
  #allocation0 [shape = 'u32[]', space=smem, size = 0x4, offset = 0x4, fixed_abs, tag = 'smem constant byte address 0x4 - core index']
  #allocation1 [shape = 'u32[144,128]{1,0:T(1,128)}', space=vmem, size = 0x12000, scoped, tag = 'internal scratch']
  %s0 = inlined_call_operand.vmem [shape: f32[4,8,16], index: 0, kind: input, shape index: {}]
  %s1 = inlined_call_operand.vmem [shape: f32[4,8,16], index: 1, kind: input, shape index: {}]
  %s2 = inlined_call_operand.vmem [shape: f32[4,8,16], index: 2, kind: input, shape index: {}]
  %s3 = inlined_call_operand.vmem [shape: f32[4,8,16], index: 3, kind: output, shape index: {}]
  %s4 = sld [smem:[#allocation0]]
  $region22: #{_lambda_.40} parent=0
    _
  %s6 = ssub.s32 1, %s4
  %s7 = scalar_select 0, %s6, %s4
  // Predicated region
  $region2: #{_lambda_.40} parent=0 // pred_check
    _
  $region3: #{_lambda_.40} parent=0 // pred_check_branch
    %9 = sbr.rel (0) target = $region5
  $region4: #{_lambda_.40} parent=0 // pred_region
    _
  $region5: #{_lambda_.40} parent=0 // pred_fallthru
    _
  // Predicated region
  $region6: #{_lambda_.40} parent=0 // pred_check
    _
  $region7: #{_lambda_.40} parent=0 // pred_check_branch
    %11 = sbr.rel (0) target = $region9
  $region8: #{_lambda_.40} parent=0 // pred_region
    _
  $region9: #{_lambda_.40} parent=0 // pred_fallthru
    _
  // Predicated region
  $region10: #{_lambda_.40} parent=0 // pred_check
    _
  $region11: #{_lambda_.40} parent=0 // pred_check_branch
    %13 = sbr.rel (0) target = $region13
  $region12: #{_lambda_.40} parent=0 // pred_region
    _
  $region13: #{_lambda_.40} parent=0 // pred_fallthru
    _
  %v15 = vld [vmem:[%s0] sm:$0xff]
  %v16 = vld [vmem:[%s0 + $0x8] sm:$0xff]
  %v17 = vld [vmem:[%s0 + $0x10] sm:$0xff]
  %v18 = vld [vmem:[%s0 + $0x18] sm:$0xff]
  %v19 = vpack.c.bf16 %v15, %v15
  %v20 = vpack.c.bf16 %v16, %v16
  %v21 = vpack.c.bf16 %v17, %v17
  %v22 = vpack.c.bf16 %v18, %v18
  %v23 = vld [vmem:[%s1] sm:$0xff]
  %v24 = vld [vmem:[%s1 + $0x8] sm:$0xff]
  %v25 = vld [vmem:[%s1 + $0x10] sm:$0xff]
  %v26 = vld [vmem:[%s1 + $0x18] sm:$0xff]
  %v27 = vpack.c.bf16 %v23, %v23
  %v28 = vpack.c.bf16 %v24, %v24
  %v29 = vpack.c.bf16 %v25, %v25
  %v30 = vpack.c.bf16 %v26, %v26
  %v31 = vld [vmem:[%s2] sm:$0xff]
  %v32 = vld [vmem:[%s2 + $0x8] sm:$0xff]
  %v33 = vld [vmem:[%s2 + $0x10] sm:$0xff]
  %v34 = vld [vmem:[%s2 + $0x18] sm:$0xff]
  %v35 = vpack.c.bf16 %v31, %v31
  %v36 = vpack.c.bf16 %v32, %v32
  %v37 = vpack.c.bf16 %v33, %v33
  %v38 = vpack.c.bf16 %v34, %v34
  %vm39 = vcmask 130048
  %v41 = vsel %vm39, %v19, 0
  %v44 = vsel %vm39, %v27, 0
  %46 = vmatprep.subr.bf16.mxu0 0
  %47 = vmatpush1.bf16.xpose.msra.mxu0 %v44
  %48 = vmatprep.subr.bf16.mxu0 0
  %49 = vmatpush1.bf16.xpose.msra.mxu0 0
  %50 = vmatprep.subr.bf16.mxu0 0
  %51 = vmatpush1.bf16.xpose.msra.mxu0 0
  %52 = vmatprep.subr.bf16.mxu0 0
  %53 = vmatpush1.bf16.xpose.msra.mxu0 0
  %54 = vmatprep.subr.bf16.mxu0 0
  %55 = vmatpush1.bf16.xpose.msra.mxu0 0
  %56 = vmatprep.subr.bf16.mxu0 0
  %57 = vmatpush1.bf16.xpose.msra.mxu0 0
  %58 = vmatprep.subr.bf16.mxu0 0
  %59 = vmatpush1.bf16.xpose.msra.mxu0 0
  %60 = vmatprep.subr.bf16.mxu0 0
  %61 = vmatpush1.bf16.xpose.msra.mxu0 0
  %62 = vmatprep.subr.bf16.mxu0 0
  %63 = vmatpush1.bf16.xpose.msra.mxu0 0
  %64 = vmatprep.subr.bf16.mxu0 0
  %65 = vmatpush1.bf16.xpose.msra.mxu0 0
  %66 = vmatprep.subr.bf16.mxu0 0
  %67 = vmatpush1.bf16.xpose.msra.mxu0 0
  %68 = vmatprep.subr.bf16.mxu0 0
  %69 = vmatpush1.bf16.xpose.msra.mxu0 0
  %70 = vmatprep.subr.bf16.mxu0 0
  %71 = vmatpush1.bf16.xpose.msra.mxu0 0
  %72 = vmatprep.subr.bf16.mxu0 0
  %73 = vmatpush1.bf16.xpose.msra.mxu0 0
  %74 = vmatprep.subr.bf16.mxu0 0
  %75 = vmatpush1.bf16.xpose.msra.mxu0 0
  %76 = vmatprep.subr.bf16.mxu0 0
  %77 = vmatpush1.bf16.xpose.msra.mxu0 0
  %78 = vmatprep.mubr.bf16.mxu0 0
  %79 = vmatmul.mubr.bf16.gmra.mrb[0].mxu0 %v41
  %v80 = vpop.f32.mrb[0].mxu0
  %v81 = vadd.f32 0.0, %v80
  %v82 = vpop.f32.mrb[0].mxu0
  %v83 = vpop.f32.mrb[0].mxu0
  %v84 = vpop.f32.mrb[0].mxu0
  %85 = vdwg.mxu0
  %v87 = vsel %vm39, %v20, 0
  %v90 = vsel %vm39, %v28, 0
  %92 = vmatprep.subr.bf16.mxu0 0
  %93 = vmatpush1.bf16.xpose.msra.mxu0 %v90
  %94 = vmatprep.subr.bf16.mxu0 0
  %95 = vmatpush1.bf16.xpose.msra.mxu0 0
  %96 = vmatprep.subr.bf16.mxu0 0
  %97 = vmatpush1.bf16.xpose.msra.mxu0 0
  %98 = vmatprep.subr.bf16.mxu0 0
  %99 = vmatpush1.bf16.xpose.msra.mxu0 0
  %100 = vmatprep.subr.bf16.mxu0 0
  %101 = vmatpush1.bf16.xpose.msra.mxu0 0
  %102 = vmatprep.subr.bf16.mxu0 0
  %103 = vmatpush1.bf16.xpose.msra.mxu0 0
  %104 = vmatprep.subr.bf16.mxu0 0
  %105 = vmatpush1.bf16.xpose.msra.mxu0 0
  %106 = vmatprep.subr.bf16.mxu0 0
  %107 = vmatpush1.bf16.xpose.msra.mxu0 0
  %108 = vmatprep.subr.bf16.mxu0 0
  %109 = vmatpush1.bf16.xpose.msra.mxu0 0
  %110 = vmatprep.subr.bf16.mxu0 0
  %111 = vmatpush1.bf16.xpose.msra.mxu0 0
  %112 = vmatprep.subr.bf16.mxu0 0
  %113 = vmatpush1.bf16.xpose.msra.mxu0 0
  %114 = vmatprep.subr.bf16.mxu0 0
  %115 = vmatpush1.bf16.xpose.msra.mxu0 0
  %116 = vmatprep.subr.bf16.mxu0 0
  %117 = vmatpush1.bf16.xpose.msra.mxu0 0
  %118 = vmatprep.subr.bf16.mxu0 0
  %119 = vmatpush1.bf16.xpose.msra.mxu0 0
  %120 = vmatprep.subr.bf16.mxu0 0
  %121 = vmatpush1.bf16.xpose.msra.mxu0 0
  %122 = vmatprep.subr.bf16.mxu0 0
  %123 = vmatpush1.bf16.xpose.msra.mxu0 0
  %124 = vmatprep.mubr.bf16.mxu0 0
  %125 = vmatmul.mubr.bf16.gmra.mrb[0].mxu0 %v87
  %v126 = vpop.f32.mrb[0].mxu0
  %v127 = vadd.f32 0.0, %v126
  %v128 = vpop.f32.mrb[0].mxu0
  %v129 = vpop.f32.mrb[0].mxu0
  %v130 = vpop.f32.mrb[0].mxu0
  %131 = vdwg.mxu0
  %v133 = vsel %vm39, %v21, 0
  %v136 = vsel %vm39, %v29, 0
  %138 = vmatprep.subr.bf16.mxu0 0
  %139 = vmatpush1.bf16.xpose.msra.mxu0 %v136
  %140 = vmatprep.subr.bf16.mxu0 0
  %141 = vmatpush1.bf16.xpose.msra.mxu0 0
  %142 = vmatprep.subr.bf16.mxu0 0
  %143 = vmatpush1.bf16.xpose.msra.mxu0 0
  %144 = vmatprep.subr.bf16.mxu0 0
  %145 = vmatpush1.bf16.xpose.msra.mxu0 0
  %146 = vmatprep.subr.bf16.mxu0 0
  %147 = vmatpush1.bf16.xpose.msra.mxu0 0
  %148 = vmatprep.subr.bf16.mxu0 0
  %149 = vmatpush1.bf16.xpose.msra.mxu0 0
  %150 = vmatprep.subr.bf16.mxu0 0
  %151 = vmatpush1.bf16.xpose.msra.mxu0 0
  %152 = vmatprep.subr.bf16.mxu0 0
  %153 = vmatpush1.bf16.xpose.msra.mxu0 0
  %154 = vmatprep.subr.bf16.mxu0 0
  %155 = vmatpush1.bf16.xpose.msra.mxu0 0
  %156 = vmatprep.subr.bf16.mxu0 0
  %157 = vmatpush1.bf16.xpose.msra.mxu0 0
  %158 = vmatprep.subr.bf16.mxu0 0
  %159 = vmatpush1.bf16.xpose.msra.mxu0 0
  %160 = vmatprep.subr.bf16.mxu0 0
  %161 = vmatpush1.bf16.xpose.msra.mxu0 0
  %162 = vmatprep.subr.bf16.mxu0 0
  %163 = vmatpush1.bf16.xpose.msra.mxu0 0
  %164 = vmatprep.subr.bf16.mxu0 0
  %165 = vmatpush1.bf16.xpose.msra.mxu0 0
  %166 = vmatprep.subr.bf16.mxu0 0
  %167 = vmatpush1.bf16.xpose.msra.mxu0 0
  %168 = vmatprep.subr.bf16.mxu0 0
  %169 = vmatpush1.bf16.xpose.msra.mxu0 0
  %170 = vmatprep.mubr.bf16.mxu0 0
  %171 = vmatmul.mubr.bf16.gmra.mrb[0].mxu0 %v133
  %v172 = vpop.f32.mrb[0].mxu0
  %v173 = vadd.f32 0.0, %v172
  %v174 = vpop.f32.mrb[0].mxu0
  %v175 = vpop.f32.mrb[0].mxu0
  %v176 = vpop.f32.mrb[0].mxu0
  %177 = vdwg.mxu0
  %v179 = vsel %vm39, %v22, 0
  %v182 = vsel %vm39, %v30, 0
  %184 = vmatprep.subr.bf16.mxu0 0
  %185 = vmatpush1.bf16.xpose.msra.mxu0 %v182
  %186 = vmatprep.subr.bf16.mxu0 0
  %187 = vmatpush1.bf16.xpose.msra.mxu0 0
  %188 = vmatprep.subr.bf16.mxu0 0
  %189 = vmatpush1.bf16.xpose.msra.mxu0 0
  %190 = vmatprep.subr.bf16.mxu0 0
  %191 = vmatpush1.bf16.xpose.msra.mxu0 0
  %192 = vmatprep.subr.bf16.mxu0 0
  %193 = vmatpush1.bf16.xpose.msra.mxu0 0
  %194 = vmatprep.subr.bf16.mxu0 0
  %195 = vmatpush1.bf16.xpose.msra.mxu0 0
  %196 = vmatprep.subr.bf16.mxu0 0
  %197 = vmatpush1.bf16.xpose.msra.mxu0 0
  %198 = vmatprep.subr.bf16.mxu0 0
  %199 = vmatpush1.bf16.xpose.msra.mxu0 0
  %200 = vmatprep.subr.bf16.mxu0 0
  %201 = vmatpush1.bf16.xpose.msra.mxu0 0
  %202 = vmatprep.subr.bf16.mxu0 0
  %203 = vmatpush1.bf16.xpose.msra.mxu0 0
  %204 = vmatprep.subr.bf16.mxu0 0
  %205 = vmatpush1.bf16.xpose.msra.mxu0 0
  %206 = vmatprep.subr.bf16.mxu0 0
  %207 = vmatpush1.bf16.xpose.msra.mxu0 0
  %208 = vmatprep.subr.bf16.mxu0 0
  %209 = vmatpush1.bf16.xpose.msra.mxu0 0
  %210 = vmatprep.subr.bf16.mxu0 0
  %211 = vmatpush1.bf16.xpose.msra.mxu0 0
  %212 = vmatprep.subr.bf16.mxu0 0
  %213 = vmatpush1.bf16.xpose.msra.mxu0 0
  %214 = vmatprep.subr.bf16.mxu0 0
  %215 = vmatpush1.bf16.xpose.msra.mxu0 0
  %216 = vmatprep.mubr.bf16.mxu0 0
  %217 = vmatmul.mubr.bf16.gmra.mrb[0].mxu0 %v179
  %v218 = vpop.f32.mrb[0].mxu0
  %v219 = vadd.f32 0.0, %v218
  %v220 = vpop.f32.mrb[0].mxu0
  %v221 = vpop.f32.mrb[0].mxu0
  %v222 = vpop.f32.mrb[0].mxu0
  %223 = vdwg.mxu0
  %v224 = vmul.f32 %v81, 0.25
  %v225 = vmul.f32 %v127, 0.25
  %v226 = vmul.f32 %v173, 0.25
  %v227 = vmul.f32 %v219, 0.25
  %v228 = vlaneseq
  %v229 = vshrl.u32 %v228, 7
  %v230 = vlaneseq
  %v231 = vand.u32 %v230, 127
  %vm232 = vcmp.le.s32.totalorder %v231, %v229
  %v233 = vsel %vm232, 1, 0
  %vm234 = vcmp.eq.s32.totalorder %v233, 1
  %v235 = vsel %vm234, %v224, -1e+30
  %v236 = vsel %vm234, %v225, -1e+30
  %v237 = vsel %vm234, %v226, -1e+30
  %v238 = vsel %vm234, %v227, -1e+30
  %vm239 = vcmask 64512
  %v240 = vsel %vm239, %v235, -inf
  %241 = vmax.xlane.f32.xlu0 %v240
  %v242 = vpop.xlane.xlu0 %241
  %v243 = vsel %vm239, %v236, -inf
  %244 = vmax.xlane.f32.xlu0 %v243
  %v245 = vpop.xlane.xlu0 %244
  %v246 = vsel %vm239, %v237, -inf
  %247 = vmax.xlane.f32.xlu0 %v246
  %v248 = vpop.xlane.xlu0 %247
  %v249 = vsel %vm239, %v238, -inf
  %250 = vmax.xlane.f32.xlu0 %v249
  %v251 = vpop.xlane.xlu0 %250
  %v252 = vsub.f32 %v235, %v242
  %v253 = vsub.f32 %v236, %v245
  %v254 = vsub.f32 %v237, %v248
  %v255 = vsub.f32 %v238, %v251
  %v256 = vmul.f32 %v252, 1.442695
  %v257 = vpow.pop %v256
  %v258 = vmul.f32 %v253, 1.442695
  %v259 = vpow.pop %v258
  %v260 = vmul.f32 %v254, 1.442695
  %v261 = vpow.pop %v260
  %v262 = vmul.f32 %v255, 1.442695
  %v263 = vpow.pop %v262
  %v264 = vsel %vm239, %v257, 0.0
  %265 = vadd.xlane.f32.xlu0 %v264
  %v266 = vpop.xlane.xlu0 %265
  %v267 = vsel %vm239, %v259, 0.0
  %268 = vadd.xlane.f32.xlu0 %v267
  %v269 = vpop.xlane.xlu0 %268
  %v270 = vsel %vm239, %v261, 0.0
  %271 = vadd.xlane.f32.xlu0 %v270
  %v272 = vpop.xlane.xlu0 %271
  %v273 = vsel %vm239, %v263, 0.0
  %274 = vadd.xlane.f32.xlu0 %v273
  %v275 = vpop.xlane.xlu0 %274
  %v276 = vpack.c.bf16 %v257, %v257
  %v277 = vpack.c.bf16 %v259, %v259
  %v278 = vpack.c.bf16 %v261, %v261
  %v279 = vpack.c.bf16 %v263, %v263
  %v281 = vsel %vm239, %v276, 0
  %vm283 = vcmask 1043456
  %v285 = vsel %vm283, %v35, 0
  %287 = vmatprep.subr.bf16.mxu0 0
  %288 = vmatpush1.bf16.msra.mxu0 %v285
  %289 = vmatprep.subr.bf16.mxu0 0
  %290 = vmatpush1.bf16.msra.mxu0 0
  %291 = vmatprep.subr.bf16.mxu0 0
  %292 = vmatpush1.bf16.msra.mxu0 0
  %293 = vmatprep.subr.bf16.mxu0 0
  %294 = vmatpush1.bf16.msra.mxu0 0
  %295 = vmatprep.subr.bf16.mxu0 0
  %296 = vmatpush1.bf16.msra.mxu0 0
  %297 = vmatprep.subr.bf16.mxu0 0
  %298 = vmatpush1.bf16.msra.mxu0 0
  %299 = vmatprep.subr.bf16.mxu0 0
  %300 = vmatpush1.bf16.msra.mxu0 0
  %301 = vmatprep.subr.bf16.mxu0 0
  %302 = vmatpush1.bf16.msra.mxu0 0
  %303 = vmatprep.subr.bf16.mxu0 0
  %304 = vmatpush1.bf16.msra.mxu0 0
  %305 = vmatprep.subr.bf16.mxu0 0
  %306 = vmatpush1.bf16.msra.mxu0 0
  %307 = vmatprep.subr.bf16.mxu0 0
  %308 = vmatpush1.bf16.msra.mxu0 0
  %309 = vmatprep.subr.bf16.mxu0 0
  %310 = vmatpush1.bf16.msra.mxu0 0
  %311 = vmatprep.subr.bf16.mxu0 0
  %312 = vmatpush1.bf16.msra.mxu0 0
  %313 = vmatprep.subr.bf16.mxu0 0
  %314 = vmatpush1.bf16.msra.mxu0 0
  %315 = vmatprep.subr.bf16.mxu0 0
  %316 = vmatpush1.bf16.msra.mxu0 0
  %317 = vmatprep.subr.bf16.mxu0 0
  %318 = vmatpush1.bf16.msra.mxu0 0
  %319 = vmatprep.mubr.bf16.mxu0 0
  %320 = vmatmul.mubr.bf16.gmra.mrb[0].mxu0 %v281
  %v321 = vpop.f32.mrb[0].mxu0
  %v322 = vadd.f32 0.0, %v321
  %v323 = vpop.f32.mrb[0].mxu0
  %v324 = vpop.f32.mrb[0].mxu0
  %v325 = vpop.f32.mrb[0].mxu0
  %326 = vdwg.mxu0
  %v328 = vsel %vm239, %v277, 0
  %v331 = vsel %vm283, %v36, 0
  %333 = vmatprep.subr.bf16.mxu0 0
  %334 = vmatpush1.bf16.msra.mxu0 %v331
  %335 = vmatprep.subr.bf16.mxu0 0
  %336 = vmatpush1.bf16.msra.mxu0 0
  %337 = vmatprep.subr.bf16.mxu0 0
  %338 = vmatpush1.bf16.msra.mxu0 0
  %339 = vmatprep.subr.bf16.mxu0 0
  %340 = vmatpush1.bf16.msra.mxu0 0
  %341 = vmatprep.subr.bf16.mxu0 0
  %342 = vmatpush1.bf16.msra.mxu0 0
  %343 = vmatprep.subr.bf16.mxu0 0
  %344 = vmatpush1.bf16.msra.mxu0 0
  %345 = vmatprep.subr.bf16.mxu0 0
  %346 = vmatpush1.bf16.msra.mxu0 0
  %347 = vmatprep.subr.bf16.mxu0 0
  %348 = vmatpush1.bf16.msra.mxu0 0
  %349 = vmatprep.subr.bf16.mxu0 0
  %350 = vmatpush1.bf16.msra.mxu0 0
  %351 = vmatprep.subr.bf16.mxu0 0
  %352 = vmatpush1.bf16.msra.mxu0 0
  %353 = vmatprep.subr.bf16.mxu0 0
  %354 = vmatpush1.bf16.msra.mxu0 0
  %355 = vmatprep.subr.bf16.mxu0 0
  %356 = vmatpush1.bf16.msra.mxu0 0
  %357 = vmatprep.subr.bf16.mxu0 0
  %358 = vmatpush1.bf16.msra.mxu0 0
  %359 = vmatprep.subr.bf16.mxu0 0
  %360 = vmatpush1.bf16.msra.mxu0 0
  %361 = vmatprep.subr.bf16.mxu0 0
  %362 = vmatpush1.bf16.msra.mxu0 0
  %363 = vmatprep.subr.bf16.mxu0 0
  %364 = vmatpush1.bf16.msra.mxu0 0
  %365 = vmatprep.mubr.bf16.mxu0 0
  %366 = vmatmul.mubr.bf16.gmra.mrb[0].mxu0 %v328
  %v367 = vpop.f32.mrb[0].mxu0
  %v368 = vadd.f32 0.0, %v367
  %v369 = vpop.f32.mrb[0].mxu0
  %v370 = vpop.f32.mrb[0].mxu0
  %v371 = vpop.f32.mrb[0].mxu0
  %372 = vdwg.mxu0
  %v374 = vsel %vm239, %v278, 0
  %v377 = vsel %vm283, %v37, 0
  %379 = vmatprep.subr.bf16.mxu0 0
  %380 = vmatpush1.bf16.msra.mxu0 %v377
  %381 = vmatprep.subr.bf16.mxu0 0
  %382 = vmatpush1.bf16.msra.mxu0 0
  %383 = vmatprep.subr.bf16.mxu0 0
  %384 = vmatpush1.bf16.msra.mxu0 0
  %385 = vmatprep.subr.bf16.mxu0 0
  %386 = vmatpush1.bf16.msra.mxu0 0
  %387 = vmatprep.subr.bf16.mxu0 0
  %388 = vmatpush1.bf16.msra.mxu0 0
  %389 = vmatprep.subr.bf16.mxu0 0
  %390 = vmatpush1.bf16.msra.mxu0 0
  %391 = vmatprep.subr.bf16.mxu0 0
  %392 = vmatpush1.bf16.msra.mxu0 0
  %393 = vmatprep.subr.bf16.mxu0 0
  %394 = vmatpush1.bf16.msra.mxu0 0
  %395 = vmatprep.subr.bf16.mxu0 0
  %396 = vmatpush1.bf16.msra.mxu0 0
  %397 = vmatprep.subr.bf16.mxu0 0
  %398 = vmatpush1.bf16.msra.mxu0 0
  %399 = vmatprep.subr.bf16.mxu0 0
  %400 = vmatpush1.bf16.msra.mxu0 0
  %401 = vmatprep.subr.bf16.mxu0 0
  %402 = vmatpush1.bf16.msra.mxu0 0
  %403 = vmatprep.subr.bf16.mxu0 0
  %404 = vmatpush1.bf16.msra.mxu0 0
  %405 = vmatprep.subr.bf16.mxu0 0
  %406 = vmatpush1.bf16.msra.mxu0 0
  %407 = vmatprep.subr.bf16.mxu0 0
  %408 = vmatpush1.bf16.msra.mxu0 0
  %409 = vmatprep.subr.bf16.mxu0 0
  %410 = vmatpush1.bf16.msra.mxu0 0
  %411 = vmatprep.mubr.bf16.mxu0 0
  %412 = vmatmul.mubr.bf16.gmra.mrb[0].mxu0 %v374
  %v413 = vpop.f32.mrb[0].mxu0
  %v414 = vadd.f32 0.0, %v413
  %v415 = vpop.f32.mrb[0].mxu0
  %v416 = vpop.f32.mrb[0].mxu0
  %v417 = vpop.f32.mrb[0].mxu0
  %418 = vdwg.mxu0
  %v420 = vsel %vm239, %v279, 0
  %v423 = vsel %vm283, %v38, 0
  %425 = vmatprep.subr.bf16.mxu0 0
  %426 = vmatpush1.bf16.msra.mxu0 %v423
  %427 = vmatprep.subr.bf16.mxu0 0
  %428 = vmatpush1.bf16.msra.mxu0 0
  %429 = vmatprep.subr.bf16.mxu0 0
  %430 = vmatpush1.bf16.msra.mxu0 0
  %431 = vmatprep.subr.bf16.mxu0 0
  %432 = vmatpush1.bf16.msra.mxu0 0
  %433 = vmatprep.subr.bf16.mxu0 0
  %434 = vmatpush1.bf16.msra.mxu0 0
  %435 = vmatprep.subr.bf16.mxu0 0
  %436 = vmatpush1.bf16.msra.mxu0 0
  %437 = vmatprep.subr.bf16.mxu0 0
  %438 = vmatpush1.bf16.msra.mxu0 0
  %439 = vmatprep.subr.bf16.mxu0 0
  %440 = vmatpush1.bf16.msra.mxu0 0
  %441 = vmatprep.subr.bf16.mxu0 0
  %442 = vmatpush1.bf16.msra.mxu0 0
  %443 = vmatprep.subr.bf16.mxu0 0
  %444 = vmatpush1.bf16.msra.mxu0 0
  %445 = vmatprep.subr.bf16.mxu0 0
  %446 = vmatpush1.bf16.msra.mxu0 0
  %447 = vmatprep.subr.bf16.mxu0 0
  %448 = vmatpush1.bf16.msra.mxu0 0
  %449 = vmatprep.subr.bf16.mxu0 0
  %450 = vmatpush1.bf16.msra.mxu0 0
  %451 = vmatprep.subr.bf16.mxu0 0
  %452 = vmatpush1.bf16.msra.mxu0 0
  %453 = vmatprep.subr.bf16.mxu0 0
  %454 = vmatpush1.bf16.msra.mxu0 0
  %455 = vmatprep.subr.bf16.mxu0 0
  %456 = vmatpush1.bf16.msra.mxu0 0
  %457 = vmatprep.mubr.bf16.mxu0 0
  %458 = vmatmul.mubr.bf16.gmra.mrb[0].mxu0 %v420
  %v459 = vpop.f32.mrb[0].mxu0
  %v460 = vadd.f32 0.0, %v459
  %v461 = vpop.f32.mrb[0].mxu0
  %v462 = vpop.f32.mrb[0].mxu0
  %v463 = vpop.f32.mrb[0].mxu0
  %464 = vdwg.mxu0
  %v465 = vrcp.pop %v266
  %v466 = vrcp.pop %v269
  %v467 = vrcp.pop %v272
  %v468 = vrcp.pop %v275
  %v469 = vmul.f32 %v322, %v465
  %v470 = vmul.f32 %v368, %v466
  %v471 = vmul.f32 %v414, %v467
  %v472 = vmul.f32 %v460, %v468
  %473 = vst.msk [vmem:[%s3] sm:$0xff] %vm39, %v469
  %474 = vst.msk [vmem:[%s3 + $0x8] sm:$0xff] %vm39, %v470
  %475 = vst.msk [vmem:[%s3 + $0x10] sm:$0xff] %vm39, %v471
  %476 = vst.msk [vmem:[%s3 + $0x18] sm:$0xff] %vm39, %v472
  // Predicated region
  $region14: #{_lambda_.40} parent=0 // pred_check
    _
  $region15: #{_lambda_.40} parent=0 // pred_check_branch
    %478 = sbr.rel (0) target = $region17
  $region16: #{_lambda_.40} parent=0 // pred_region
    _
  $region17: #{_lambda_.40} parent=0 // pred_fallthru
    _
  // Predicated region
  $region18: #{_lambda_.40} parent=0 // pred_check
    _
  $region19: #{_lambda_.40} parent=0 // pred_check_branch
    %480 = sbr.rel (0) target = $region21
  $region20: #{_lambda_.40} parent=0 // pred_region
    _
  $region21: #{_lambda_.40} parent=0 // pred_fallthru
    _

// kernel: _lambda_.41
$region0: #{_lambda_.41}
  #allocation0 [shape = 'u32[]', space=smem, size = 0x4, offset = 0x4, fixed_abs, tag = 'smem constant byte address 0x4 - core index']
  #allocation1 [shape = 'u32[144,128]{1,0:T(1,128)}', space=vmem, size = 0x12000, scoped, tag = 'internal scratch']
  #allocation2 [shape = 'f32[16,32]{1,0:T(8,128)}', space=vmem, size = 0x2000, scoped, tag = 'scratch operand']
  %s0 = inlined_call_operand.vmem [shape: f32[16,32], index: 0, kind: input, shape index: {}]
  %s1 = inlined_call_operand.vmem [shape: bf16[32,32], index: 1, kind: input, shape index: {}]
  %s2 = inlined_call_operand.vmem [shape: f32[1,32], index: 2, kind: input, shape index: {}]
  %s3 = inlined_call_operand.vmem [shape: f32[16,32], index: 3, kind: input, shape index: {}]
  %s4 = inlined_call_operand.vmem [shape: f32[16,32], index: 4, kind: output, shape index: {}]
  %s5 = sld [smem:[#allocation0]]
  $region34: #{_lambda_.41} parent=0
    _
  %s7 = ssub.s32 1, %s5
  %s8 = scalar_select 0, %s7, %s5
  // Predicated region
  $region2: #{_lambda_.41} parent=0 // pred_check
    _
  $region3: #{_lambda_.41} parent=0 // pred_check_branch
    %10 = sbr.rel (0) target = $region5
  $region4: #{_lambda_.41} parent=0 // pred_region
    _
  $region5: #{_lambda_.41} parent=0 // pred_fallthru
    _
  // Predicated region
  $region6: #{_lambda_.41} parent=0 // pred_check
    _
  $region7: #{_lambda_.41} parent=0 // pred_check_branch
    %12 = sbr.rel (0) target = $region9
  $region8: #{_lambda_.41} parent=0 // pred_region
    _
  $region9: #{_lambda_.41} parent=0 // pred_fallthru
    _
  // Predicated region
  $region10: #{_lambda_.41} parent=0 // pred_check
    _
  $region11: #{_lambda_.41} parent=0 // pred_check_branch
    %14 = sbr.rel (0) target = $region13
  $region12: #{_lambda_.41} parent=0 // pred_region
    _
  $region13: #{_lambda_.41} parent=0 // pred_fallthru
    _
  // Predicated region
  $region14: #{_lambda_.41} parent=0 // pred_check
    _
  $region15: #{_lambda_.41} parent=0 // pred_check_branch
    %16 = sbr.rel (0) target = $region17
  $region16: #{_lambda_.41} parent=0 // pred_region
    _
  $region17: #{_lambda_.41} parent=0 // pred_fallthru
    _
  %p18 = scmp.eq.s32.totalorder 0, 0
  // Predicated region
  $region18: #{_lambda_.41} parent=0 // pred_check
    %p19 = pneg %p18
  $region19: #{_lambda_.41} parent=0 // pred_check_branch
    %21 = sbr.rel (%p19) target = $region21
  $region20: #{_lambda_.41} parent=0 // pred_region
    %vm22 = vcmask 261120
    %23 = vst.msk [vmem:[#allocation2] sm:$0xff] %vm22, 0.0
    %24 = vst.msk [vmem:[#allocation2 + $0x8] sm:$0xff] %vm22, 0.0
  $region21: #{_lambda_.41} parent=0 // pred_fallthru
    _
  %v25 = vld [vmem:[#allocation2] sm:$0xff]
  %v26 = vld [vmem:[#allocation2 + $0x8] sm:$0xff]
  %v27 = vld [vmem:[%s0] sm:$0xff]
  %v28 = vld [vmem:[%s0 + $0x8] sm:$0xff]
  %v29 = vpack.c.bf16 %v28, %v27
  %v30 = vld [vmem:[%s1] sm:$0xf]
  %v31 = vld [vmem:[%s1 + $0x4] sm:$0xf]
  %v32 = vld [vmem:[%s1 + $0x8] sm:$0xf]
  %v33 = vld [vmem:[%s1 + $0xc] sm:$0xf]
  %v38 = vunpack.c.l.b16 %v30
  %v39 = vunpack.c.l.b16 %v31
  %v40 = vunpack.c.l.b16 %v32
  %v41 = vunpack.c.l.b16 %v33
  %v42 = vpack.c.b16 %v39, %v38
  %v43 = vpack.c.b16 %v41, %v40
  %vm46 = vcmask 261120
  %v48 = vsel %vm46, %v29, 0
  %50 = vmatprep.subr.bf16.mxu0 0
  %51 = vmatpush1.bf16.msra.mxu0 %v42
  %52 = vmatprep.subr.bf16.mxu0 0
  %53 = vmatpush1.bf16.msra.mxu0 %v43
  %54 = vmatprep.subr.bf16.mxu0 0
  %55 = vmatpush1.bf16.msra.mxu0 0
  %56 = vmatprep.subr.bf16.mxu0 0
  %57 = vmatpush1.bf16.msra.mxu0 0
  %58 = vmatprep.subr.bf16.mxu0 0
  %59 = vmatpush1.bf16.msra.mxu0 0
  %60 = vmatprep.subr.bf16.mxu0 0
  %61 = vmatpush1.bf16.msra.mxu0 0
  %62 = vmatprep.subr.bf16.mxu0 0
  %63 = vmatpush1.bf16.msra.mxu0 0
  %64 = vmatprep.subr.bf16.mxu0 0
  %65 = vmatpush1.bf16.msra.mxu0 0
  %66 = vmatprep.subr.bf16.mxu0 0
  %67 = vmatpush1.bf16.msra.mxu0 0
  %68 = vmatprep.subr.bf16.mxu0 0
  %69 = vmatpush1.bf16.msra.mxu0 0
  %70 = vmatprep.subr.bf16.mxu0 0
  %71 = vmatpush1.bf16.msra.mxu0 0
  %72 = vmatprep.subr.bf16.mxu0 0
  %73 = vmatpush1.bf16.msra.mxu0 0
  %74 = vmatprep.subr.bf16.mxu0 0
  %75 = vmatpush1.bf16.msra.mxu0 0
  %76 = vmatprep.subr.bf16.mxu0 0
  %77 = vmatpush1.bf16.msra.mxu0 0
  %78 = vmatprep.subr.bf16.mxu0 0
  %79 = vmatpush1.bf16.msra.mxu0 0
  %80 = vmatprep.subr.bf16.mxu0 0
  %81 = vmatpush1.bf16.msra.mxu0 0
  %82 = vmatprep.mubr.bf16.mxu0 0
  %83 = vmatmul.mubr.bf16.gmra.mrb[0].mxu0 %v48
  %v84 = vpop.f32.mrb[0].mxu0
  %v85 = vadd.f32 0.0, %v84
  %v86 = vpop.f32.mrb[0].mxu0
  %v87 = vpop.f32.mrb[0].mxu0
  %v88 = vadd.f32 0.0, %v87
  %v89 = vpop.f32.mrb[0].mxu0
  %90 = vdwg.mxu0
  %v91 = vadd.f32 %v25, %v85
  %v92 = vadd.f32 %v26, %v88
  %93 = vst.msk [vmem:[#allocation2] sm:$0xff] %vm46, %v91
  %94 = vst.msk [vmem:[#allocation2 + $0x8] sm:$0xff] %vm46, %v92
  // Predicated region
  $region22: #{_lambda_.41} parent=0 // pred_check
    %p95 = pneg %p18
  $region23: #{_lambda_.41} parent=0 // pred_check_branch
    %97 = sbr.rel (%p95) target = $region25
  $region24: #{_lambda_.41} parent=0 // pred_region
    %v98 = vld [vmem:[#allocation2] sm:$0xff]
    %v99 = vld [vmem:[#allocation2 + $0x8] sm:$0xff]
    %v100 = vld [vmem:[%s2] sm:$0x1]
    %v102 = vlaneseq
    %v103 = vshrl.u32 %v102, 7
    %v104 = vsub.s32 0, %v103
    %v105 = vrot.slane %v100, %v104
    %v107 = vadd.f32 %v98, %v105
    %v108 = vadd.f32 %v99, %v105
    %v109 = vld [vmem:[%s3] sm:$0xff]
    %v110 = vld [vmem:[%s3 + $0x8] sm:$0xff]
    %v111 = vadd.f32 %v107, %v109
    %v112 = vadd.f32 %v108, %v110
    %113 = vst.msk [vmem:[%s4] sm:$0xff] %vm46, %v111
    %114 = vst.msk [vmem:[%s4 + $0x8] sm:$0xff] %vm46, %v112
  $region25: #{_lambda_.41} parent=0 // pred_fallthru
    _
  // Predicated region
  $region26: #{_lambda_.41} parent=0 // pred_check
    _
  $region27: #{_lambda_.41} parent=0 // pred_check_branch
    %116 = sbr.rel (0) target = $region29
  $region28: #{_lambda_.41} parent=0 // pred_region
    _
  $region29: #{_lambda_.41} parent=0 // pred_fallthru
    _
  // Predicated region
  $region30: #{_lambda_.41} parent=0 // pred_check
    _
  $region31: #{_lambda_.41} parent=0 // pred_check_branch
    %118 = sbr.rel (0) target = $region33
  $region32: #{_lambda_.41} parent=0 // pred_region
    _
  $region33: #{_lambda_.41} parent=0 // pred_fallthru
    _

// kernel: _lambda_.42
$region0: #{_lambda_.42}
  #allocation0 [shape = 'u32[]', space=smem, size = 0x4, offset = 0x4, fixed_abs, tag = 'smem constant byte address 0x4 - core index']
  #allocation1 [shape = 'u32[144,128]{1,0:T(1,128)}', space=vmem, size = 0x12000, scoped, tag = 'internal scratch']
  %s0 = inlined_call_operand.vmem [shape: f32[16,32], index: 0, kind: input, shape index: {}]
  %s1 = inlined_call_operand.vmem [shape: f32[1,32], index: 1, kind: input, shape index: {}]
  %s2 = inlined_call_operand.vmem [shape: f32[1,32], index: 2, kind: input, shape index: {}]
  %s3 = inlined_call_operand.vmem [shape: bf16[32,32], index: 3, kind: input, shape index: {}]
  %s4 = inlined_call_operand.vmem [shape: f32[1,32], index: 4, kind: input, shape index: {}]
  %s5 = inlined_call_operand.vmem [shape: f32[16,32], index: 5, kind: output, shape index: {}]
  %s6 = sld [smem:[#allocation0]]
  $region30: #{_lambda_.42} parent=0
    _
  %s8 = ssub.s32 1, %s6
  %s9 = scalar_select 0, %s8, %s6
  // Predicated region
  $region2: #{_lambda_.42} parent=0 // pred_check
    _
  $region3: #{_lambda_.42} parent=0 // pred_check_branch
    %11 = sbr.rel (0) target = $region5
  $region4: #{_lambda_.42} parent=0 // pred_region
    _
  $region5: #{_lambda_.42} parent=0 // pred_fallthru
    _
  // Predicated region
  $region6: #{_lambda_.42} parent=0 // pred_check
    _
  $region7: #{_lambda_.42} parent=0 // pred_check_branch
    %13 = sbr.rel (0) target = $region9
  $region8: #{_lambda_.42} parent=0 // pred_region
    _
  $region9: #{_lambda_.42} parent=0 // pred_fallthru
    _
  // Predicated region
  $region10: #{_lambda_.42} parent=0 // pred_check
    _
  $region11: #{_lambda_.42} parent=0 // pred_check_branch
    %15 = sbr.rel (0) target = $region13
  $region12: #{_lambda_.42} parent=0 // pred_region
    _
  $region13: #{_lambda_.42} parent=0 // pred_fallthru
    _
  // Predicated region
  $region14: #{_lambda_.42} parent=0 // pred_check
    _
  $region15: #{_lambda_.42} parent=0 // pred_check_branch
    %17 = sbr.rel (0) target = $region17
  $region16: #{_lambda_.42} parent=0 // pred_region
    _
  $region17: #{_lambda_.42} parent=0 // pred_fallthru
    _
  // Predicated region
  $region18: #{_lambda_.42} parent=0 // pred_check
    _
  $region19: #{_lambda_.42} parent=0 // pred_check_branch
    %19 = sbr.rel (0) target = $region21
  $region20: #{_lambda_.42} parent=0 // pred_region
    _
  $region21: #{_lambda_.42} parent=0 // pred_fallthru
    _
  %v21 = vld [vmem:[%s0] sm:$0xff]
  %v22 = vld [vmem:[%s0 + $0x8] sm:$0xff]
  %vm23 = vcmask 261120
  %v24 = vsel %vm23, %v21, 0.0
  %25 = vadd.xlane.f32.xlu0 %v24
  %v26 = vpop.xlane.xlu0 %25
  %v27 = vsel %vm23, %v22, 0.0
  %28 = vadd.xlane.f32.xlu0 %v27
  %v29 = vpop.xlane.xlu0 %28
  %v30 = vrcp.pop 32.0
  %v31 = vmul.f32 %v26, %v30
  %v32 = vmul.f32 %v29, %v30
  %v33 = vsub.f32 %v21, %v31
  %v34 = vsub.f32 %v22, %v32
  %v35 = vmul.f32 %v33, %v33
  %v36 = vmul.f32 %v34, %v34
  %v37 = vsel %vm23, %v35, 0.0
  %38 = vadd.xlane.f32.xlu0 %v37
  %v39 = vpop.xlane.xlu0 %38
  %v40 = vsel %vm23, %v36, 0.0
  %41 = vadd.xlane.f32.xlu0 %v40
  %v42 = vpop.xlane.xlu0 %41
  %v43 = vmul.f32 %v39, %v30
  %v44 = vmul.f32 %v42, %v30
  %v45 = vadd.f32 %v43, 1e-05
  %v46 = vadd.f32 %v44, 1e-05
  %v47 = vrsqrt.pop %v45
  %v48 = vrsqrt.pop %v46
  %v49 = vmul.f32 %v33, %v47
  %v50 = vmul.f32 %v34, %v48
  %v51 = vld [vmem:[%s1] sm:$0x1]
  %v53 = vlaneseq
  %v54 = vshrl.u32 %v53, 7
  %v55 = vsub.s32 0, %v54
  %v56 = vrot.slane %v51, %v55
  %v58 = vmul.f32 %v49, %v56
  %v59 = vmul.f32 %v50, %v56
  %v60 = vld [vmem:[%s2] sm:$0x1]
  %v62 = vlaneseq
  %v63 = vshrl.u32 %v62, 7
  %v64 = vsub.s32 0, %v63
  %v65 = vrot.slane %v60, %v64
  %v67 = vadd.f32 %v58, %v65
  %v68 = vadd.f32 %v59, %v65
  %v69 = vpack.c.bf16 %v68, %v67
  %v70 = vld [vmem:[%s3] sm:$0xf]
  %v71 = vld [vmem:[%s3 + $0x4] sm:$0xf]
  %v72 = vld [vmem:[%s3 + $0x8] sm:$0xf]
  %v73 = vld [vmem:[%s3 + $0xc] sm:$0xf]
  %v74 = vld [vmem:[%s4] sm:$0x1]
  %v76 = vlaneseq
  %v77 = vshrl.u32 %v76, 7
  %v78 = vsub.s32 0, %v77
  %v79 = vrot.slane %v74, %v78
  %v85 = vunpack.c.l.b16 %v70
  %v86 = vunpack.c.l.b16 %v71
  %v87 = vunpack.c.l.b16 %v72
  %v88 = vunpack.c.l.b16 %v73
  %v89 = vpack.c.b16 %v86, %v85
  %v90 = vpack.c.b16 %v88, %v87
  %v94 = vsel %vm23, %v69, 0
  %96 = vmatprep.subr.bf16.mxu0 0
  %97 = vmatpush1.bf16.msra.mxu0 %v89
  %98 = vmatprep.subr.bf16.mxu0 0
  %99 = vmatpush1.bf16.msra.mxu0 %v90
  %100 = vmatprep.subr.bf16.mxu0 0
  %101 = vmatpush1.bf16.msra.mxu0 0
  %102 = vmatprep.subr.bf16.mxu0 0
  %103 = vmatpush1.bf16.msra.mxu0 0
  %104 = vmatprep.subr.bf16.mxu0 0
  %105 = vmatpush1.bf16.msra.mxu0 0
  %106 = vmatprep.subr.bf16.mxu0 0
  %107 = vmatpush1.bf16.msra.mxu0 0
  %108 = vmatprep.subr.bf16.mxu0 0
  %109 = vmatpush1.bf16.msra.mxu0 0
  %110 = vmatprep.subr.bf16.mxu0 0
  %111 = vmatpush1.bf16.msra.mxu0 0
  %112 = vmatprep.subr.bf16.mxu0 0
  %113 = vmatpush1.bf16.msra.mxu0 0
  %114 = vmatprep.subr.bf16.mxu0 0
  %115 = vmatpush1.bf16.msra.mxu0 0
  %116 = vmatprep.subr.bf16.mxu0 0
  %117 = vmatpush1.bf16.msra.mxu0 0
  %118 = vmatprep.subr.bf16.mxu0 0
  %119 = vmatpush1.bf16.msra.mxu0 0
  %120 = vmatprep.subr.bf16.mxu0 0
  %121 = vmatpush1.bf16.msra.mxu0 0
  %122 = vmatprep.subr.bf16.mxu0 0
  %123 = vmatpush1.bf16.msra.mxu0 0
  %124 = vmatprep.subr.bf16.mxu0 0
  %125 = vmatpush1.bf16.msra.mxu0 0
  %126 = vmatprep.subr.bf16.mxu0 0
  %127 = vmatpush1.bf16.msra.mxu0 0
  %128 = vmatprep.mubr.bf16.mxu0 0
  %129 = vmatmul.mubr.bf16.gmra.mrb[0].mxu0 %v94
  %v130 = vpop.f32.mrb[0].mxu0
  %v131 = vadd.f32 %v79, %v130
  %v132 = vpop.f32.mrb[0].mxu0
  %v133 = vpop.f32.mrb[0].mxu0
  %v134 = vadd.f32 %v79, %v133
  %v135 = vpop.f32.mrb[0].mxu0
  %136 = vdwg.mxu0
  %137 = vst.msk [vmem:[%s5] sm:$0xff] %vm23, %v131
  %138 = vst.msk [vmem:[%s5 + $0x8] sm:$0xff] %vm23, %v134
  // Predicated region
  $region22: #{_lambda_.42} parent=0 // pred_check
    _
  $region23: #{_lambda_.42} parent=0 // pred_check_branch
    %140 = sbr.rel (0) target = $region25
  $region24: #{_lambda_.42} parent=0 // pred_region
    _
  $region25: #{_lambda_.42} parent=0 // pred_fallthru
    _
  // Predicated region
  $region26: #{_lambda_.42} parent=0 // pred_check
    _
  $region27: #{_lambda_.42} parent=0 // pred_check_branch
    %142 = sbr.rel (0) target = $region29
  $region28: #{_lambda_.42} parent=0 // pred_region
    _
  $region29: #{_lambda_.42} parent=0 // pred_fallthru
    _

// kernel: _lambda_.28
$region0: #{_lambda_.28}
  #allocation0 [shape = 'u32[]', space=smem, size = 0x4, offset = 0x4, fixed_abs, tag = 'smem constant byte address 0x4 - core index']
  #allocation1 [shape = 'u32[144,128]{1,0:T(1,128)}', space=vmem, size = 0x12000, scoped, tag = 'internal scratch']
  #allocation2 [shape = 'f32[12,32]{1,0:T(8,128)}', space=vmem, size = 0x2000, scoped, tag = 'scratch operand']
  %s0 = inlined_call_operand.vmem [shape: f32[12,16], index: 0, kind: input, shape index: {}]
  %s1 = inlined_call_operand.vmem [shape: bf16[16,32], index: 1, kind: input, shape index: {}]
  %s2 = inlined_call_operand.vmem [shape: f32[1,32], index: 2, kind: input, shape index: {}]
  %s3 = inlined_call_operand.vmem [shape: f32[12,32], index: 3, kind: output, shape index: {}]
  %s4 = sld [smem:[#allocation0]]
  $region30: #{_lambda_.28} parent=0
    _
  %s6 = ssub.s32 1, %s4
  %s7 = scalar_select 0, %s6, %s4
  // Predicated region
  $region2: #{_lambda_.28} parent=0 // pred_check
    _
  $region3: #{_lambda_.28} parent=0 // pred_check_branch
    %9 = sbr.rel (0) target = $region5
  $region4: #{_lambda_.28} parent=0 // pred_region
    _
  $region5: #{_lambda_.28} parent=0 // pred_fallthru
    _
  // Predicated region
  $region6: #{_lambda_.28} parent=0 // pred_check
    _
  $region7: #{_lambda_.28} parent=0 // pred_check_branch
    %11 = sbr.rel (0) target = $region9
  $region8: #{_lambda_.28} parent=0 // pred_region
    _
  $region9: #{_lambda_.28} parent=0 // pred_fallthru
    _
  // Predicated region
  $region10: #{_lambda_.28} parent=0 // pred_check
    _
  $region11: #{_lambda_.28} parent=0 // pred_check_branch
    %13 = sbr.rel (0) target = $region13
  $region12: #{_lambda_.28} parent=0 // pred_region
    _
  $region13: #{_lambda_.28} parent=0 // pred_fallthru
    _
  %p15 = scmp.eq.s32.totalorder 0, 0
  // Predicated region
  $region14: #{_lambda_.28} parent=0 // pred_check
    %p16 = pneg %p15
  $region15: #{_lambda_.28} parent=0 // pred_check_branch
    %18 = sbr.rel (%p16) target = $region17
  $region16: #{_lambda_.28} parent=0 // pred_region
    %vm19 = vcmask 261120
    %20 = vst.msk [vmem:[#allocation2] sm:$0xff] %vm19, 0.0
    %vm21 = vcmask 257024
    %22 = vst.msk [vmem:[#allocation2 + $0x8] sm:$0xf] %vm21, 0.0
  $region17: #{_lambda_.28} parent=0 // pred_fallthru
    _
  %v23 = vld [vmem:[#allocation2] sm:$0xff]
  %v24 = vld [vmem:[#allocation2 + $0x8] sm:$0xf]
  %v25 = vld [vmem:[%s0] sm:$0xff]
  %v26 = vld [vmem:[%s0 + $0x8] sm:$0xf]
  %v27 = vpack.c.bf16 %v26, %v25
  %v28 = vld [vmem:[%s1] sm:$0xf]
  %v29 = vld [vmem:[%s1 + $0x4] sm:$0xf]
  %v32 = vunpack.c.l.b16 %v28
  %v33 = vunpack.c.l.b16 %v29
  %v34 = vpack.c.b16 %v33, %v32
  %vm36 = vcmask 130048
  %v38 = vsel %vm36, %v27, 0
  %40 = vmatprep.subr.bf16.mxu0 0
  %41 = vmatpush1.bf16.msra.mxu0 %v34
  %42 = vmatprep.subr.bf16.mxu0 0
  %43 = vmatpush1.bf16.msra.mxu0 0
  %44 = vmatprep.subr.bf16.mxu0 0
  %45 = vmatpush1.bf16.msra.mxu0 0
  %46 = vmatprep.subr.bf16.mxu0 0
  %47 = vmatpush1.bf16.msra.mxu0 0
  %48 = vmatprep.subr.bf16.mxu0 0
  %49 = vmatpush1.bf16.msra.mxu0 0
  %50 = vmatprep.subr.bf16.mxu0 0
  %51 = vmatpush1.bf16.msra.mxu0 0
  %52 = vmatprep.subr.bf16.mxu0 0
  %53 = vmatpush1.bf16.msra.mxu0 0
  %54 = vmatprep.subr.bf16.mxu0 0
  %55 = vmatpush1.bf16.msra.mxu0 0
  %56 = vmatprep.subr.bf16.mxu0 0
  %57 = vmatpush1.bf16.msra.mxu0 0
  %58 = vmatprep.subr.bf16.mxu0 0
  %59 = vmatpush1.bf16.msra.mxu0 0
  %60 = vmatprep.subr.bf16.mxu0 0
  %61 = vmatpush1.bf16.msra.mxu0 0
  %62 = vmatprep.subr.bf16.mxu0 0
  %63 = vmatpush1.bf16.msra.mxu0 0
  %64 = vmatprep.subr.bf16.mxu0 0
  %65 = vmatpush1.bf16.msra.mxu0 0
  %66 = vmatprep.subr.bf16.mxu0 0
  %67 = vmatpush1.bf16.msra.mxu0 0
  %68 = vmatprep.subr.bf16.mxu0 0
  %69 = vmatpush1.bf16.msra.mxu0 0
  %70 = vmatprep.subr.bf16.mxu0 0
  %71 = vmatpush1.bf16.msra.mxu0 0
  %72 = vmatprep.mubr.bf16.mxu0 0
  %73 = vmatmul.mubr.bf16.gmra.mrb[0].mxu0 %v38
  %v74 = vpop.f32.mrb[0].mxu0
  %v75 = vadd.f32 0.0, %v74
  %v76 = vpop.f32.mrb[0].mxu0
  %v77 = vpop.f32.mrb[0].mxu0
  %v78 = vadd.f32 0.0, %v77
  %v79 = vpop.f32.mrb[0].mxu0
  %80 = vdwg.mxu0
  %v81 = vadd.f32 %v23, %v75
  %v82 = vadd.f32 %v24, %v78
  %vm83 = vcmask 261120
  %84 = vst.msk [vmem:[#allocation2] sm:$0xff] %vm83, %v81
  %vm85 = vcmask 257024
  %86 = vst.msk [vmem:[#allocation2 + $0x8] sm:$0xf] %vm85, %v82
  // Predicated region
  $region18: #{_lambda_.28} parent=0 // pred_check
    %p87 = pneg %p15
  $region19: #{_lambda_.28} parent=0 // pred_check_branch
    %89 = sbr.rel (%p87) target = $region21
  $region20: #{_lambda_.28} parent=0 // pred_region
    %v90 = vld [vmem:[#allocation2] sm:$0xff]
    %v91 = vld [vmem:[#allocation2 + $0x8] sm:$0xf]
    %v92 = vld [vmem:[%s2] sm:$0x1]
    %v94 = vlaneseq
    %v95 = vshrl.u32 %v94, 7
    %v96 = vsub.s32 0, %v95
    %v97 = vrot.slane %v92, %v96
    %v99 = vadd.f32 %v90, %v97
    %v100 = vadd.f32 %v91, %v97
    %101 = vst.msk [vmem:[%s3] sm:$0xff] %vm83, %v99
    %102 = vst.msk [vmem:[%s3 + $0x8] sm:$0xf] %vm85, %v100
  $region21: #{_lambda_.28} parent=0 // pred_fallthru
    _
  // Predicated region
  $region22: #{_lambda_.28} parent=0 // pred_check
    _
  $region23: #{_lambda_.28} parent=0 // pred_check_branch
    %104 = sbr.rel (0) target = $region25
  $region24: #{_lambda_.28} parent=0 // pred_region
    _
  $region25: #{_lambda_.28} parent=0 // pred_fallthru
    _
  // Predicated region
  $region26: #{_lambda_.28} parent=0 // pred_check
    _
  $region27: #{_lambda_.28} parent=0 // pred_check_branch
    %106 = sbr.rel (0) target = $region29
  $region28: #{_lambda_.28} parent=0 // pred_region
    _
  $region29: #{_lambda_.28} parent=0 // pred_fallthru
    _

// kernel: _lambda_.30
$region0: #{_lambda_.30}
  #allocation0 [shape = 'u32[]', space=smem, size = 0x4, offset = 0x4, fixed_abs, tag = 'smem constant byte address 0x4 - core index']
  #allocation1 [shape = 'u32[144,128]{1,0:T(1,128)}', space=vmem, size = 0x12000, scoped, tag = 'internal scratch']
  %s0 = inlined_call_operand.vmem [shape: f32[12,32], index: 0, kind: input, shape index: {}]
  %s1 = inlined_call_operand.vmem [shape: f32[1,32], index: 1, kind: input, shape index: {}]
  %s2 = inlined_call_operand.vmem [shape: f32[1,32], index: 2, kind: input, shape index: {}]
  %s3 = inlined_call_operand.vmem [shape: bf16[32,96], index: 3, kind: input, shape index: {}]
  %s4 = inlined_call_operand.vmem [shape: f32[1,96], index: 4, kind: input, shape index: {}]
  %s5 = inlined_call_operand.vmem [shape: f32[12,96], index: 5, kind: output, shape index: {}]
  %s6 = sld [smem:[#allocation0]]
  $region30: #{_lambda_.30} parent=0
    _
  %s8 = ssub.s32 1, %s6
  %s9 = scalar_select 0, %s8, %s6
  // Predicated region
  $region2: #{_lambda_.30} parent=0 // pred_check
    _
  $region3: #{_lambda_.30} parent=0 // pred_check_branch
    %11 = sbr.rel (0) target = $region5
  $region4: #{_lambda_.30} parent=0 // pred_region
    _
  $region5: #{_lambda_.30} parent=0 // pred_fallthru
    _
  // Predicated region
  $region6: #{_lambda_.30} parent=0 // pred_check
    _
  $region7: #{_lambda_.30} parent=0 // pred_check_branch
    %13 = sbr.rel (0) target = $region9
  $region8: #{_lambda_.30} parent=0 // pred_region
    _
  $region9: #{_lambda_.30} parent=0 // pred_fallthru
    _
  // Predicated region
  $region10: #{_lambda_.30} parent=0 // pred_check
    _
  $region11: #{_lambda_.30} parent=0 // pred_check_branch
    %15 = sbr.rel (0) target = $region13
  $region12: #{_lambda_.30} parent=0 // pred_region
    _
  $region13: #{_lambda_.30} parent=0 // pred_fallthru
    _
  // Predicated region
  $region14: #{_lambda_.30} parent=0 // pred_check
    _
  $region15: #{_lambda_.30} parent=0 // pred_check_branch
    %17 = sbr.rel (0) target = $region17
  $region16: #{_lambda_.30} parent=0 // pred_region
    _
  $region17: #{_lambda_.30} parent=0 // pred_fallthru
    _
  // Predicated region
  $region18: #{_lambda_.30} parent=0 // pred_check
    _
  $region19: #{_lambda_.30} parent=0 // pred_check_branch
    %19 = sbr.rel (0) target = $region21
  $region20: #{_lambda_.30} parent=0 // pred_region
    _
  $region21: #{_lambda_.30} parent=0 // pred_fallthru
    _
  %v21 = vld [vmem:[%s0] sm:$0xff]
  %v22 = vld [vmem:[%s0 + $0x8] sm:$0xf]
  %vm23 = vcmask 261120
  %v24 = vsel %vm23, %v21, 0.0
  %25 = vadd.xlane.f32.xlu0 %v24
  %v26 = vpop.xlane.xlu0 %25
  %vm27 = vcmask 257024
  %v28 = vsel %vm27, %v22, 0.0
  %29 = vadd.xlane.f32.xlu0 %v28
  %v30 = vpop.xlane.xlu0 %29
  %v31 = vrcp.pop 32.0
  %v32 = vmul.f32 %v26, %v31
  %v33 = vmul.f32 %v30, %v31
  %v34 = vsub.f32 %v21, %v32
  %v35 = vsub.f32 %v22, %v33
  %v36 = vmul.f32 %v34, %v34
  %v37 = vmul.f32 %v35, %v35
  %v38 = vsel %vm23, %v36, 0.0
  %39 = vadd.xlane.f32.xlu0 %v38
  %v40 = vpop.xlane.xlu0 %39
  %v41 = vsel %vm27, %v37, 0.0
  %42 = vadd.xlane.f32.xlu0 %v41
  %v43 = vpop.xlane.xlu0 %42
  %v44 = vmul.f32 %v40, %v31
  %v45 = vmul.f32 %v43, %v31
  %v46 = vadd.f32 %v44, 1e-05
  %v47 = vadd.f32 %v45, 1e-05
  %v48 = vrsqrt.pop %v46
  %v49 = vrsqrt.pop %v47
  %v50 = vmul.f32 %v34, %v48
  %v51 = vmul.f32 %v35, %v49
  %v52 = vld [vmem:[%s1] sm:$0x1]
  %v54 = vlaneseq
  %v55 = vshrl.u32 %v54, 7
  %v56 = vsub.s32 0, %v55
  %v57 = vrot.slane %v52, %v56
  %v59 = vmul.f32 %v50, %v57
  %v60 = vmul.f32 %v51, %v57
  %v61 = vld [vmem:[%s2] sm:$0x1]
  %v63 = vlaneseq
  %v64 = vshrl.u32 %v63, 7
  %v65 = vsub.s32 0, %v64
  %v66 = vrot.slane %v61, %v65
  %v68 = vadd.f32 %v59, %v66
  %v69 = vadd.f32 %v60, %v66
  %v70 = vpack.c.bf16 %v69, %v68
  %v71 = vld [vmem:[%s3] sm:$0xf]
  %v72 = vld [vmem:[%s3 + $0x4] sm:$0xf]
  %v73 = vld [vmem:[%s3 + $0x8] sm:$0xf]
  %v74 = vld [vmem:[%s3 + $0xc] sm:$0xf]
  %v75 = vld [vmem:[%s4] sm:$0x1]
  %v77 = vlaneseq
  %v78 = vshrl.u32 %v77, 7
  %v79 = vsub.s32 0, %v78
  %v80 = vrot.slane %v75, %v79
  %v86 = vunpack.c.l.b16 %v71
  %v87 = vunpack.c.l.b16 %v72
  %v88 = vunpack.c.l.b16 %v73
  %v89 = vunpack.c.l.b16 %v74
  %v90 = vpack.c.b16 %v87, %v86
  %v91 = vpack.c.b16 %v89, %v88
  %v95 = vsel %vm23, %v70, 0
  %97 = vmatprep.subr.bf16.mxu0 0
  %98 = vmatpush1.bf16.msra.mxu0 %v90
  %99 = vmatprep.subr.bf16.mxu0 0
  %100 = vmatpush1.bf16.msra.mxu0 %v91
  %101 = vmatprep.subr.bf16.mxu0 0
  %102 = vmatpush1.bf16.msra.mxu0 0
  %103 = vmatprep.subr.bf16.mxu0 0
  %104 = vmatpush1.bf16.msra.mxu0 0
  %105 = vmatprep.subr.bf16.mxu0 0
  %106 = vmatpush1.bf16.msra.mxu0 0
  %107 = vmatprep.subr.bf16.mxu0 0
  %108 = vmatpush1.bf16.msra.mxu0 0
  %109 = vmatprep.subr.bf16.mxu0 0
  %110 = vmatpush1.bf16.msra.mxu0 0
  %111 = vmatprep.subr.bf16.mxu0 0
  %112 = vmatpush1.bf16.msra.mxu0 0
  %113 = vmatprep.subr.bf16.mxu0 0
  %114 = vmatpush1.bf16.msra.mxu0 0
  %115 = vmatprep.subr.bf16.mxu0 0
  %116 = vmatpush1.bf16.msra.mxu0 0
  %117 = vmatprep.subr.bf16.mxu0 0
  %118 = vmatpush1.bf16.msra.mxu0 0
  %119 = vmatprep.subr.bf16.mxu0 0
  %120 = vmatpush1.bf16.msra.mxu0 0
  %121 = vmatprep.subr.bf16.mxu0 0
  %122 = vmatpush1.bf16.msra.mxu0 0
  %123 = vmatprep.subr.bf16.mxu0 0
  %124 = vmatpush1.bf16.msra.mxu0 0
  %125 = vmatprep.subr.bf16.mxu0 0
  %126 = vmatpush1.bf16.msra.mxu0 0
  %127 = vmatprep.subr.bf16.mxu0 0
  %128 = vmatpush1.bf16.msra.mxu0 0
  %129 = vmatprep.mubr.bf16.mxu0 0
  %130 = vmatmul.mubr.bf16.gmra.mrb[0].mxu0 %v95
  %v131 = vpop.f32.mrb[0].mxu0
  %v132 = vadd.f32 %v80, %v131
  %v133 = vpop.f32.mrb[0].mxu0
  %v134 = vpop.f32.mrb[0].mxu0
  %v135 = vadd.f32 %v80, %v134
  %v136 = vpop.f32.mrb[0].mxu0
  %137 = vdwg.mxu0
  %vm138 = vcmask 785408
  %139 = vst.msk [vmem:[%s5] sm:$0xff] %vm138, %v132
  %vm140 = vcmask 781312
  %141 = vst.msk [vmem:[%s5 + $0x8] sm:$0xf] %vm140, %v135
  // Predicated region
  $region22: #{_lambda_.30} parent=0 // pred_check
    _
  $region23: #{_lambda_.30} parent=0 // pred_check_branch
    %143 = sbr.rel (0) target = $region25
  $region24: #{_lambda_.30} parent=0 // pred_region
    _
  $region25: #{_lambda_.30} parent=0 // pred_fallthru
    _
  // Predicated region
  $region26: #{_lambda_.30} parent=0 // pred_check
    _
  $region27: #{_lambda_.30} parent=0 // pred_check_branch
    %145 = sbr.rel (0) target = $region29
  $region28: #{_lambda_.30} parent=0 // pred_region
    _
  $region29: #{_lambda_.30} parent=0 // pred_fallthru
    _

// kernel: _lambda_.32
$region0: #{_lambda_.32}
  #allocation0 [shape = 'u32[]', space=smem, size = 0x4, offset = 0x4, fixed_abs, tag = 'smem constant byte address 0x4 - core index']
  #allocation1 [shape = 'u32[144,128]{1,0:T(1,128)}', space=vmem, size = 0x12000, scoped, tag = 'internal scratch']
  #allocation2 [shape = 'f32[12,32]{1,0:T(8,128)}', space=vmem, size = 0x2000, scoped, tag = 'scratch operand']
  %s0 = inlined_call_operand.vmem [shape: f32[12,32], index: 0, kind: input, shape index: {}]
  %s1 = inlined_call_operand.vmem [shape: bf16[32,32], index: 1, kind: input, shape index: {}]
  %s2 = inlined_call_operand.vmem [shape: f32[1,32], index: 2, kind: input, shape index: {}]
  %s3 = inlined_call_operand.vmem [shape: f32[12,32], index: 3, kind: input, shape index: {}]
  %s4 = inlined_call_operand.vmem [shape: f32[12,32], index: 4, kind: output, shape index: {}]
  %s5 = sld [smem:[#allocation0]]
  $region34: #{_lambda_.32} parent=0
    _
  %s7 = ssub.s32 1, %s5
  %s8 = scalar_select 0, %s7, %s5
  // Predicated region
  $region2: #{_lambda_.32} parent=0 // pred_check
    _
  $region3: #{_lambda_.32} parent=0 // pred_check_branch
    %10 = sbr.rel (0) target = $region5
  $region4: #{_lambda_.32} parent=0 // pred_region
    _
  $region5: #{_lambda_.32} parent=0 // pred_fallthru
    _
  // Predicated region
  $region6: #{_lambda_.32} parent=0 // pred_check
    _
  $region7: #{_lambda_.32} parent=0 // pred_check_branch
    %12 = sbr.rel (0) target = $region9
  $region8: #{_lambda_.32} parent=0 // pred_region
    _
  $region9: #{_lambda_.32} parent=0 // pred_fallthru
    _
  // Predicated region
  $region10: #{_lambda_.32} parent=0 // pred_check
    _
  $region11: #{_lambda_.32} parent=0 // pred_check_branch
    %14 = sbr.rel (0) target = $region13
  $region12: #{_lambda_.32} parent=0 // pred_region
    _
  $region13: #{_lambda_.32} parent=0 // pred_fallthru
    _
  // Predicated region
  $region14: #{_lambda_.32} parent=0 // pred_check
    _
  $region15: #{_lambda_.32} parent=0 // pred_check_branch
    %16 = sbr.rel (0) target = $region17
  $region16: #{_lambda_.32} parent=0 // pred_region
    _
  $region17: #{_lambda_.32} parent=0 // pred_fallthru
    _
  %p18 = scmp.eq.s32.totalorder 0, 0
  // Predicated region
  $region18: #{_lambda_.32} parent=0 // pred_check
    %p19 = pneg %p18
  $region19: #{_lambda_.32} parent=0 // pred_check_branch
    %21 = sbr.rel (%p19) target = $region21
  $region20: #{_lambda_.32} parent=0 // pred_region
    %vm22 = vcmask 261120
    %23 = vst.msk [vmem:[#allocation2] sm:$0xff] %vm22, 0.0
    %vm24 = vcmask 257024
    %25 = vst.msk [vmem:[#allocation2 + $0x8] sm:$0xf] %vm24, 0.0
  $region21: #{_lambda_.32} parent=0 // pred_fallthru
    _
  %v26 = vld [vmem:[#allocation2] sm:$0xff]
  %v27 = vld [vmem:[#allocation2 + $0x8] sm:$0xf]
  %v28 = vld [vmem:[%s0] sm:$0xff]
  %v29 = vld [vmem:[%s0 + $0x8] sm:$0xf]
  %v30 = vpack.c.bf16 %v29, %v28
  %v31 = vld [vmem:[%s1] sm:$0xf]
  %v32 = vld [vmem:[%s1 + $0x4] sm:$0xf]
  %v33 = vld [vmem:[%s1 + $0x8] sm:$0xf]
  %v34 = vld [vmem:[%s1 + $0xc] sm:$0xf]
  %v39 = vunpack.c.l.b16 %v31
  %v40 = vunpack.c.l.b16 %v32
  %v41 = vunpack.c.l.b16 %v33
  %v42 = vunpack.c.l.b16 %v34
  %v43 = vpack.c.b16 %v40, %v39
  %v44 = vpack.c.b16 %v42, %v41
  %vm47 = vcmask 261120
  %v49 = vsel %vm47, %v30, 0
  %51 = vmatprep.subr.bf16.mxu0 0
  %52 = vmatpush1.bf16.msra.mxu0 %v43
  %53 = vmatprep.subr.bf16.mxu0 0
  %54 = vmatpush1.bf16.msra.mxu0 %v44
  %55 = vmatprep.subr.bf16.mxu0 0
  %56 = vmatpush1.bf16.msra.mxu0 0
  %57 = vmatprep.subr.bf16.mxu0 0
  %58 = vmatpush1.bf16.msra.mxu0 0
  %59 = vmatprep.subr.bf16.mxu0 0
  %60 = vmatpush1.bf16.msra.mxu0 0
  %61 = vmatprep.subr.bf16.mxu0 0
  %62 = vmatpush1.bf16.msra.mxu0 0
  %63 = vmatprep.subr.bf16.mxu0 0
  %64 = vmatpush1.bf16.msra.mxu0 0
  %65 = vmatprep.subr.bf16.mxu0 0
  %66 = vmatpush1.bf16.msra.mxu0 0
  %67 = vmatprep.subr.bf16.mxu0 0
  %68 = vmatpush1.bf16.msra.mxu0 0
  %69 = vmatprep.subr.bf16.mxu0 0
  %70 = vmatpush1.bf16.msra.mxu0 0
  %71 = vmatprep.subr.bf16.mxu0 0
  %72 = vmatpush1.bf16.msra.mxu0 0
  %73 = vmatprep.subr.bf16.mxu0 0
  %74 = vmatpush1.bf16.msra.mxu0 0
  %75 = vmatprep.subr.bf16.mxu0 0
  %76 = vmatpush1.bf16.msra.mxu0 0
  %77 = vmatprep.subr.bf16.mxu0 0
  %78 = vmatpush1.bf16.msra.mxu0 0
  %79 = vmatprep.subr.bf16.mxu0 0
  %80 = vmatpush1.bf16.msra.mxu0 0
  %81 = vmatprep.subr.bf16.mxu0 0
  %82 = vmatpush1.bf16.msra.mxu0 0
  %83 = vmatprep.mubr.bf16.mxu0 0
  %84 = vmatmul.mubr.bf16.gmra.mrb[0].mxu0 %v49
  %v85 = vpop.f32.mrb[0].mxu0
  %v86 = vadd.f32 0.0, %v85
  %v87 = vpop.f32.mrb[0].mxu0
  %v88 = vpop.f32.mrb[0].mxu0
  %v89 = vadd.f32 0.0, %v88
  %v90 = vpop.f32.mrb[0].mxu0
  %91 = vdwg.mxu0
  %v92 = vadd.f32 %v26, %v86
  %v93 = vadd.f32 %v27, %v89
  %94 = vst.msk [vmem:[#allocation2] sm:$0xff] %vm47, %v92
  %vm95 = vcmask 257024
  %96 = vst.msk [vmem:[#allocation2 + $0x8] sm:$0xf] %vm95, %v93
  // Predicated region
  $region22: #{_lambda_.32} parent=0 // pred_check
    %p97 = pneg %p18
  $region23: #{_lambda_.32} parent=0 // pred_check_branch
    %99 = sbr.rel (%p97) target = $region25
  $region24: #{_lambda_.32} parent=0 // pred_region
    %v100 = vld [vmem:[#allocation2] sm:$0xff]
    %v101 = vld [vmem:[#allocation2 + $0x8] sm:$0xf]
    %v102 = vld [vmem:[%s2] sm:$0x1]
    %v104 = vlaneseq
    %v105 = vshrl.u32 %v104, 7
    %v106 = vsub.s32 0, %v105
    %v107 = vrot.slane %v102, %v106
    %v109 = vadd.f32 %v100, %v107
    %v110 = vadd.f32 %v101, %v107
    %v111 = vld [vmem:[%s3] sm:$0xff]
    %v112 = vld [vmem:[%s3 + $0x8] sm:$0xf]
    %v113 = vadd.f32 %v109, %v111
    %v114 = vadd.f32 %v110, %v112
    %115 = vst.msk [vmem:[%s4] sm:$0xff] %vm47, %v113
    %116 = vst.msk [vmem:[%s4 + $0x8] sm:$0xf] %vm95, %v114
  $region25: #{_lambda_.32} parent=0 // pred_fallthru
    _
  // Predicated region
  $region26: #{_lambda_.32} parent=0 // pred_check
    _
  $region27: #{_lambda_.32} parent=0 // pred_check_branch
    %118 = sbr.rel (0) target = $region29
  $region28: #{_lambda_.32} parent=0 // pred_region
    _
  $region29: #{_lambda_.32} parent=0 // pred_fallthru
    _
  // Predicated region
  $region30: #{_lambda_.32} parent=0 // pred_check
    _
  $region31: #{_lambda_.32} parent=0 // pred_check_branch
    %120 = sbr.rel (0) target = $region33
  $region32: #{_lambda_.32} parent=0 // pred_region
    _
  $region33: #{_lambda_.32} parent=0 // pred_fallthru
    _

// kernel: _lambda_.31
$region0: #{_lambda_.31}
  #allocation0 [shape = 'u32[]', space=smem, size = 0x4, offset = 0x4, fixed_abs, tag = 'smem constant byte address 0x4 - core index']
  #allocation1 [shape = 'u32[144,128]{1,0:T(1,128)}', space=vmem, size = 0x12000, scoped, tag = 'internal scratch']
  %s0 = inlined_call_operand.vmem [shape: f32[4,6,16], index: 0, kind: input, shape index: {}]
  %s1 = inlined_call_operand.vmem [shape: f32[4,6,16], index: 1, kind: input, shape index: {}]
  %s2 = inlined_call_operand.vmem [shape: f32[4,6,16], index: 2, kind: input, shape index: {}]
  %s3 = inlined_call_operand.vmem [shape: f32[4,6,16], index: 3, kind: output, shape index: {}]
  %s4 = sld [smem:[#allocation0]]
  $region22: #{_lambda_.31} parent=0
    _
  %s6 = ssub.s32 1, %s4
  %s7 = scalar_select 0, %s6, %s4
  // Predicated region
  $region2: #{_lambda_.31} parent=0 // pred_check
    _
  $region3: #{_lambda_.31} parent=0 // pred_check_branch
    %9 = sbr.rel (0) target = $region5
  $region4: #{_lambda_.31} parent=0 // pred_region
    _
  $region5: #{_lambda_.31} parent=0 // pred_fallthru
    _
  // Predicated region
  $region6: #{_lambda_.31} parent=0 // pred_check
    _
  $region7: #{_lambda_.31} parent=0 // pred_check_branch
    %11 = sbr.rel (0) target = $region9
  $region8: #{_lambda_.31} parent=0 // pred_region
    _
  $region9: #{_lambda_.31} parent=0 // pred_fallthru
    _
  // Predicated region
  $region10: #{_lambda_.31} parent=0 // pred_check
    _
  $region11: #{_lambda_.31} parent=0 // pred_check_branch
    %13 = sbr.rel (0) target = $region13
  $region12: #{_lambda_.31} parent=0 // pred_region
    _
  $region13: #{_lambda_.31} parent=0 // pred_fallthru
    _
  %v15 = vld [vmem:[%s0] sm:$0x3f]
  %v16 = vld [vmem:[%s0 + $0x8] sm:$0x3f]
  %v17 = vld [vmem:[%s0 + $0x10] sm:$0x3f]
  %v18 = vld [vmem:[%s0 + $0x18] sm:$0x3f]
  %v19 = vpack.c.bf16 %v15, %v15
  %v20 = vpack.c.bf16 %v16, %v16
  %v21 = vpack.c.bf16 %v17, %v17
  %v22 = vpack.c.bf16 %v18, %v18
  %v23 = vld [vmem:[%s1] sm:$0x3f]
  %v24 = vld [vmem:[%s1 + $0x8] sm:$0x3f]
  %v25 = vld [vmem:[%s1 + $0x10] sm:$0x3f]
  %v26 = vld [vmem:[%s1 + $0x18] sm:$0x3f]
  %v27 = vpack.c.bf16 %v23, %v23
  %v28 = vpack.c.bf16 %v24, %v24
  %v29 = vpack.c.bf16 %v25, %v25
  %v30 = vpack.c.bf16 %v26, %v26
  %v31 = vld [vmem:[%s2] sm:$0x3f]
  %v32 = vld [vmem:[%s2 + $0x8] sm:$0x3f]
  %v33 = vld [vmem:[%s2 + $0x10] sm:$0x3f]
  %v34 = vld [vmem:[%s2 + $0x18] sm:$0x3f]
  %v35 = vpack.c.bf16 %v31, %v31
  %v36 = vpack.c.bf16 %v32, %v32
  %v37 = vpack.c.bf16 %v33, %v33
  %v38 = vpack.c.bf16 %v34, %v34
  %vm39 = vcmask 130048
  %v41 = vsel %vm39, %v19, 0
  %v44 = vsel %vm39, %v27, 0
  %46 = vmatprep.subr.bf16.mxu0 0
  %47 = vmatpush1.bf16.xpose.msra.mxu0 %v44
  %48 = vmatprep.subr.bf16.mxu0 0
  %49 = vmatpush1.bf16.xpose.msra.mxu0 0
  %50 = vmatprep.subr.bf16.mxu0 0
  %51 = vmatpush1.bf16.xpose.msra.mxu0 0
  %52 = vmatprep.subr.bf16.mxu0 0
  %53 = vmatpush1.bf16.xpose.msra.mxu0 0
  %54 = vmatprep.subr.bf16.mxu0 0
  %55 = vmatpush1.bf16.xpose.msra.mxu0 0
  %56 = vmatprep.subr.bf16.mxu0 0
  %57 = vmatpush1.bf16.xpose.msra.mxu0 0
  %58 = vmatprep.subr.bf16.mxu0 0
  %59 = vmatpush1.bf16.xpose.msra.mxu0 0
  %60 = vmatprep.subr.bf16.mxu0 0
  %61 = vmatpush1.bf16.xpose.msra.mxu0 0
  %62 = vmatprep.subr.bf16.mxu0 0
  %63 = vmatpush1.bf16.xpose.msra.mxu0 0
  %64 = vmatprep.subr.bf16.mxu0 0
  %65 = vmatpush1.bf16.xpose.msra.mxu0 0
  %66 = vmatprep.subr.bf16.mxu0 0
  %67 = vmatpush1.bf16.xpose.msra.mxu0 0
  %68 = vmatprep.subr.bf16.mxu0 0
  %69 = vmatpush1.bf16.xpose.msra.mxu0 0
  %70 = vmatprep.subr.bf16.mxu0 0
  %71 = vmatpush1.bf16.xpose.msra.mxu0 0
  %72 = vmatprep.subr.bf16.mxu0 0
  %73 = vmatpush1.bf16.xpose.msra.mxu0 0
  %74 = vmatprep.subr.bf16.mxu0 0
  %75 = vmatpush1.bf16.xpose.msra.mxu0 0
  %76 = vmatprep.subr.bf16.mxu0 0
  %77 = vmatpush1.bf16.xpose.msra.mxu0 0
  %78 = vmatprep.mubr.bf16.mxu0 0
  %79 = vmatmul.mubr.bf16.gmra.mrb[0].mxu0 %v41
  %v80 = vpop.f32.mrb[0].mxu0
  %v81 = vadd.f32 0.0, %v80
  %v82 = vpop.f32.mrb[0].mxu0
  %v83 = vpop.f32.mrb[0].mxu0
  %v84 = vpop.f32.mrb[0].mxu0
  %85 = vdwg.mxu0
  %v87 = vsel %vm39, %v20, 0
  %v90 = vsel %vm39, %v28, 0
  %92 = vmatprep.subr.bf16.mxu0 0
  %93 = vmatpush1.bf16.xpose.msra.mxu0 %v90
  %94 = vmatprep.subr.bf16.mxu0 0
  %95 = vmatpush1.bf16.xpose.msra.mxu0 0
  %96 = vmatprep.subr.bf16.mxu0 0
  %97 = vmatpush1.bf16.xpose.msra.mxu0 0
  %98 = vmatprep.subr.bf16.mxu0 0
  %99 = vmatpush1.bf16.xpose.msra.mxu0 0
  %100 = vmatprep.subr.bf16.mxu0 0
  %101 = vmatpush1.bf16.xpose.msra.mxu0 0
  %102 = vmatprep.subr.bf16.mxu0 0
  %103 = vmatpush1.bf16.xpose.msra.mxu0 0
  %104 = vmatprep.subr.bf16.mxu0 0
  %105 = vmatpush1.bf16.xpose.msra.mxu0 0
  %106 = vmatprep.subr.bf16.mxu0 0
  %107 = vmatpush1.bf16.xpose.msra.mxu0 0
  %108 = vmatprep.subr.bf16.mxu0 0
  %109 = vmatpush1.bf16.xpose.msra.mxu0 0
  %110 = vmatprep.subr.bf16.mxu0 0
  %111 = vmatpush1.bf16.xpose.msra.mxu0 0
  %112 = vmatprep.subr.bf16.mxu0 0
  %113 = vmatpush1.bf16.xpose.msra.mxu0 0
  %114 = vmatprep.subr.bf16.mxu0 0
  %115 = vmatpush1.bf16.xpose.msra.mxu0 0
  %116 = vmatprep.subr.bf16.mxu0 0
  %117 = vmatpush1.bf16.xpose.msra.mxu0 0
  %118 = vmatprep.subr.bf16.mxu0 0
  %119 = vmatpush1.bf16.xpose.msra.mxu0 0
  %120 = vmatprep.subr.bf16.mxu0 0
  %121 = vmatpush1.bf16.xpose.msra.mxu0 0
  %122 = vmatprep.subr.bf16.mxu0 0
  %123 = vmatpush1.bf16.xpose.msra.mxu0 0
  %124 = vmatprep.mubr.bf16.mxu0 0
  %125 = vmatmul.mubr.bf16.gmra.mrb[0].mxu0 %v87
  %v126 = vpop.f32.mrb[0].mxu0
  %v127 = vadd.f32 0.0, %v126
  %v128 = vpop.f32.mrb[0].mxu0
  %v129 = vpop.f32.mrb[0].mxu0
  %v130 = vpop.f32.mrb[0].mxu0
  %131 = vdwg.mxu0
  %v133 = vsel %vm39, %v21, 0
  %v136 = vsel %vm39, %v29, 0
  %138 = vmatprep.subr.bf16.mxu0 0
  %139 = vmatpush1.bf16.xpose.msra.mxu0 %v136
  %140 = vmatprep.subr.bf16.mxu0 0
  %141 = vmatpush1.bf16.xpose.msra.mxu0 0
  %142 = vmatprep.subr.bf16.mxu0 0
  %143 = vmatpush1.bf16.xpose.msra.mxu0 0
  %144 = vmatprep.subr.bf16.mxu0 0
  %145 = vmatpush1.bf16.xpose.msra.mxu0 0
  %146 = vmatprep.subr.bf16.mxu0 0
  %147 = vmatpush1.bf16.xpose.msra.mxu0 0
  %148 = vmatprep.subr.bf16.mxu0 0
  %149 = vmatpush1.bf16.xpose.msra.mxu0 0
  %150 = vmatprep.subr.bf16.mxu0 0
  %151 = vmatpush1.bf16.xpose.msra.mxu0 0
  %152 = vmatprep.subr.bf16.mxu0 0
  %153 = vmatpush1.bf16.xpose.msra.mxu0 0
  %154 = vmatprep.subr.bf16.mxu0 0
  %155 = vmatpush1.bf16.xpose.msra.mxu0 0
  %156 = vmatprep.subr.bf16.mxu0 0
  %157 = vmatpush1.bf16.xpose.msra.mxu0 0
  %158 = vmatprep.subr.bf16.mxu0 0
  %159 = vmatpush1.bf16.xpose.msra.mxu0 0
  %160 = vmatprep.subr.bf16.mxu0 0
  %161 = vmatpush1.bf16.xpose.msra.mxu0 0
  %162 = vmatprep.subr.bf16.mxu0 0
  %163 = vmatpush1.bf16.xpose.msra.mxu0 0
  %164 = vmatprep.subr.bf16.mxu0 0
  %165 = vmatpush1.bf16.xpose.msra.mxu0 0
  %166 = vmatprep.subr.bf16.mxu0 0
  %167 = vmatpush1.bf16.xpose.msra.mxu0 0
  %168 = vmatprep.subr.bf16.mxu0 0
  %169 = vmatpush1.bf16.xpose.msra.mxu0 0
  %170 = vmatprep.mubr.bf16.mxu0 0
  %171 = vmatmul.mubr.bf16.gmra.mrb[0].mxu0 %v133
  %v172 = vpop.f32.mrb[0].mxu0
  %v173 = vadd.f32 0.0, %v172
  %v174 = vpop.f32.mrb[0].mxu0
  %v175 = vpop.f32.mrb[0].mxu0
  %v176 = vpop.f32.mrb[0].mxu0
  %177 = vdwg.mxu0
  %v179 = vsel %vm39, %v22, 0
  %v182 = vsel %vm39, %v30, 0
  %184 = vmatprep.subr.bf16.mxu0 0
  %185 = vmatpush1.bf16.xpose.msra.mxu0 %v182
  %186 = vmatprep.subr.bf16.mxu0 0
  %187 = vmatpush1.bf16.xpose.msra.mxu0 0
  %188 = vmatprep.subr.bf16.mxu0 0
  %189 = vmatpush1.bf16.xpose.msra.mxu0 0
  %190 = vmatprep.subr.bf16.mxu0 0
  %191 = vmatpush1.bf16.xpose.msra.mxu0 0
  %192 = vmatprep.subr.bf16.mxu0 0
  %193 = vmatpush1.bf16.xpose.msra.mxu0 0
  %194 = vmatprep.subr.bf16.mxu0 0
  %195 = vmatpush1.bf16.xpose.msra.mxu0 0
  %196 = vmatprep.subr.bf16.mxu0 0
  %197 = vmatpush1.bf16.xpose.msra.mxu0 0
  %198 = vmatprep.subr.bf16.mxu0 0
  %199 = vmatpush1.bf16.xpose.msra.mxu0 0
  %200 = vmatprep.subr.bf16.mxu0 0
  %201 = vmatpush1.bf16.xpose.msra.mxu0 0
  %202 = vmatprep.subr.bf16.mxu0 0
  %203 = vmatpush1.bf16.xpose.msra.mxu0 0
  %204 = vmatprep.subr.bf16.mxu0 0
  %205 = vmatpush1.bf16.xpose.msra.mxu0 0
  %206 = vmatprep.subr.bf16.mxu0 0
  %207 = vmatpush1.bf16.xpose.msra.mxu0 0
  %208 = vmatprep.subr.bf16.mxu0 0
  %209 = vmatpush1.bf16.xpose.msra.mxu0 0
  %210 = vmatprep.subr.bf16.mxu0 0
  %211 = vmatpush1.bf16.xpose.msra.mxu0 0
  %212 = vmatprep.subr.bf16.mxu0 0
  %213 = vmatpush1.bf16.xpose.msra.mxu0 0
  %214 = vmatprep.subr.bf16.mxu0 0
  %215 = vmatpush1.bf16.xpose.msra.mxu0 0
  %216 = vmatprep.mubr.bf16.mxu0 0
  %217 = vmatmul.mubr.bf16.gmra.mrb[0].mxu0 %v179
  %v218 = vpop.f32.mrb[0].mxu0
  %v219 = vadd.f32 0.0, %v218
  %v220 = vpop.f32.mrb[0].mxu0
  %v221 = vpop.f32.mrb[0].mxu0
  %v222 = vpop.f32.mrb[0].mxu0
  %223 = vdwg.mxu0
  %v224 = vmul.f32 %v81, 0.25
  %v225 = vmul.f32 %v127, 0.25
  %v226 = vmul.f32 %v173, 0.25
  %v227 = vmul.f32 %v219, 0.25
  %vm228 = vcmask 46080
  %v229 = vsel %vm228, %v224, -inf
  %230 = vmax.xlane.f32.xlu0 %v229
  %v231 = vpop.xlane.xlu0 %230
  %v232 = vsel %vm228, %v225, -inf
  %233 = vmax.xlane.f32.xlu0 %v232
  %v234 = vpop.xlane.xlu0 %233
  %v235 = vsel %vm228, %v226, -inf
  %236 = vmax.xlane.f32.xlu0 %v235
  %v237 = vpop.xlane.xlu0 %236
  %v238 = vsel %vm228, %v227, -inf
  %239 = vmax.xlane.f32.xlu0 %v238
  %v240 = vpop.xlane.xlu0 %239
  %v241 = vsub.f32 %v224, %v231
  %v242 = vsub.f32 %v225, %v234
  %v243 = vsub.f32 %v226, %v237
  %v244 = vsub.f32 %v227, %v240
  %v245 = vmul.f32 %v241, 1.442695
  %v246 = vpow.pop %v245
  %v247 = vmul.f32 %v242, 1.442695
  %v248 = vpow.pop %v247
  %v249 = vmul.f32 %v243, 1.442695
  %v250 = vpow.pop %v249
  %v251 = vmul.f32 %v244, 1.442695
  %v252 = vpow.pop %v251
  %v253 = vsel %vm228, %v246, 0.0
  %254 = vadd.xlane.f32.xlu0 %v253
  %v255 = vpop.xlane.xlu0 %254
  %v256 = vsel %vm228, %v248, 0.0
  %257 = vadd.xlane.f32.xlu0 %v256
  %v258 = vpop.xlane.xlu0 %257
  %v259 = vsel %vm228, %v250, 0.0
  %260 = vadd.xlane.f32.xlu0 %v259
  %v261 = vpop.xlane.xlu0 %260
  %v262 = vsel %vm228, %v252, 0.0
  %263 = vadd.xlane.f32.xlu0 %v262
  %v264 = vpop.xlane.xlu0 %263
  %v265 = vpack.c.bf16 %v246, %v246
  %v266 = vpack.c.bf16 %v248, %v248
  %v267 = vpack.c.bf16 %v250, %v250
  %v268 = vpack.c.bf16 %v252, %v252
  %vm269 = vcmask 48128
  %v271 = vsel %vm269, %v265, 0
  %vm273 = vcmask 1042432
  %v275 = vsel %vm273, %v35, 0
  %277 = vmatprep.subr.bf16.mxu0 0
  %278 = vmatpush1.bf16.msra.mxu0 %v275
  %279 = vmatprep.subr.bf16.mxu0 0
  %280 = vmatpush1.bf16.msra.mxu0 0
  %281 = vmatprep.subr.bf16.mxu0 0
  %282 = vmatpush1.bf16.msra.mxu0 0
  %283 = vmatprep.subr.bf16.mxu0 0
  %284 = vmatpush1.bf16.msra.mxu0 0
  %285 = vmatprep.subr.bf16.mxu0 0
  %286 = vmatpush1.bf16.msra.mxu0 0
  %287 = vmatprep.subr.bf16.mxu0 0
  %288 = vmatpush1.bf16.msra.mxu0 0
  %289 = vmatprep.subr.bf16.mxu0 0
  %290 = vmatpush1.bf16.msra.mxu0 0
  %291 = vmatprep.subr.bf16.mxu0 0
  %292 = vmatpush1.bf16.msra.mxu0 0
  %293 = vmatprep.subr.bf16.mxu0 0
  %294 = vmatpush1.bf16.msra.mxu0 0
  %295 = vmatprep.subr.bf16.mxu0 0
  %296 = vmatpush1.bf16.msra.mxu0 0
  %297 = vmatprep.subr.bf16.mxu0 0
  %298 = vmatpush1.bf16.msra.mxu0 0
  %299 = vmatprep.subr.bf16.mxu0 0
  %300 = vmatpush1.bf16.msra.mxu0 0
  %301 = vmatprep.subr.bf16.mxu0 0
  %302 = vmatpush1.bf16.msra.mxu0 0
  %303 = vmatprep.subr.bf16.mxu0 0
  %304 = vmatpush1.bf16.msra.mxu0 0
  %305 = vmatprep.subr.bf16.mxu0 0
  %306 = vmatpush1.bf16.msra.mxu0 0
  %307 = vmatprep.subr.bf16.mxu0 0
  %308 = vmatpush1.bf16.msra.mxu0 0
  %309 = vmatprep.mubr.bf16.mxu0 0
  %310 = vmatmul.mubr.bf16.gmra.mrb[0].mxu0 %v271
  %v311 = vpop.f32.mrb[0].mxu0
  %v312 = vadd.f32 0.0, %v311
  %v313 = vpop.f32.mrb[0].mxu0
  %v314 = vpop.f32.mrb[0].mxu0
  %v315 = vpop.f32.mrb[0].mxu0
  %316 = vdwg.mxu0
  %v318 = vsel %vm269, %v266, 0
  %v321 = vsel %vm273, %v36, 0
  %323 = vmatprep.subr.bf16.mxu0 0
  %324 = vmatpush1.bf16.msra.mxu0 %v321
  %325 = vmatprep.subr.bf16.mxu0 0
  %326 = vmatpush1.bf16.msra.mxu0 0
  %327 = vmatprep.subr.bf16.mxu0 0
  %328 = vmatpush1.bf16.msra.mxu0 0
  %329 = vmatprep.subr.bf16.mxu0 0
  %330 = vmatpush1.bf16.msra.mxu0 0
  %331 = vmatprep.subr.bf16.mxu0 0
  %332 = vmatpush1.bf16.msra.mxu0 0
  %333 = vmatprep.subr.bf16.mxu0 0
  %334 = vmatpush1.bf16.msra.mxu0 0
  %335 = vmatprep.subr.bf16.mxu0 0
  %336 = vmatpush1.bf16.msra.mxu0 0
  %337 = vmatprep.subr.bf16.mxu0 0
  %338 = vmatpush1.bf16.msra.mxu0 0
  %339 = vmatprep.subr.bf16.mxu0 0
  %340 = vmatpush1.bf16.msra.mxu0 0
  %341 = vmatprep.subr.bf16.mxu0 0
  %342 = vmatpush1.bf16.msra.mxu0 0
  %343 = vmatprep.subr.bf16.mxu0 0
  %344 = vmatpush1.bf16.msra.mxu0 0
  %345 = vmatprep.subr.bf16.mxu0 0
  %346 = vmatpush1.bf16.msra.mxu0 0
  %347 = vmatprep.subr.bf16.mxu0 0
  %348 = vmatpush1.bf16.msra.mxu0 0
  %349 = vmatprep.subr.bf16.mxu0 0
  %350 = vmatpush1.bf16.msra.mxu0 0
  %351 = vmatprep.subr.bf16.mxu0 0
  %352 = vmatpush1.bf16.msra.mxu0 0
  %353 = vmatprep.subr.bf16.mxu0 0
  %354 = vmatpush1.bf16.msra.mxu0 0
  %355 = vmatprep.mubr.bf16.mxu0 0
  %356 = vmatmul.mubr.bf16.gmra.mrb[0].mxu0 %v318
  %v357 = vpop.f32.mrb[0].mxu0
  %v358 = vadd.f32 0.0, %v357
  %v359 = vpop.f32.mrb[0].mxu0
  %v360 = vpop.f32.mrb[0].mxu0
  %v361 = vpop.f32.mrb[0].mxu0
  %362 = vdwg.mxu0
  %v364 = vsel %vm269, %v267, 0
  %v367 = vsel %vm273, %v37, 0
  %369 = vmatprep.subr.bf16.mxu0 0
  %370 = vmatpush1.bf16.msra.mxu0 %v367
  %371 = vmatprep.subr.bf16.mxu0 0
  %372 = vmatpush1.bf16.msra.mxu0 0
  %373 = vmatprep.subr.bf16.mxu0 0
  %374 = vmatpush1.bf16.msra.mxu0 0
  %375 = vmatprep.subr.bf16.mxu0 0
  %376 = vmatpush1.bf16.msra.mxu0 0
  %377 = vmatprep.subr.bf16.mxu0 0
  %378 = vmatpush1.bf16.msra.mxu0 0
  %379 = vmatprep.subr.bf16.mxu0 0
  %380 = vmatpush1.bf16.msra.mxu0 0
  %381 = vmatprep.subr.bf16.mxu0 0
  %382 = vmatpush1.bf16.msra.mxu0 0
  %383 = vmatprep.subr.bf16.mxu0 0
  %384 = vmatpush1.bf16.msra.mxu0 0
  %385 = vmatprep.subr.bf16.mxu0 0
  %386 = vmatpush1.bf16.msra.mxu0 0
  %387 = vmatprep.subr.bf16.mxu0 0
  %388 = vmatpush1.bf16.msra.mxu0 0
  %389 = vmatprep.subr.bf16.mxu0 0
  %390 = vmatpush1.bf16.msra.mxu0 0
  %391 = vmatprep.subr.bf16.mxu0 0
  %392 = vmatpush1.bf16.msra.mxu0 0
  %393 = vmatprep.subr.bf16.mxu0 0
  %394 = vmatpush1.bf16.msra.mxu0 0
  %395 = vmatprep.subr.bf16.mxu0 0
  %396 = vmatpush1.bf16.msra.mxu0 0
  %397 = vmatprep.subr.bf16.mxu0 0
  %398 = vmatpush1.bf16.msra.mxu0 0
  %399 = vmatprep.subr.bf16.mxu0 0
  %400 = vmatpush1.bf16.msra.mxu0 0
  %401 = vmatprep.mubr.bf16.mxu0 0
  %402 = vmatmul.mubr.bf16.gmra.mrb[0].mxu0 %v364
  %v403 = vpop.f32.mrb[0].mxu0
  %v404 = vadd.f32 0.0, %v403
  %v405 = vpop.f32.mrb[0].mxu0
  %v406 = vpop.f32.mrb[0].mxu0
  %v407 = vpop.f32.mrb[0].mxu0
  %408 = vdwg.mxu0
  %v410 = vsel %vm269, %v268, 0
  %v413 = vsel %vm273, %v38, 0
  %415 = vmatprep.subr.bf16.mxu0 0
  %416 = vmatpush1.bf16.msra.mxu0 %v413
  %417 = vmatprep.subr.bf16.mxu0 0
  %418 = vmatpush1.bf16.msra.mxu0 0
  %419 = vmatprep.subr.bf16.mxu0 0
  %420 = vmatpush1.bf16.msra.mxu0 0
  %421 = vmatprep.subr.bf16.mxu0 0
  %422 = vmatpush1.bf16.msra.mxu0 0
  %423 = vmatprep.subr.bf16.mxu0 0
  %424 = vmatpush1.bf16.msra.mxu0 0
  %425 = vmatprep.subr.bf16.mxu0 0
  %426 = vmatpush1.bf16.msra.mxu0 0
  %427 = vmatprep.subr.bf16.mxu0 0
  %428 = vmatpush1.bf16.msra.mxu0 0
  %429 = vmatprep.subr.bf16.mxu0 0
  %430 = vmatpush1.bf16.msra.mxu0 0
  %431 = vmatprep.subr.bf16.mxu0 0
  %432 = vmatpush1.bf16.msra.mxu0 0
  %433 = vmatprep.subr.bf16.mxu0 0
  %434 = vmatpush1.bf16.msra.mxu0 0
  %435 = vmatprep.subr.bf16.mxu0 0
  %436 = vmatpush1.bf16.msra.mxu0 0
  %437 = vmatprep.subr.bf16.mxu0 0
  %438 = vmatpush1.bf16.msra.mxu0 0
  %439 = vmatprep.subr.bf16.mxu0 0
  %440 = vmatpush1.bf16.msra.mxu0 0
  %441 = vmatprep.subr.bf16.mxu0 0
  %442 = vmatpush1.bf16.msra.mxu0 0
  %443 = vmatprep.subr.bf16.mxu0 0
  %444 = vmatpush1.bf16.msra.mxu0 0
  %445 = vmatprep.subr.bf16.mxu0 0
  %446 = vmatpush1.bf16.msra.mxu0 0
  %447 = vmatprep.mubr.bf16.mxu0 0
  %448 = vmatmul.mubr.bf16.gmra.mrb[0].mxu0 %v410
  %v449 = vpop.f32.mrb[0].mxu0
  %v450 = vadd.f32 0.0, %v449
  %v451 = vpop.f32.mrb[0].mxu0
  %v452 = vpop.f32.mrb[0].mxu0
  %v453 = vpop.f32.mrb[0].mxu0
  %454 = vdwg.mxu0
  %v455 = vrcp.pop %v255
  %v456 = vrcp.pop %v258
  %v457 = vrcp.pop %v261
  %v458 = vrcp.pop %v264
  %v459 = vmul.f32 %v312, %v455
  %v460 = vmul.f32 %v358, %v456
  %v461 = vmul.f32 %v404, %v457
  %v462 = vmul.f32 %v450, %v458
  %vm463 = vcmask 128000
  %464 = vst.msk [vmem:[%s3] sm:$0x3f] %vm463, %v459
  %465 = vst.msk [vmem:[%s3 + $0x8] sm:$0x3f] %vm463, %v460
  %466 = vst.msk [vmem:[%s3 + $0x10] sm:$0x3f] %vm463, %v461
  %467 = vst.msk [vmem:[%s3 + $0x18] sm:$0x3f] %vm463, %v462
  // Predicated region
  $region14: #{_lambda_.31} parent=0 // pred_check
    _
  $region15: #{_lambda_.31} parent=0 // pred_check_branch
    %469 = sbr.rel (0) target = $region17
  $region16: #{_lambda_.31} parent=0 // pred_region
    _
  $region17: #{_lambda_.31} parent=0 // pred_fallthru
    _
  // Predicated region
  $region18: #{_lambda_.31} parent=0 // pred_check
    _
  $region19: #{_lambda_.31} parent=0 // pred_check_branch
    %471 = sbr.rel (0) target = $region21
  $region20: #{_lambda_.31} parent=0 // pred_region
    _
  $region21: #{_lambda_.31} parent=0 // pred_fallthru
    _

// kernel: _lambda_.33
$region0: #{_lambda_.33}
  #allocation0 [shape = 'u32[]', space=smem, size = 0x4, offset = 0x4, fixed_abs, tag = 'smem constant byte address 0x4 - core index']
  #allocation1 [shape = 'u32[144,128]{1,0:T(1,128)}', space=vmem, size = 0x12000, scoped, tag = 'internal scratch']
  %s0 = inlined_call_operand.vmem [shape: f32[12,32], index: 0, kind: input, shape index: {}, may-alias: {0,7}]
  %s1 = inlined_call_operand.vmem [shape: f32[1,32], index: 1, kind: input, shape index: {}]
  %s2 = inlined_call_operand.vmem [shape: f32[1,32], index: 2, kind: input, shape index: {}]
  %s3 = inlined_call_operand.vmem [shape: bf16[32,64], index: 3, kind: input, shape index: {}]
  %s4 = inlined_call_operand.vmem [shape: f32[1,64], index: 4, kind: input, shape index: {}]
  %s5 = inlined_call_operand.vmem [shape: bf16[64,32], index: 5, kind: input, shape index: {}]
  %s6 = inlined_call_operand.vmem [shape: f32[1,32], index: 6, kind: input, shape index: {}]
  %s7 = inlined_call_operand.vmem [shape: f32[12,32], index: 7, kind: input, shape index: {}, may-alias: {0,7}]
  %s8 = inlined_call_operand.vmem [shape: f32[12,32], index: 8, kind: output, shape index: {}]
  %s9 = sld [smem:[#allocation0]]
  $region42: #{_lambda_.33} parent=0
    _
  %s11 = ssub.s32 1, %s9
  %s12 = scalar_select 0, %s11, %s9
  // Predicated region
  $region2: #{_lambda_.33} parent=0 // pred_check
    _
  $region3: #{_lambda_.33} parent=0 // pred_check_branch
    %14 = sbr.rel (0) target = $region5
  $region4: #{_lambda_.33} parent=0 // pred_region
    _
  $region5: #{_lambda_.33} parent=0 // pred_fallthru
    _
  // Predicated region
  $region6: #{_lambda_.33} parent=0 // pred_check
    _
  $region7: #{_lambda_.33} parent=0 // pred_check_branch
    %16 = sbr.rel (0) target = $region9
  $region8: #{_lambda_.33} parent=0 // pred_region
    _
  $region9: #{_lambda_.33} parent=0 // pred_fallthru
    _
  // Predicated region
  $region10: #{_lambda_.33} parent=0 // pred_check
    _
  $region11: #{_lambda_.33} parent=0 // pred_check_branch
    %18 = sbr.rel (0) target = $region13
  $region12: #{_lambda_.33} parent=0 // pred_region
    _
  $region13: #{_lambda_.33} parent=0 // pred_fallthru
    _
  // Predicated region
  $region14: #{_lambda_.33} parent=0 // pred_check
    _
  $region15: #{_lambda_.33} parent=0 // pred_check_branch
    %20 = sbr.rel (0) target = $region17
  $region16: #{_lambda_.33} parent=0 // pred_region
    _
  $region17: #{_lambda_.33} parent=0 // pred_fallthru
    _
  // Predicated region
  $region18: #{_lambda_.33} parent=0 // pred_check
    _
  $region19: #{_lambda_.33} parent=0 // pred_check_branch
    %22 = sbr.rel (0) target = $region21
  $region20: #{_lambda_.33} parent=0 // pred_region
    _
  $region21: #{_lambda_.33} parent=0 // pred_fallthru
    _
  // Predicated region
  $region22: #{_lambda_.33} parent=0 // pred_check
    _
  $region23: #{_lambda_.33} parent=0 // pred_check_branch
    %24 = sbr.rel (0) target = $region25
  $region24: #{_lambda_.33} parent=0 // pred_region
    _
  $region25: #{_lambda_.33} parent=0 // pred_fallthru
    _
  // Predicated region
  $region26: #{_lambda_.33} parent=0 // pred_check
    _
  $region27: #{_lambda_.33} parent=0 // pred_check_branch
    %26 = sbr.rel (0) target = $region29
  $region28: #{_lambda_.33} parent=0 // pred_region
    _
  $region29: #{_lambda_.33} parent=0 // pred_fallthru
    _
  // Predicated region
  $region30: #{_lambda_.33} parent=0 // pred_check
    _
  $region31: #{_lambda_.33} parent=0 // pred_check_branch
    %28 = sbr.rel (0) target = $region33
  $region32: #{_lambda_.33} parent=0 // pred_region
    _
  $region33: #{_lambda_.33} parent=0 // pred_fallthru
    _
  %v30 = vld [vmem:[%s0] sm:$0xff]
  %v31 = vld [vmem:[%s0 + $0x8] sm:$0xf]
  %vm32 = vcmask 261120
  %v33 = vsel %vm32, %v30, 0.0
  %34 = vadd.xlane.f32.xlu0 %v33
  %v35 = vpop.xlane.xlu0 %34
  %vm36 = vcmask 257024
  %v37 = vsel %vm36, %v31, 0.0
  %38 = vadd.xlane.f32.xlu0 %v37
  %v39 = vpop.xlane.xlu0 %38
  %v40 = vrcp.pop 32.0
  %v41 = vmul.f32 %v35, %v40
  %v42 = vmul.f32 %v39, %v40
  %v43 = vsub.f32 %v30, %v41
  %v44 = vsub.f32 %v31, %v42
  %v45 = vmul.f32 %v43, %v43
  %v46 = vmul.f32 %v44, %v44
  %v47 = vsel %vm32, %v45, 0.0
  %48 = vadd.xlane.f32.xlu0 %v47
  %v49 = vpop.xlane.xlu0 %48
  %v50 = vsel %vm36, %v46, 0.0
  %51 = vadd.xlane.f32.xlu0 %v50
  %v52 = vpop.xlane.xlu0 %51
  %v53 = vmul.f32 %v49, %v40
  %v54 = vmul.f32 %v52, %v40
  %v55 = vadd.f32 %v53, 1e-05
  %v56 = vadd.f32 %v54, 1e-05
  %v57 = vrsqrt.pop %v55
  %v58 = vrsqrt.pop %v56
  %v59 = vmul.f32 %v43, %v57
  %v60 = vmul.f32 %v44, %v58
  %v61 = vld [vmem:[%s1] sm:$0x1]
  %v63 = vlaneseq
  %v64 = vshrl.u32 %v63, 7
  %v65 = vsub.s32 0, %v64
  %v66 = vrot.slane %v61, %v65
  %v68 = vmul.f32 %v59, %v66
  %v69 = vmul.f32 %v60, %v66
  %v70 = vld [vmem:[%s2] sm:$0x1]
  %v72 = vlaneseq
  %v73 = vshrl.u32 %v72, 7
  %v74 = vsub.s32 0, %v73
  %v75 = vrot.slane %v70, %v74
  %v77 = vadd.f32 %v68, %v75
  %v78 = vadd.f32 %v69, %v75
  %v79 = vpack.c.bf16 %v78, %v77
  %v80 = vld [vmem:[%s3] sm:$0xf]
  %v81 = vld [vmem:[%s3 + $0x4] sm:$0xf]
  %v82 = vld [vmem:[%s3 + $0x8] sm:$0xf]
  %v83 = vld [vmem:[%s3 + $0xc] sm:$0xf]
  %v84 = vld [vmem:[%s4] sm:$0x1]
  %v86 = vlaneseq
  %v87 = vshrl.u32 %v86, 7
  %v88 = vsub.s32 0, %v87
  %v89 = vrot.slane %v84, %v88
  %v95 = vunpack.c.l.b16 %v80
  %v96 = vunpack.c.l.b16 %v81
  %v97 = vunpack.c.l.b16 %v82
  %v98 = vunpack.c.l.b16 %v83
  %v99 = vpack.c.b16 %v96, %v95
  %v100 = vpack.c.b16 %v98, %v97
  %v104 = vsel %vm32, %v79, 0
  %106 = vmatprep.subr.bf16.mxu0 0
  %107 = vmatpush1.bf16.msra.mxu0 %v99
  %108 = vmatprep.subr.bf16.mxu0 0
  %109 = vmatpush1.bf16.msra.mxu0 %v100
  %110 = vmatprep.subr.bf16.mxu0 0
  %111 = vmatpush1.bf16.msra.mxu0 0
  %112 = vmatprep.subr.bf16.mxu0 0
  %113 = vmatpush1.bf16.msra.mxu0 0
  %114 = vmatprep.subr.bf16.mxu0 0
  %115 = vmatpush1.bf16.msra.mxu0 0
  %116 = vmatprep.subr.bf16.mxu0 0
  %117 = vmatpush1.bf16.msra.mxu0 0
  %118 = vmatprep.subr.bf16.mxu0 0
  %119 = vmatpush1.bf16.msra.mxu0 0
  %120 = vmatprep.subr.bf16.mxu0 0
  %121 = vmatpush1.bf16.msra.mxu0 0
  %122 = vmatprep.subr.bf16.mxu0 0
  %123 = vmatpush1.bf16.msra.mxu0 0
  %124 = vmatprep.subr.bf16.mxu0 0
  %125 = vmatpush1.bf16.msra.mxu0 0
  %126 = vmatprep.subr.bf16.mxu0 0
  %127 = vmatpush1.bf16.msra.mxu0 0
  %128 = vmatprep.subr.bf16.mxu0 0
  %129 = vmatpush1.bf16.msra.mxu0 0
  %130 = vmatprep.subr.bf16.mxu0 0
  %131 = vmatpush1.bf16.msra.mxu0 0
  %132 = vmatprep.subr.bf16.mxu0 0
  %133 = vmatpush1.bf16.msra.mxu0 0
  %134 = vmatprep.subr.bf16.mxu0 0
  %135 = vmatpush1.bf16.msra.mxu0 0
  %136 = vmatprep.subr.bf16.mxu0 0
  %137 = vmatpush1.bf16.msra.mxu0 0
  %138 = vmatprep.mubr.bf16.mxu0 0
  %139 = vmatmul.mubr.bf16.gmra.mrb[0].mxu0 %v104
  %v140 = vpop.f32.mrb[0].mxu0
  %v141 = vadd.f32 %v89, %v140
  %v142 = vpop.f32.mrb[0].mxu0
  %v143 = vpop.f32.mrb[0].mxu0
  %v144 = vadd.f32 %v89, %v143
  %v145 = vpop.f32.mrb[0].mxu0
  %146 = vdwg.mxu0
  %v147 = vmax.f32 %v141, 0.0
  %v148 = vmax.f32 %v144, 0.0
  %v149 = vpack.c.bf16 %v148, %v147
  %v150 = vld [vmem:[%s5] sm:$0xf]
  %v151 = vld [vmem:[%s5 + $0x4] sm:$0xf]
  %v152 = vld [vmem:[%s5 + $0x8] sm:$0xf]
  %v153 = vld [vmem:[%s5 + $0xc] sm:$0xf]
  %v154 = vld [vmem:[%s5 + $0x10] sm:$0xf]
  %v155 = vld [vmem:[%s5 + $0x14] sm:$0xf]
  %v156 = vld [vmem:[%s5 + $0x18] sm:$0xf]
  %v157 = vld [vmem:[%s5 + $0x1c] sm:$0xf]
  %v158 = vld [vmem:[%s6] sm:$0x1]
  %v160 = vlaneseq
  %v161 = vshrl.u32 %v160, 7
  %v162 = vsub.s32 0, %v161
  %v163 = vrot.slane %v158, %v162
  %v173 = vunpack.c.l.b16 %v150
  %v174 = vunpack.c.l.b16 %v151
  %v175 = vunpack.c.l.b16 %v152
  %v176 = vunpack.c.l.b16 %v153
  %v177 = vunpack.c.l.b16 %v154
  %v178 = vunpack.c.l.b16 %v155
  %v179 = vunpack.c.l.b16 %v156
  %v180 = vunpack.c.l.b16 %v157
  %v181 = vpack.c.b16 %v174, %v173
  %v182 = vpack.c.b16 %v176, %v175
  %v183 = vpack.c.b16 %v178, %v177
  %v184 = vpack.c.b16 %v180, %v179
  %vm189 = vcmask 523264
  %v191 = vsel %vm189, %v149, 0
  %193 = vmatprep.subr.bf16.mxu0 0
  %194 = vmatpush1.bf16.msra.mxu0 %v181
  %195 = vmatprep.subr.bf16.mxu0 0
  %196 = vmatpush1.bf16.msra.mxu0 %v182
  %197 = vmatprep.subr.bf16.mxu0 0
  %198 = vmatpush1.bf16.msra.mxu0 %v183
  %199 = vmatprep.subr.bf16.mxu0 0
  %200 = vmatpush1.bf16.msra.mxu0 %v184
  %201 = vmatprep.subr.bf16.mxu0 0
  %202 = vmatpush1.bf16.msra.mxu0 0
  %203 = vmatprep.subr.bf16.mxu0 0
  %204 = vmatpush1.bf16.msra.mxu0 0
  %205 = vmatprep.subr.bf16.mxu0 0
  %206 = vmatpush1.bf16.msra.mxu0 0
  %207 = vmatprep.subr.bf16.mxu0 0
  %208 = vmatpush1.bf16.msra.mxu0 0
  %209 = vmatprep.subr.bf16.mxu0 0
  %210 = vmatpush1.bf16.msra.mxu0 0
  %211 = vmatprep.subr.bf16.mxu0 0
  %212 = vmatpush1.bf16.msra.mxu0 0
  %213 = vmatprep.subr.bf16.mxu0 0
  %214 = vmatpush1.bf16.msra.mxu0 0
  %215 = vmatprep.subr.bf16.mxu0 0
  %216 = vmatpush1.bf16.msra.mxu0 0
  %217 = vmatprep.subr.bf16.mxu0 0
  %218 = vmatpush1.bf16.msra.mxu0 0
  %219 = vmatprep.subr.bf16.mxu0 0
  %220 = vmatpush1.bf16.msra.mxu0 0
  %221 = vmatprep.subr.bf16.mxu0 0
  %222 = vmatpush1.bf16.msra.mxu0 0
  %223 = vmatprep.subr.bf16.mxu0 0
  %224 = vmatpush1.bf16.msra.mxu0 0
  %225 = vmatprep.mubr.bf16.mxu0 0
  %226 = vmatmul.mubr.bf16.gmra.mrb[0].mxu0 %v191
  %v227 = vpop.f32.mrb[0].mxu0
  %v228 = vadd.f32 %v163, %v227
  %v229 = vpop.f32.mrb[0].mxu0
  %v230 = vpop.f32.mrb[0].mxu0
  %v231 = vadd.f32 %v163, %v230
  %v232 = vpop.f32.mrb[0].mxu0
  %233 = vdwg.mxu0
  %v234 = vld [vmem:[%s7] sm:$0xff]
  %v235 = vld [vmem:[%s7 + $0x8] sm:$0xf]
  %v236 = vadd.f32 %v228, %v234
  %v237 = vadd.f32 %v231, %v235
  %238 = vst.msk [vmem:[%s8] sm:$0xff] %vm32, %v236
  %239 = vst.msk [vmem:[%s8 + $0x8] sm:$0xf] %vm36, %v237
  // Predicated region
  $region34: #{_lambda_.33} parent=0 // pred_check
    _
  $region35: #{_lambda_.33} parent=0 // pred_check_branch
    %241 = sbr.rel (0) target = $region37
  $region36: #{_lambda_.33} parent=0 // pred_region
    _
  $region37: #{_lambda_.33} parent=0 // pred_fallthru
    _
  // Predicated region
  $region38: #{_lambda_.33} parent=0 // pred_check
    _
  $region39: #{_lambda_.33} parent=0 // pred_check_branch
    %243 = sbr.rel (0) target = $region41
  $region40: #{_lambda_.33} parent=0 // pred_region
    _
  $region41: #{_lambda_.33} parent=0 // pred_fallthru
    _

// kernel: _lambda_.38
$region0: #{_lambda_.38}
  #allocation0 [shape = 'u32[]', space=smem, size = 0x4, offset = 0x4, fixed_abs, tag = 'smem constant byte address 0x4 - core index']
  #allocation1 [shape = 'u32[144,128]{1,0:T(1,128)}', space=vmem, size = 0x12000, scoped, tag = 'internal scratch']
  %s0 = inlined_call_operand.vmem [shape: f32[12,32], index: 0, kind: input, shape index: {}]
  %s1 = inlined_call_operand.vmem [shape: f32[1,32], index: 1, kind: input, shape index: {}]
  %s2 = inlined_call_operand.vmem [shape: f32[1,32], index: 2, kind: input, shape index: {}]
  %s3 = inlined_call_operand.vmem [shape: f32[12,32], index: 3, kind: output, shape index: {}]
  %s4 = sld [smem:[#allocation0]]
  $region22: #{_lambda_.38} parent=0
    _
  %s6 = ssub.s32 1, %s4
  %s7 = scalar_select 0, %s6, %s4
  // Predicated region
  $region2: #{_lambda_.38} parent=0 // pred_check
    _
  $region3: #{_lambda_.38} parent=0 // pred_check_branch
    %9 = sbr.rel (0) target = $region5
  $region4: #{_lambda_.38} parent=0 // pred_region
    _
  $region5: #{_lambda_.38} parent=0 // pred_fallthru
    _
  // Predicated region
  $region6: #{_lambda_.38} parent=0 // pred_check
    _
  $region7: #{_lambda_.38} parent=0 // pred_check_branch
    %11 = sbr.rel (0) target = $region9
  $region8: #{_lambda_.38} parent=0 // pred_region
    _
  $region9: #{_lambda_.38} parent=0 // pred_fallthru
    _
  // Predicated region
  $region10: #{_lambda_.38} parent=0 // pred_check
    _
  $region11: #{_lambda_.38} parent=0 // pred_check_branch
    %13 = sbr.rel (0) target = $region13
  $region12: #{_lambda_.38} parent=0 // pred_region
    _
  $region13: #{_lambda_.38} parent=0 // pred_fallthru
    _
  %v14 = vld [vmem:[%s0] sm:$0xff]
  %v15 = vld [vmem:[%s0 + $0x8] sm:$0xf]
  %vm16 = vcmask 261120
  %v17 = vsel %vm16, %v14, 0.0
  %18 = vadd.xlane.f32.xlu0 %v17
  %v19 = vpop.xlane.xlu0 %18
  %vm20 = vcmask 257024
  %v21 = vsel %vm20, %v15, 0.0
  %22 = vadd.xlane.f32.xlu0 %v21
  %v23 = vpop.xlane.xlu0 %22
  %v24 = vrcp.pop 32.0
  %v25 = vmul.f32 %v19, %v24
  %v26 = vmul.f32 %v23, %v24
  %v27 = vsub.f32 %v14, %v25
  %v28 = vsub.f32 %v15, %v26
  %v29 = vmul.f32 %v27, %v27
  %v30 = vmul.f32 %v28, %v28
  %v31 = vsel %vm16, %v29, 0.0
  %32 = vadd.xlane.f32.xlu0 %v31
  %v33 = vpop.xlane.xlu0 %32
  %v34 = vsel %vm20, %v30, 0.0
  %35 = vadd.xlane.f32.xlu0 %v34
  %v36 = vpop.xlane.xlu0 %35
  %v37 = vmul.f32 %v33, %v24
  %v38 = vmul.f32 %v36, %v24
  %v39 = vadd.f32 %v37, 1e-05
  %v40 = vadd.f32 %v38, 1e-05
  %v41 = vrsqrt.pop %v39
  %v42 = vrsqrt.pop %v40
  %v43 = vmul.f32 %v27, %v41
  %v44 = vmul.f32 %v28, %v42
  %v45 = vld [vmem:[%s1] sm:$0x1]
  %v47 = vlaneseq
  %v48 = vshrl.u32 %v47, 7
  %v49 = vsub.s32 0, %v48
  %v50 = vrot.slane %v45, %v49
  %v52 = vmul.f32 %v43, %v50
  %v53 = vmul.f32 %v44, %v50
  %v54 = vld [vmem:[%s2] sm:$0x1]
  %v56 = vlaneseq
  %v57 = vshrl.u32 %v56, 7
  %v58 = vsub.s32 0, %v57
  %v59 = vrot.slane %v54, %v58
  %v61 = vadd.f32 %v52, %v59
  %v62 = vadd.f32 %v53, %v59
  %63 = vst.msk [vmem:[%s3] sm:$0xff] %vm16, %v61
  %64 = vst.msk [vmem:[%s3 + $0x8] sm:$0xf] %vm20, %v62
  // Predicated region
  $region14: #{_lambda_.38} parent=0 // pred_check
    _
  $region15: #{_lambda_.38} parent=0 // pred_check_branch
    %66 = sbr.rel (0) target = $region17
  $region16: #{_lambda_.38} parent=0 // pred_region
    _
  $region17: #{_lambda_.38} parent=0 // pred_fallthru
    _
  // Predicated region
  $region18: #{_lambda_.38} parent=0 // pred_check
    _
  $region19: #{_lambda_.38} parent=0 // pred_check_branch
    %68 = sbr.rel (0) target = $region21
  $region20: #{_lambda_.38} parent=0 // pred_region
    _
  $region21: #{_lambda_.38} parent=0 // pred_fallthru
    _

// kernel: _lambda_.43
$region0: #{_lambda_.43}
  #allocation0 [shape = 'u32[]', space=smem, size = 0x4, offset = 0x4, fixed_abs, tag = 'smem constant byte address 0x4 - core index']
  #allocation1 [shape = 'u32[144,128]{1,0:T(1,128)}', space=vmem, size = 0x12000, scoped, tag = 'internal scratch']
  #allocation2 [shape = 'f32[12,64]{1,0:T(8,128)}', space=vmem, size = 0x2000, scoped, tag = 'scratch operand']
  %s0 = inlined_call_operand.vmem [shape: f32[12,32], index: 0, kind: input, shape index: {}]
  %s1 = inlined_call_operand.vmem [shape: bf16[32,64], index: 1, kind: input, shape index: {}]
  %s2 = inlined_call_operand.vmem [shape: f32[1,64], index: 2, kind: input, shape index: {}]
  %s3 = inlined_call_operand.vmem [shape: f32[12,64], index: 3, kind: output, shape index: {}]
  %s4 = sld [smem:[#allocation0]]
  $region30: #{_lambda_.43} parent=0
    _
  %s6 = ssub.s32 1, %s4
  %s7 = scalar_select 0, %s6, %s4
  // Predicated region
  $region2: #{_lambda_.43} parent=0 // pred_check
    _
  $region3: #{_lambda_.43} parent=0 // pred_check_branch
    %9 = sbr.rel (0) target = $region5
  $region4: #{_lambda_.43} parent=0 // pred_region
    _
  $region5: #{_lambda_.43} parent=0 // pred_fallthru
    _
  // Predicated region
  $region6: #{_lambda_.43} parent=0 // pred_check
    _
  $region7: #{_lambda_.43} parent=0 // pred_check_branch
    %11 = sbr.rel (0) target = $region9
  $region8: #{_lambda_.43} parent=0 // pred_region
    _
  $region9: #{_lambda_.43} parent=0 // pred_fallthru
    _
  // Predicated region
  $region10: #{_lambda_.43} parent=0 // pred_check
    _
  $region11: #{_lambda_.43} parent=0 // pred_check_branch
    %13 = sbr.rel (0) target = $region13
  $region12: #{_lambda_.43} parent=0 // pred_region
    _
  $region13: #{_lambda_.43} parent=0 // pred_fallthru
    _
  %p15 = scmp.eq.s32.totalorder 0, 0
  // Predicated region
  $region14: #{_lambda_.43} parent=0 // pred_check
    %p16 = pneg %p15
  $region15: #{_lambda_.43} parent=0 // pred_check_branch
    %18 = sbr.rel (%p16) target = $region17
  $region16: #{_lambda_.43} parent=0 // pred_region
    %vm19 = vcmask 523264
    %20 = vst.msk [vmem:[#allocation2] sm:$0xff] %vm19, 0.0
    %vm21 = vcmask 519168
    %22 = vst.msk [vmem:[#allocation2 + $0x8] sm:$0xf] %vm21, 0.0
  $region17: #{_lambda_.43} parent=0 // pred_fallthru
    _
  %v23 = vld [vmem:[#allocation2] sm:$0xff]
  %v24 = vld [vmem:[#allocation2 + $0x8] sm:$0xf]
  %v25 = vld [vmem:[%s0] sm:$0xff]
  %v26 = vld [vmem:[%s0 + $0x8] sm:$0xf]
  %v27 = vpack.c.bf16 %v26, %v25
  %v28 = vld [vmem:[%s1] sm:$0xf]
  %v29 = vld [vmem:[%s1 + $0x4] sm:$0xf]
  %v30 = vld [vmem:[%s1 + $0x8] sm:$0xf]
  %v31 = vld [vmem:[%s1 + $0xc] sm:$0xf]
  %v36 = vunpack.c.l.b16 %v28
  %v37 = vunpack.c.l.b16 %v29
  %v38 = vunpack.c.l.b16 %v30
  %v39 = vunpack.c.l.b16 %v31
  %v40 = vpack.c.b16 %v37, %v36
  %v41 = vpack.c.b16 %v39, %v38
  %vm44 = vcmask 261120
  %v46 = vsel %vm44, %v27, 0
  %48 = vmatprep.subr.bf16.mxu0 0
  %49 = vmatpush1.bf16.msra.mxu0 %v40
  %50 = vmatprep.subr.bf16.mxu0 0
  %51 = vmatpush1.bf16.msra.mxu0 %v41
  %52 = vmatprep.subr.bf16.mxu0 0
  %53 = vmatpush1.bf16.msra.mxu0 0
  %54 = vmatprep.subr.bf16.mxu0 0
  %55 = vmatpush1.bf16.msra.mxu0 0
  %56 = vmatprep.subr.bf16.mxu0 0
  %57 = vmatpush1.bf16.msra.mxu0 0
  %58 = vmatprep.subr.bf16.mxu0 0
  %59 = vmatpush1.bf16.msra.mxu0 0
  %60 = vmatprep.subr.bf16.mxu0 0
  %61 = vmatpush1.bf16.msra.mxu0 0
  %62 = vmatprep.subr.bf16.mxu0 0
  %63 = vmatpush1.bf16.msra.mxu0 0
  %64 = vmatprep.subr.bf16.mxu0 0
  %65 = vmatpush1.bf16.msra.mxu0 0
  %66 = vmatprep.subr.bf16.mxu0 0
  %67 = vmatpush1.bf16.msra.mxu0 0
  %68 = vmatprep.subr.bf16.mxu0 0
  %69 = vmatpush1.bf16.msra.mxu0 0
  %70 = vmatprep.subr.bf16.mxu0 0
  %71 = vmatpush1.bf16.msra.mxu0 0
  %72 = vmatprep.subr.bf16.mxu0 0
  %73 = vmatpush1.bf16.msra.mxu0 0
  %74 = vmatprep.subr.bf16.mxu0 0
  %75 = vmatpush1.bf16.msra.mxu0 0
  %76 = vmatprep.subr.bf16.mxu0 0
  %77 = vmatpush1.bf16.msra.mxu0 0
  %78 = vmatprep.subr.bf16.mxu0 0
  %79 = vmatpush1.bf16.msra.mxu0 0
  %80 = vmatprep.mubr.bf16.mxu0 0
  %81 = vmatmul.mubr.bf16.gmra.mrb[0].mxu0 %v46
  %v82 = vpop.f32.mrb[0].mxu0
  %v83 = vadd.f32 0.0, %v82
  %v84 = vpop.f32.mrb[0].mxu0
  %v85 = vpop.f32.mrb[0].mxu0
  %v86 = vadd.f32 0.0, %v85
  %v87 = vpop.f32.mrb[0].mxu0
  %88 = vdwg.mxu0
  %v89 = vadd.f32 %v23, %v83
  %v90 = vadd.f32 %v24, %v86
  %vm91 = vcmask 523264
  %92 = vst.msk [vmem:[#allocation2] sm:$0xff] %vm91, %v89
  %vm93 = vcmask 519168
  %94 = vst.msk [vmem:[#allocation2 + $0x8] sm:$0xf] %vm93, %v90
  // Predicated region
  $region18: #{_lambda_.43} parent=0 // pred_check
    %p95 = pneg %p15
  $region19: #{_lambda_.43} parent=0 // pred_check_branch
    %97 = sbr.rel (%p95) target = $region21
  $region20: #{_lambda_.43} parent=0 // pred_region
    %v98 = vld [vmem:[#allocation2] sm:$0xff]
    %v99 = vld [vmem:[#allocation2 + $0x8] sm:$0xf]
    %v100 = vld [vmem:[%s2] sm:$0x1]
    %v102 = vlaneseq
    %v103 = vshrl.u32 %v102, 7
    %v104 = vsub.s32 0, %v103
    %v105 = vrot.slane %v100, %v104
    %v107 = vadd.f32 %v98, %v105
    %v108 = vadd.f32 %v99, %v105
    %109 = vst.msk [vmem:[%s3] sm:$0xff] %vm91, %v107
    %110 = vst.msk [vmem:[%s3 + $0x8] sm:$0xf] %vm93, %v108
  $region21: #{_lambda_.43} parent=0 // pred_fallthru
    _
  // Predicated region
  $region22: #{_lambda_.43} parent=0 // pred_check
    _
  $region23: #{_lambda_.43} parent=0 // pred_check_branch
    %112 = sbr.rel (0) target = $region25
  $region24: #{_lambda_.43} parent=0 // pred_region
    _
  $region25: #{_lambda_.43} parent=0 // pred_fallthru
    _
  // Predicated region
  $region26: #{_lambda_.43} parent=0 // pred_check
    _
  $region27: #{_lambda_.43} parent=0 // pred_check_branch
    %114 = sbr.rel (0) target = $region29
  $region28: #{_lambda_.43} parent=0 // pred_region
    _
  $region29: #{_lambda_.43} parent=0 // pred_fallthru
    _

// kernel: _lambda_.44
$region0: #{_lambda_.44}
  #allocation0 [shape = 'u32[]', space=smem, size = 0x4, offset = 0x4, fixed_abs, tag = 'smem constant byte address 0x4 - core index']
  #allocation1 [shape = 'u32[144,128]{1,0:T(1,128)}', space=vmem, size = 0x12000, scoped, tag = 'internal scratch']
  %s0 = inlined_call_operand.vmem [shape: f32[4,8,16], index: 0, kind: input, shape index: {}]
  %s1 = inlined_call_operand.vmem [shape: f32[4,6,16], index: 1, kind: input, shape index: {}]
  %s2 = inlined_call_operand.vmem [shape: f32[4,6,16], index: 2, kind: input, shape index: {}]
  %s3 = inlined_call_operand.vmem [shape: f32[4,8,16], index: 3, kind: output, shape index: {}]
  %s4 = sld [smem:[#allocation0]]
  $region22: #{_lambda_.44} parent=0
    _
  %s6 = ssub.s32 1, %s4
  %s7 = scalar_select 0, %s6, %s4
  // Predicated region
  $region2: #{_lambda_.44} parent=0 // pred_check
    _
  $region3: #{_lambda_.44} parent=0 // pred_check_branch
    %9 = sbr.rel (0) target = $region5
  $region4: #{_lambda_.44} parent=0 // pred_region
    _
  $region5: #{_lambda_.44} parent=0 // pred_fallthru
    _
  // Predicated region
  $region6: #{_lambda_.44} parent=0 // pred_check
    _
  $region7: #{_lambda_.44} parent=0 // pred_check_branch
    %11 = sbr.rel (0) target = $region9
  $region8: #{_lambda_.44} parent=0 // pred_region
    _
  $region9: #{_lambda_.44} parent=0 // pred_fallthru
    _
  // Predicated region
  $region10: #{_lambda_.44} parent=0 // pred_check
    _
  $region11: #{_lambda_.44} parent=0 // pred_check_branch
    %13 = sbr.rel (0) target = $region13
  $region12: #{_lambda_.44} parent=0 // pred_region
    _
  $region13: #{_lambda_.44} parent=0 // pred_fallthru
    _
  %v15 = vld [vmem:[%s0] sm:$0xff]
  %v16 = vld [vmem:[%s0 + $0x8] sm:$0xff]
  %v17 = vld [vmem:[%s0 + $0x10] sm:$0xff]
  %v18 = vld [vmem:[%s0 + $0x18] sm:$0xff]
  %v19 = vpack.c.bf16 %v15, %v15
  %v20 = vpack.c.bf16 %v16, %v16
  %v21 = vpack.c.bf16 %v17, %v17
  %v22 = vpack.c.bf16 %v18, %v18
  %v23 = vld [vmem:[%s1] sm:$0x3f]
  %v24 = vld [vmem:[%s1 + $0x8] sm:$0x3f]
  %v25 = vld [vmem:[%s1 + $0x10] sm:$0x3f]
  %v26 = vld [vmem:[%s1 + $0x18] sm:$0x3f]
  %v27 = vpack.c.bf16 %v23, %v23
  %v28 = vpack.c.bf16 %v24, %v24
  %v29 = vpack.c.bf16 %v25, %v25
  %v30 = vpack.c.bf16 %v26, %v26
  %v31 = vld [vmem:[%s2] sm:$0x3f]
  %v32 = vld [vmem:[%s2 + $0x8] sm:$0x3f]
  %v33 = vld [vmem:[%s2 + $0x10] sm:$0x3f]
  %v34 = vld [vmem:[%s2 + $0x18] sm:$0x3f]
  %v35 = vpack.c.bf16 %v31, %v31
  %v36 = vpack.c.bf16 %v32, %v32
  %v37 = vpack.c.bf16 %v33, %v33
  %v38 = vpack.c.bf16 %v34, %v34
  %vm39 = vcmask 130048
  %v41 = vsel %vm39, %v19, 0
  %v44 = vsel %vm39, %v27, 0
  %46 = vmatprep.subr.bf16.mxu0 0
  %47 = vmatpush1.bf16.xpose.msra.mxu0 %v44
  %48 = vmatprep.subr.bf16.mxu0 0
  %49 = vmatpush1.bf16.xpose.msra.mxu0 0
  %50 = vmatprep.subr.bf16.mxu0 0
  %51 = vmatpush1.bf16.xpose.msra.mxu0 0
  %52 = vmatprep.subr.bf16.mxu0 0
  %53 = vmatpush1.bf16.xpose.msra.mxu0 0
  %54 = vmatprep.subr.bf16.mxu0 0
  %55 = vmatpush1.bf16.xpose.msra.mxu0 0
  %56 = vmatprep.subr.bf16.mxu0 0
  %57 = vmatpush1.bf16.xpose.msra.mxu0 0
  %58 = vmatprep.subr.bf16.mxu0 0
  %59 = vmatpush1.bf16.xpose.msra.mxu0 0
  %60 = vmatprep.subr.bf16.mxu0 0
  %61 = vmatpush1.bf16.xpose.msra.mxu0 0
  %62 = vmatprep.subr.bf16.mxu0 0
  %63 = vmatpush1.bf16.xpose.msra.mxu0 0
  %64 = vmatprep.subr.bf16.mxu0 0
  %65 = vmatpush1.bf16.xpose.msra.mxu0 0
  %66 = vmatprep.subr.bf16.mxu0 0
  %67 = vmatpush1.bf16.xpose.msra.mxu0 0
  %68 = vmatprep.subr.bf16.mxu0 0
  %69 = vmatpush1.bf16.xpose.msra.mxu0 0
  %70 = vmatprep.subr.bf16.mxu0 0
  %71 = vmatpush1.bf16.xpose.msra.mxu0 0
  %72 = vmatprep.subr.bf16.mxu0 0
  %73 = vmatpush1.bf16.xpose.msra.mxu0 0
  %74 = vmatprep.subr.bf16.mxu0 0
  %75 = vmatpush1.bf16.xpose.msra.mxu0 0
  %76 = vmatprep.subr.bf16.mxu0 0
  %77 = vmatpush1.bf16.xpose.msra.mxu0 0
  %78 = vmatprep.mubr.bf16.mxu0 0
  %79 = vmatmul.mubr.bf16.gmra.mrb[0].mxu0 %v41
  %v80 = vpop.f32.mrb[0].mxu0
  %v81 = vadd.f32 0.0, %v80
  %v82 = vpop.f32.mrb[0].mxu0
  %v83 = vpop.f32.mrb[0].mxu0
  %v84 = vpop.f32.mrb[0].mxu0
  %85 = vdwg.mxu0
  %v87 = vsel %vm39, %v20, 0
  %v90 = vsel %vm39, %v28, 0
  %92 = vmatprep.subr.bf16.mxu0 0
  %93 = vmatpush1.bf16.xpose.msra.mxu0 %v90
  %94 = vmatprep.subr.bf16.mxu0 0
  %95 = vmatpush1.bf16.xpose.msra.mxu0 0
  %96 = vmatprep.subr.bf16.mxu0 0
  %97 = vmatpush1.bf16.xpose.msra.mxu0 0
  %98 = vmatprep.subr.bf16.mxu0 0
  %99 = vmatpush1.bf16.xpose.msra.mxu0 0
  %100 = vmatprep.subr.bf16.mxu0 0
  %101 = vmatpush1.bf16.xpose.msra.mxu0 0
  %102 = vmatprep.subr.bf16.mxu0 0
  %103 = vmatpush1.bf16.xpose.msra.mxu0 0
  %104 = vmatprep.subr.bf16.mxu0 0
  %105 = vmatpush1.bf16.xpose.msra.mxu0 0
  %106 = vmatprep.subr.bf16.mxu0 0
  %107 = vmatpush1.bf16.xpose.msra.mxu0 0
  %108 = vmatprep.subr.bf16.mxu0 0
  %109 = vmatpush1.bf16.xpose.msra.mxu0 0
  %110 = vmatprep.subr.bf16.mxu0 0
  %111 = vmatpush1.bf16.xpose.msra.mxu0 0
  %112 = vmatprep.subr.bf16.mxu0 0
  %113 = vmatpush1.bf16.xpose.msra.mxu0 0
  %114 = vmatprep.subr.bf16.mxu0 0
  %115 = vmatpush1.bf16.xpose.msra.mxu0 0
  %116 = vmatprep.subr.bf16.mxu0 0
  %117 = vmatpush1.bf16.xpose.msra.mxu0 0
  %118 = vmatprep.subr.bf16.mxu0 0
  %119 = vmatpush1.bf16.xpose.msra.mxu0 0
  %120 = vmatprep.subr.bf16.mxu0 0
  %121 = vmatpush1.bf16.xpose.msra.mxu0 0
  %122 = vmatprep.subr.bf16.mxu0 0
  %123 = vmatpush1.bf16.xpose.msra.mxu0 0
  %124 = vmatprep.mubr.bf16.mxu0 0
  %125 = vmatmul.mubr.bf16.gmra.mrb[0].mxu0 %v87
  %v126 = vpop.f32.mrb[0].mxu0
  %v127 = vadd.f32 0.0, %v126
  %v128 = vpop.f32.mrb[0].mxu0
  %v129 = vpop.f32.mrb[0].mxu0
  %v130 = vpop.f32.mrb[0].mxu0
  %131 = vdwg.mxu0
  %v133 = vsel %vm39, %v21, 0
  %v136 = vsel %vm39, %v29, 0
  %138 = vmatprep.subr.bf16.mxu0 0
  %139 = vmatpush1.bf16.xpose.msra.mxu0 %v136
  %140 = vmatprep.subr.bf16.mxu0 0
  %141 = vmatpush1.bf16.xpose.msra.mxu0 0
  %142 = vmatprep.subr.bf16.mxu0 0
  %143 = vmatpush1.bf16.xpose.msra.mxu0 0
  %144 = vmatprep.subr.bf16.mxu0 0
  %145 = vmatpush1.bf16.xpose.msra.mxu0 0
  %146 = vmatprep.subr.bf16.mxu0 0
  %147 = vmatpush1.bf16.xpose.msra.mxu0 0
  %148 = vmatprep.subr.bf16.mxu0 0
  %149 = vmatpush1.bf16.xpose.msra.mxu0 0
  %150 = vmatprep.subr.bf16.mxu0 0
  %151 = vmatpush1.bf16.xpose.msra.mxu0 0
  %152 = vmatprep.subr.bf16.mxu0 0
  %153 = vmatpush1.bf16.xpose.msra.mxu0 0
  %154 = vmatprep.subr.bf16.mxu0 0
  %155 = vmatpush1.bf16.xpose.msra.mxu0 0
  %156 = vmatprep.subr.bf16.mxu0 0
  %157 = vmatpush1.bf16.xpose.msra.mxu0 0
  %158 = vmatprep.subr.bf16.mxu0 0
  %159 = vmatpush1.bf16.xpose.msra.mxu0 0
  %160 = vmatprep.subr.bf16.mxu0 0
  %161 = vmatpush1.bf16.xpose.msra.mxu0 0
  %162 = vmatprep.subr.bf16.mxu0 0
  %163 = vmatpush1.bf16.xpose.msra.mxu0 0
  %164 = vmatprep.subr.bf16.mxu0 0
  %165 = vmatpush1.bf16.xpose.msra.mxu0 0
  %166 = vmatprep.subr.bf16.mxu0 0
  %167 = vmatpush1.bf16.xpose.msra.mxu0 0
  %168 = vmatprep.subr.bf16.mxu0 0
  %169 = vmatpush1.bf16.xpose.msra.mxu0 0
  %170 = vmatprep.mubr.bf16.mxu0 0
  %171 = vmatmul.mubr.bf16.gmra.mrb[0].mxu0 %v133
  %v172 = vpop.f32.mrb[0].mxu0
  %v173 = vadd.f32 0.0, %v172
  %v174 = vpop.f32.mrb[0].mxu0
  %v175 = vpop.f32.mrb[0].mxu0
  %v176 = vpop.f32.mrb[0].mxu0
  %177 = vdwg.mxu0
  %v179 = vsel %vm39, %v22, 0
  %v182 = vsel %vm39, %v30, 0
  %184 = vmatprep.subr.bf16.mxu0 0
  %185 = vmatpush1.bf16.xpose.msra.mxu0 %v182
  %186 = vmatprep.subr.bf16.mxu0 0
  %187 = vmatpush1.bf16.xpose.msra.mxu0 0
  %188 = vmatprep.subr.bf16.mxu0 0
  %189 = vmatpush1.bf16.xpose.msra.mxu0 0
  %190 = vmatprep.subr.bf16.mxu0 0
  %191 = vmatpush1.bf16.xpose.msra.mxu0 0
  %192 = vmatprep.subr.bf16.mxu0 0
  %193 = vmatpush1.bf16.xpose.msra.mxu0 0
  %194 = vmatprep.subr.bf16.mxu0 0
  %195 = vmatpush1.bf16.xpose.msra.mxu0 0
  %196 = vmatprep.subr.bf16.mxu0 0
  %197 = vmatpush1.bf16.xpose.msra.mxu0 0
  %198 = vmatprep.subr.bf16.mxu0 0
  %199 = vmatpush1.bf16.xpose.msra.mxu0 0
  %200 = vmatprep.subr.bf16.mxu0 0
  %201 = vmatpush1.bf16.xpose.msra.mxu0 0
  %202 = vmatprep.subr.bf16.mxu0 0
  %203 = vmatpush1.bf16.xpose.msra.mxu0 0
  %204 = vmatprep.subr.bf16.mxu0 0
  %205 = vmatpush1.bf16.xpose.msra.mxu0 0
  %206 = vmatprep.subr.bf16.mxu0 0
  %207 = vmatpush1.bf16.xpose.msra.mxu0 0
  %208 = vmatprep.subr.bf16.mxu0 0
  %209 = vmatpush1.bf16.xpose.msra.mxu0 0
  %210 = vmatprep.subr.bf16.mxu0 0
  %211 = vmatpush1.bf16.xpose.msra.mxu0 0
  %212 = vmatprep.subr.bf16.mxu0 0
  %213 = vmatpush1.bf16.xpose.msra.mxu0 0
  %214 = vmatprep.subr.bf16.mxu0 0
  %215 = vmatpush1.bf16.xpose.msra.mxu0 0
  %216 = vmatprep.mubr.bf16.mxu0 0
  %217 = vmatmul.mubr.bf16.gmra.mrb[0].mxu0 %v179
  %v218 = vpop.f32.mrb[0].mxu0
  %v219 = vadd.f32 0.0, %v218
  %v220 = vpop.f32.mrb[0].mxu0
  %v221 = vpop.f32.mrb[0].mxu0
  %v222 = vpop.f32.mrb[0].mxu0
  %223 = vdwg.mxu0
  %v224 = vmul.f32 %v81, 0.25
  %v225 = vmul.f32 %v127, 0.25
  %v226 = vmul.f32 %v173, 0.25
  %v227 = vmul.f32 %v219, 0.25
  %vm228 = vcmask 48128
  %v229 = vsel %vm228, %v224, -inf
  %230 = vmax.xlane.f32.xlu0 %v229
  %v231 = vpop.xlane.xlu0 %230
  %v232 = vsel %vm228, %v225, -inf
  %233 = vmax.xlane.f32.xlu0 %v232
  %v234 = vpop.xlane.xlu0 %233
  %v235 = vsel %vm228, %v226, -inf
  %236 = vmax.xlane.f32.xlu0 %v235
  %v237 = vpop.xlane.xlu0 %236
  %v238 = vsel %vm228, %v227, -inf
  %239 = vmax.xlane.f32.xlu0 %v238
  %v240 = vpop.xlane.xlu0 %239
  %v241 = vsub.f32 %v224, %v231
  %v242 = vsub.f32 %v225, %v234
  %v243 = vsub.f32 %v226, %v237
  %v244 = vsub.f32 %v227, %v240
  %v245 = vmul.f32 %v241, 1.442695
  %v246 = vpow.pop %v245
  %v247 = vmul.f32 %v242, 1.442695
  %v248 = vpow.pop %v247
  %v249 = vmul.f32 %v243, 1.442695
  %v250 = vpow.pop %v249
  %v251 = vmul.f32 %v244, 1.442695
  %v252 = vpow.pop %v251
  %v253 = vsel %vm228, %v246, 0.0
  %254 = vadd.xlane.f32.xlu0 %v253
  %v255 = vpop.xlane.xlu0 %254
  %v256 = vsel %vm228, %v248, 0.0
  %257 = vadd.xlane.f32.xlu0 %v256
  %v258 = vpop.xlane.xlu0 %257
  %v259 = vsel %vm228, %v250, 0.0
  %260 = vadd.xlane.f32.xlu0 %v259
  %v261 = vpop.xlane.xlu0 %260
  %v262 = vsel %vm228, %v252, 0.0
  %263 = vadd.xlane.f32.xlu0 %v262
  %v264 = vpop.xlane.xlu0 %263
  %v265 = vpack.c.bf16 %v246, %v246
  %v266 = vpack.c.bf16 %v248, %v248
  %v267 = vpack.c.bf16 %v250, %v250
  %v268 = vpack.c.bf16 %v252, %v252
  %v270 = vsel %vm228, %v265, 0
  %vm272 = vcmask 1042432
  %v274 = vsel %vm272, %v35, 0
  %276 = vmatprep.subr.bf16.mxu0 0
  %277 = vmatpush1.bf16.msra.mxu0 %v274
  %278 = vmatprep.subr.bf16.mxu0 0
  %279 = vmatpush1.bf16.msra.mxu0 0
  %280 = vmatprep.subr.bf16.mxu0 0
  %281 = vmatpush1.bf16.msra.mxu0 0
  %282 = vmatprep.subr.bf16.mxu0 0
  %283 = vmatpush1.bf16.msra.mxu0 0
  %284 = vmatprep.subr.bf16.mxu0 0
  %285 = vmatpush1.bf16.msra.mxu0 0
  %286 = vmatprep.subr.bf16.mxu0 0
  %287 = vmatpush1.bf16.msra.mxu0 0
  %288 = vmatprep.subr.bf16.mxu0 0
  %289 = vmatpush1.bf16.msra.mxu0 0
  %290 = vmatprep.subr.bf16.mxu0 0
  %291 = vmatpush1.bf16.msra.mxu0 0
  %292 = vmatprep.subr.bf16.mxu0 0
  %293 = vmatpush1.bf16.msra.mxu0 0
  %294 = vmatprep.subr.bf16.mxu0 0
  %295 = vmatpush1.bf16.msra.mxu0 0
  %296 = vmatprep.subr.bf16.mxu0 0
  %297 = vmatpush1.bf16.msra.mxu0 0
  %298 = vmatprep.subr.bf16.mxu0 0
  %299 = vmatpush1.bf16.msra.mxu0 0
  %300 = vmatprep.subr.bf16.mxu0 0
  %301 = vmatpush1.bf16.msra.mxu0 0
  %302 = vmatprep.subr.bf16.mxu0 0
  %303 = vmatpush1.bf16.msra.mxu0 0
  %304 = vmatprep.subr.bf16.mxu0 0
  %305 = vmatpush1.bf16.msra.mxu0 0
  %306 = vmatprep.subr.bf16.mxu0 0
  %307 = vmatpush1.bf16.msra.mxu0 0
  %308 = vmatprep.mubr.bf16.mxu0 0
  %309 = vmatmul.mubr.bf16.gmra.mrb[0].mxu0 %v270
  %v310 = vpop.f32.mrb[0].mxu0
  %v311 = vadd.f32 0.0, %v310
  %v312 = vpop.f32.mrb[0].mxu0
  %v313 = vpop.f32.mrb[0].mxu0
  %v314 = vpop.f32.mrb[0].mxu0
  %315 = vdwg.mxu0
  %v317 = vsel %vm228, %v266, 0
  %v320 = vsel %vm272, %v36, 0
  %322 = vmatprep.subr.bf16.mxu0 0
  %323 = vmatpush1.bf16.msra.mxu0 %v320
  %324 = vmatprep.subr.bf16.mxu0 0
  %325 = vmatpush1.bf16.msra.mxu0 0
  %326 = vmatprep.subr.bf16.mxu0 0
  %327 = vmatpush1.bf16.msra.mxu0 0
  %328 = vmatprep.subr.bf16.mxu0 0
  %329 = vmatpush1.bf16.msra.mxu0 0
  %330 = vmatprep.subr.bf16.mxu0 0
  %331 = vmatpush1.bf16.msra.mxu0 0
  %332 = vmatprep.subr.bf16.mxu0 0
  %333 = vmatpush1.bf16.msra.mxu0 0
  %334 = vmatprep.subr.bf16.mxu0 0
  %335 = vmatpush1.bf16.msra.mxu0 0
  %336 = vmatprep.subr.bf16.mxu0 0
  %337 = vmatpush1.bf16.msra.mxu0 0
  %338 = vmatprep.subr.bf16.mxu0 0
  %339 = vmatpush1.bf16.msra.mxu0 0
  %340 = vmatprep.subr.bf16.mxu0 0
  %341 = vmatpush1.bf16.msra.mxu0 0
  %342 = vmatprep.subr.bf16.mxu0 0
  %343 = vmatpush1.bf16.msra.mxu0 0
  %344 = vmatprep.subr.bf16.mxu0 0
  %345 = vmatpush1.bf16.msra.mxu0 0
  %346 = vmatprep.subr.bf16.mxu0 0
  %347 = vmatpush1.bf16.msra.mxu0 0
  %348 = vmatprep.subr.bf16.mxu0 0
  %349 = vmatpush1.bf16.msra.mxu0 0
  %350 = vmatprep.subr.bf16.mxu0 0
  %351 = vmatpush1.bf16.msra.mxu0 0
  %352 = vmatprep.subr.bf16.mxu0 0
  %353 = vmatpush1.bf16.msra.mxu0 0
  %354 = vmatprep.mubr.bf16.mxu0 0
  %355 = vmatmul.mubr.bf16.gmra.mrb[0].mxu0 %v317
  %v356 = vpop.f32.mrb[0].mxu0
  %v357 = vadd.f32 0.0, %v356
  %v358 = vpop.f32.mrb[0].mxu0
  %v359 = vpop.f32.mrb[0].mxu0
  %v360 = vpop.f32.mrb[0].mxu0
  %361 = vdwg.mxu0
  %v363 = vsel %vm228, %v267, 0
  %v366 = vsel %vm272, %v37, 0
  %368 = vmatprep.subr.bf16.mxu0 0
  %369 = vmatpush1.bf16.msra.mxu0 %v366
  %370 = vmatprep.subr.bf16.mxu0 0
  %371 = vmatpush1.bf16.msra.mxu0 0
  %372 = vmatprep.subr.bf16.mxu0 0
  %373 = vmatpush1.bf16.msra.mxu0 0
  %374 = vmatprep.subr.bf16.mxu0 0
  %375 = vmatpush1.bf16.msra.mxu0 0
  %376 = vmatprep.subr.bf16.mxu0 0
  %377 = vmatpush1.bf16.msra.mxu0 0
  %378 = vmatprep.subr.bf16.mxu0 0
  %379 = vmatpush1.bf16.msra.mxu0 0
  %380 = vmatprep.subr.bf16.mxu0 0
  %381 = vmatpush1.bf16.msra.mxu0 0
  %382 = vmatprep.subr.bf16.mxu0 0
  %383 = vmatpush1.bf16.msra.mxu0 0
  %384 = vmatprep.subr.bf16.mxu0 0
  %385 = vmatpush1.bf16.msra.mxu0 0
  %386 = vmatprep.subr.bf16.mxu0 0
  %387 = vmatpush1.bf16.msra.mxu0 0
  %388 = vmatprep.subr.bf16.mxu0 0
  %389 = vmatpush1.bf16.msra.mxu0 0
  %390 = vmatprep.subr.bf16.mxu0 0
  %391 = vmatpush1.bf16.msra.mxu0 0
  %392 = vmatprep.subr.bf16.mxu0 0
  %393 = vmatpush1.bf16.msra.mxu0 0
  %394 = vmatprep.subr.bf16.mxu0 0
  %395 = vmatpush1.bf16.msra.mxu0 0
  %396 = vmatprep.subr.bf16.mxu0 0
  %397 = vmatpush1.bf16.msra.mxu0 0
  %398 = vmatprep.subr.bf16.mxu0 0
  %399 = vmatpush1.bf16.msra.mxu0 0
  %400 = vmatprep.mubr.bf16.mxu0 0
  %401 = vmatmul.mubr.bf16.gmra.mrb[0].mxu0 %v363
  %v402 = vpop.f32.mrb[0].mxu0
  %v403 = vadd.f32 0.0, %v402
  %v404 = vpop.f32.mrb[0].mxu0
  %v405 = vpop.f32.mrb[0].mxu0
  %v406 = vpop.f32.mrb[0].mxu0
  %407 = vdwg.mxu0
  %v409 = vsel %vm228, %v268, 0
  %v412 = vsel %vm272, %v38, 0
  %414 = vmatprep.subr.bf16.mxu0 0
  %415 = vmatpush1.bf16.msra.mxu0 %v412
  %416 = vmatprep.subr.bf16.mxu0 0
  %417 = vmatpush1.bf16.msra.mxu0 0
  %418 = vmatprep.subr.bf16.mxu0 0
  %419 = vmatpush1.bf16.msra.mxu0 0
  %420 = vmatprep.subr.bf16.mxu0 0
  %421 = vmatpush1.bf16.msra.mxu0 0
  %422 = vmatprep.subr.bf16.mxu0 0
  %423 = vmatpush1.bf16.msra.mxu0 0
  %424 = vmatprep.subr.bf16.mxu0 0
  %425 = vmatpush1.bf16.msra.mxu0 0
  %426 = vmatprep.subr.bf16.mxu0 0
  %427 = vmatpush1.bf16.msra.mxu0 0
  %428 = vmatprep.subr.bf16.mxu0 0
  %429 = vmatpush1.bf16.msra.mxu0 0
  %430 = vmatprep.subr.bf16.mxu0 0
  %431 = vmatpush1.bf16.msra.mxu0 0
  %432 = vmatprep.subr.bf16.mxu0 0
  %433 = vmatpush1.bf16.msra.mxu0 0
  %434 = vmatprep.subr.bf16.mxu0 0
  %435 = vmatpush1.bf16.msra.mxu0 0
  %436 = vmatprep.subr.bf16.mxu0 0
  %437 = vmatpush1.bf16.msra.mxu0 0
  %438 = vmatprep.subr.bf16.mxu0 0
  %439 = vmatpush1.bf16.msra.mxu0 0
  %440 = vmatprep.subr.bf16.mxu0 0
  %441 = vmatpush1.bf16.msra.mxu0 0
  %442 = vmatprep.subr.bf16.mxu0 0
  %443 = vmatpush1.bf16.msra.mxu0 0
  %444 = vmatprep.subr.bf16.mxu0 0
  %445 = vmatpush1.bf16.msra.mxu0 0
  %446 = vmatprep.mubr.bf16.mxu0 0
  %447 = vmatmul.mubr.bf16.gmra.mrb[0].mxu0 %v409
  %v448 = vpop.f32.mrb[0].mxu0
  %v449 = vadd.f32 0.0, %v448
  %v450 = vpop.f32.mrb[0].mxu0
  %v451 = vpop.f32.mrb[0].mxu0
  %v452 = vpop.f32.mrb[0].mxu0
  %453 = vdwg.mxu0
  %v454 = vrcp.pop %v255
  %v455 = vrcp.pop %v258
  %v456 = vrcp.pop %v261
  %v457 = vrcp.pop %v264
  %v458 = vmul.f32 %v311, %v454
  %v459 = vmul.f32 %v357, %v455
  %v460 = vmul.f32 %v403, %v456
  %v461 = vmul.f32 %v449, %v457
  %462 = vst.msk [vmem:[%s3] sm:$0xff] %vm39, %v458
  %463 = vst.msk [vmem:[%s3 + $0x8] sm:$0xff] %vm39, %v459
  %464 = vst.msk [vmem:[%s3 + $0x10] sm:$0xff] %vm39, %v460
  %465 = vst.msk [vmem:[%s3 + $0x18] sm:$0xff] %vm39, %v461
  // Predicated region
  $region14: #{_lambda_.44} parent=0 // pred_check
    _
  $region15: #{_lambda_.44} parent=0 // pred_check_branch
    %467 = sbr.rel (0) target = $region17
  $region16: #{_lambda_.44} parent=0 // pred_region
    _
  $region17: #{_lambda_.44} parent=0 // pred_fallthru
    _
  // Predicated region
  $region18: #{_lambda_.44} parent=0 // pred_check
    _
  $region19: #{_lambda_.44} parent=0 // pred_check_branch
    %469 = sbr.rel (0) target = $region21
  $region20: #{_lambda_.44} parent=0 // pred_region
    _
  $region21: #{_lambda_.44} parent=0 // pred_fallthru
    _

// kernel: _lambda_.46
$region0: #{_lambda_.46}
  #allocation0 [shape = 'u32[]', space=smem, size = 0x4, offset = 0x4, fixed_abs, tag = 'smem constant byte address 0x4 - core index']
  #allocation1 [shape = 'u32[144,128]{1,0:T(1,128)}', space=vmem, size = 0x12000, scoped, tag = 'internal scratch']
  %s0 = inlined_call_operand.vmem [shape: f32[16,32], index: 0, kind: input, shape index: {}, may-alias: {0,7}]
  %s1 = inlined_call_operand.vmem [shape: f32[1,32], index: 1, kind: input, shape index: {}]
  %s2 = inlined_call_operand.vmem [shape: f32[1,32], index: 2, kind: input, shape index: {}]
  %s3 = inlined_call_operand.vmem [shape: bf16[32,64], index: 3, kind: input, shape index: {}]
  %s4 = inlined_call_operand.vmem [shape: f32[1,64], index: 4, kind: input, shape index: {}]
  %s5 = inlined_call_operand.vmem [shape: bf16[64,32], index: 5, kind: input, shape index: {}]
  %s6 = inlined_call_operand.vmem [shape: f32[1,32], index: 6, kind: input, shape index: {}]
  %s7 = inlined_call_operand.vmem [shape: f32[16,32], index: 7, kind: input, shape index: {}, may-alias: {0,7}]
  %s8 = inlined_call_operand.vmem [shape: f32[16,32], index: 8, kind: output, shape index: {}]
  %s9 = sld [smem:[#allocation0]]
  $region42: #{_lambda_.46} parent=0
    _
  %s11 = ssub.s32 1, %s9
  %s12 = scalar_select 0, %s11, %s9
  // Predicated region
  $region2: #{_lambda_.46} parent=0 // pred_check
    _
  $region3: #{_lambda_.46} parent=0 // pred_check_branch
    %14 = sbr.rel (0) target = $region5
  $region4: #{_lambda_.46} parent=0 // pred_region
    _
  $region5: #{_lambda_.46} parent=0 // pred_fallthru
    _
  // Predicated region
  $region6: #{_lambda_.46} parent=0 // pred_check
    _
  $region7: #{_lambda_.46} parent=0 // pred_check_branch
    %16 = sbr.rel (0) target = $region9
  $region8: #{_lambda_.46} parent=0 // pred_region
    _
  $region9: #{_lambda_.46} parent=0 // pred_fallthru
    _
  // Predicated region
  $region10: #{_lambda_.46} parent=0 // pred_check
    _
  $region11: #{_lambda_.46} parent=0 // pred_check_branch
    %18 = sbr.rel (0) target = $region13
  $region12: #{_lambda_.46} parent=0 // pred_region
    _
  $region13: #{_lambda_.46} parent=0 // pred_fallthru
    _
  // Predicated region
  $region14: #{_lambda_.46} parent=0 // pred_check
    _
  $region15: #{_lambda_.46} parent=0 // pred_check_branch
    %20 = sbr.rel (0) target = $region17
  $region16: #{_lambda_.46} parent=0 // pred_region
    _
  $region17: #{_lambda_.46} parent=0 // pred_fallthru
    _
  // Predicated region
  $region18: #{_lambda_.46} parent=0 // pred_check
    _
  $region19: #{_lambda_.46} parent=0 // pred_check_branch
    %22 = sbr.rel (0) target = $region21
  $region20: #{_lambda_.46} parent=0 // pred_region
    _
  $region21: #{_lambda_.46} parent=0 // pred_fallthru
    _
  // Predicated region
  $region22: #{_lambda_.46} parent=0 // pred_check
    _
  $region23: #{_lambda_.46} parent=0 // pred_check_branch
    %24 = sbr.rel (0) target = $region25
  $region24: #{_lambda_.46} parent=0 // pred_region
    _
  $region25: #{_lambda_.46} parent=0 // pred_fallthru
    _
  // Predicated region
  $region26: #{_lambda_.46} parent=0 // pred_check
    _
  $region27: #{_lambda_.46} parent=0 // pred_check_branch
    %26 = sbr.rel (0) target = $region29
  $region28: #{_lambda_.46} parent=0 // pred_region
    _
  $region29: #{_lambda_.46} parent=0 // pred_fallthru
    _
  // Predicated region
  $region30: #{_lambda_.46} parent=0 // pred_check
    _
  $region31: #{_lambda_.46} parent=0 // pred_check_branch
    %28 = sbr.rel (0) target = $region33
  $region32: #{_lambda_.46} parent=0 // pred_region
    _
  $region33: #{_lambda_.46} parent=0 // pred_fallthru
    _
  %v30 = vld [vmem:[%s0] sm:$0xff]
  %v31 = vld [vmem:[%s0 + $0x8] sm:$0xff]
  %vm32 = vcmask 261120
  %v33 = vsel %vm32, %v30, 0.0
  %34 = vadd.xlane.f32.xlu0 %v33
  %v35 = vpop.xlane.xlu0 %34
  %v36 = vsel %vm32, %v31, 0.0
  %37 = vadd.xlane.f32.xlu0 %v36
  %v38 = vpop.xlane.xlu0 %37
  %v39 = vrcp.pop 32.0
  %v40 = vmul.f32 %v35, %v39
  %v41 = vmul.f32 %v38, %v39
  %v42 = vsub.f32 %v30, %v40
  %v43 = vsub.f32 %v31, %v41
  %v44 = vmul.f32 %v42, %v42
  %v45 = vmul.f32 %v43, %v43
  %v46 = vsel %vm32, %v44, 0.0
  %47 = vadd.xlane.f32.xlu0 %v46
  %v48 = vpop.xlane.xlu0 %47
  %v49 = vsel %vm32, %v45, 0.0
  %50 = vadd.xlane.f32.xlu0 %v49
  %v51 = vpop.xlane.xlu0 %50
  %v52 = vmul.f32 %v48, %v39
  %v53 = vmul.f32 %v51, %v39
  %v54 = vadd.f32 %v52, 1e-05
  %v55 = vadd.f32 %v53, 1e-05
  %v56 = vrsqrt.pop %v54
  %v57 = vrsqrt.pop %v55
  %v58 = vmul.f32 %v42, %v56
  %v59 = vmul.f32 %v43, %v57
  %v60 = vld [vmem:[%s1] sm:$0x1]
  %v62 = vlaneseq
  %v63 = vshrl.u32 %v62, 7
  %v64 = vsub.s32 0, %v63
  %v65 = vrot.slane %v60, %v64
  %v67 = vmul.f32 %v58, %v65
  %v68 = vmul.f32 %v59, %v65
  %v69 = vld [vmem:[%s2] sm:$0x1]
  %v71 = vlaneseq
  %v72 = vshrl.u32 %v71, 7
  %v73 = vsub.s32 0, %v72
  %v74 = vrot.slane %v69, %v73
  %v76 = vadd.f32 %v67, %v74
  %v77 = vadd.f32 %v68, %v74
  %v78 = vpack.c.bf16 %v77, %v76
  %v79 = vld [vmem:[%s3] sm:$0xf]
  %v80 = vld [vmem:[%s3 + $0x4] sm:$0xf]
  %v81 = vld [vmem:[%s3 + $0x8] sm:$0xf]
  %v82 = vld [vmem:[%s3 + $0xc] sm:$0xf]
  %v83 = vld [vmem:[%s4] sm:$0x1]
  %v85 = vlaneseq
  %v86 = vshrl.u32 %v85, 7
  %v87 = vsub.s32 0, %v86
  %v88 = vrot.slane %v83, %v87
  %v94 = vunpack.c.l.b16 %v79
  %v95 = vunpack.c.l.b16 %v80
  %v96 = vunpack.c.l.b16 %v81
  %v97 = vunpack.c.l.b16 %v82
  %v98 = vpack.c.b16 %v95, %v94
  %v99 = vpack.c.b16 %v97, %v96
  %v103 = vsel %vm32, %v78, 0
  %105 = vmatprep.subr.bf16.mxu0 0
  %106 = vmatpush1.bf16.msra.mxu0 %v98
  %107 = vmatprep.subr.bf16.mxu0 0
  %108 = vmatpush1.bf16.msra.mxu0 %v99
  %109 = vmatprep.subr.bf16.mxu0 0
  %110 = vmatpush1.bf16.msra.mxu0 0
  %111 = vmatprep.subr.bf16.mxu0 0
  %112 = vmatpush1.bf16.msra.mxu0 0
  %113 = vmatprep.subr.bf16.mxu0 0
  %114 = vmatpush1.bf16.msra.mxu0 0
  %115 = vmatprep.subr.bf16.mxu0 0
  %116 = vmatpush1.bf16.msra.mxu0 0
  %117 = vmatprep.subr.bf16.mxu0 0
  %118 = vmatpush1.bf16.msra.mxu0 0
  %119 = vmatprep.subr.bf16.mxu0 0
  %120 = vmatpush1.bf16.msra.mxu0 0
  %121 = vmatprep.subr.bf16.mxu0 0
  %122 = vmatpush1.bf16.msra.mxu0 0
  %123 = vmatprep.subr.bf16.mxu0 0
  %124 = vmatpush1.bf16.msra.mxu0 0
  %125 = vmatprep.subr.bf16.mxu0 0
  %126 = vmatpush1.bf16.msra.mxu0 0
  %127 = vmatprep.subr.bf16.mxu0 0
  %128 = vmatpush1.bf16.msra.mxu0 0
  %129 = vmatprep.subr.bf16.mxu0 0
  %130 = vmatpush1.bf16.msra.mxu0 0
  %131 = vmatprep.subr.bf16.mxu0 0
  %132 = vmatpush1.bf16.msra.mxu0 0
  %133 = vmatprep.subr.bf16.mxu0 0
  %134 = vmatpush1.bf16.msra.mxu0 0
  %135 = vmatprep.subr.bf16.mxu0 0
  %136 = vmatpush1.bf16.msra.mxu0 0
  %137 = vmatprep.mubr.bf16.mxu0 0
  %138 = vmatmul.mubr.bf16.gmra.mrb[0].mxu0 %v103
  %v139 = vpop.f32.mrb[0].mxu0
  %v140 = vadd.f32 %v88, %v139
  %v141 = vpop.f32.mrb[0].mxu0
  %v142 = vpop.f32.mrb[0].mxu0
  %v143 = vadd.f32 %v88, %v142
  %v144 = vpop.f32.mrb[0].mxu0
  %145 = vdwg.mxu0
  %v146 = vmax.f32 %v140, 0.0
  %v147 = vmax.f32 %v143, 0.0
  %v148 = vpack.c.bf16 %v147, %v146
  %v149 = vld [vmem:[%s5] sm:$0xf]
  %v150 = vld [vmem:[%s5 + $0x4] sm:$0xf]
  %v151 = vld [vmem:[%s5 + $0x8] sm:$0xf]
  %v152 = vld [vmem:[%s5 + $0xc] sm:$0xf]
  %v153 = vld [vmem:[%s5 + $0x10] sm:$0xf]
  %v154 = vld [vmem:[%s5 + $0x14] sm:$0xf]
  %v155 = vld [vmem:[%s5 + $0x18] sm:$0xf]
  %v156 = vld [vmem:[%s5 + $0x1c] sm:$0xf]
  %v157 = vld [vmem:[%s6] sm:$0x1]
  %v159 = vlaneseq
  %v160 = vshrl.u32 %v159, 7
  %v161 = vsub.s32 0, %v160
  %v162 = vrot.slane %v157, %v161
  %v172 = vunpack.c.l.b16 %v149
  %v173 = vunpack.c.l.b16 %v150
  %v174 = vunpack.c.l.b16 %v151
  %v175 = vunpack.c.l.b16 %v152
  %v176 = vunpack.c.l.b16 %v153
  %v177 = vunpack.c.l.b16 %v154
  %v178 = vunpack.c.l.b16 %v155
  %v179 = vunpack.c.l.b16 %v156
  %v180 = vpack.c.b16 %v173, %v172
  %v181 = vpack.c.b16 %v175, %v174
  %v182 = vpack.c.b16 %v177, %v176
  %v183 = vpack.c.b16 %v179, %v178
  %vm188 = vcmask 523264
  %v190 = vsel %vm188, %v148, 0
  %192 = vmatprep.subr.bf16.mxu0 0
  %193 = vmatpush1.bf16.msra.mxu0 %v180
  %194 = vmatprep.subr.bf16.mxu0 0
  %195 = vmatpush1.bf16.msra.mxu0 %v181
  %196 = vmatprep.subr.bf16.mxu0 0
  %197 = vmatpush1.bf16.msra.mxu0 %v182
  %198 = vmatprep.subr.bf16.mxu0 0
  %199 = vmatpush1.bf16.msra.mxu0 %v183
  %200 = vmatprep.subr.bf16.mxu0 0
  %201 = vmatpush1.bf16.msra.mxu0 0
  %202 = vmatprep.subr.bf16.mxu0 0
  %203 = vmatpush1.bf16.msra.mxu0 0
  %204 = vmatprep.subr.bf16.mxu0 0
  %205 = vmatpush1.bf16.msra.mxu0 0
  %206 = vmatprep.subr.bf16.mxu0 0
  %207 = vmatpush1.bf16.msra.mxu0 0
  %208 = vmatprep.subr.bf16.mxu0 0
  %209 = vmatpush1.bf16.msra.mxu0 0
  %210 = vmatprep.subr.bf16.mxu0 0
  %211 = vmatpush1.bf16.msra.mxu0 0
  %212 = vmatprep.subr.bf16.mxu0 0
  %213 = vmatpush1.bf16.msra.mxu0 0
  %214 = vmatprep.subr.bf16.mxu0 0
  %215 = vmatpush1.bf16.msra.mxu0 0
  %216 = vmatprep.subr.bf16.mxu0 0
  %217 = vmatpush1.bf16.msra.mxu0 0
  %218 = vmatprep.subr.bf16.mxu0 0
  %219 = vmatpush1.bf16.msra.mxu0 0
  %220 = vmatprep.subr.bf16.mxu0 0
  %221 = vmatpush1.bf16.msra.mxu0 0
  %222 = vmatprep.subr.bf16.mxu0 0
  %223 = vmatpush1.bf16.msra.mxu0 0
  %224 = vmatprep.mubr.bf16.mxu0 0
  %225 = vmatmul.mubr.bf16.gmra.mrb[0].mxu0 %v190
  %v226 = vpop.f32.mrb[0].mxu0
  %v227 = vadd.f32 %v162, %v226
  %v228 = vpop.f32.mrb[0].mxu0
  %v229 = vpop.f32.mrb[0].mxu0
  %v230 = vadd.f32 %v162, %v229
  %v231 = vpop.f32.mrb[0].mxu0
  %232 = vdwg.mxu0
  %v233 = vld [vmem:[%s7] sm:$0xff]
  %v234 = vld [vmem:[%s7 + $0x8] sm:$0xff]
  %v235 = vadd.f32 %v227, %v233
  %v236 = vadd.f32 %v230, %v234
  %237 = vst.msk [vmem:[%s8] sm:$0xff] %vm32, %v235
  %238 = vst.msk [vmem:[%s8 + $0x8] sm:$0xff] %vm32, %v236
  // Predicated region
  $region34: #{_lambda_.46} parent=0 // pred_check
    _
  $region35: #{_lambda_.46} parent=0 // pred_check_branch
    %240 = sbr.rel (0) target = $region37
  $region36: #{_lambda_.46} parent=0 // pred_region
    _
  $region37: #{_lambda_.46} parent=0 // pred_fallthru
    _
  // Predicated region
  $region38: #{_lambda_.46} parent=0 // pred_check
    _
  $region39: #{_lambda_.46} parent=0 // pred_check_branch
    %242 = sbr.rel (0) target = $region41
  $region40: #{_lambda_.46} parent=0 // pred_region
    _
  $region41: #{_lambda_.46} parent=0 // pred_fallthru
    _

// kernel: _lambda_.55
$region0: #{_lambda_.55}
  #allocation0 [shape = 'u32[]', space=smem, size = 0x4, offset = 0x4, fixed_abs, tag = 'smem constant byte address 0x4 - core index']
  #allocation1 [shape = 'u32[144,128]{1,0:T(1,128)}', space=vmem, size = 0x12000, scoped, tag = 'internal scratch']
  #allocation2 [shape = 'f32[1,1]{1,0:T(1,128)S(1)}', space=vmem, size = 0x200, scoped, tag = 'scoped memory for _lambda_.55']
  %s0 = inlined_call_operand.vmem [shape: f32[16,32], index: 0, kind: input, shape index: {}]
  %s1 = inlined_call_operand.vmem [shape: f32[1,32], index: 1, kind: input, shape index: {}]
  %s2 = inlined_call_operand.vmem [shape: f32[1,32], index: 2, kind: input, shape index: {}]
  %s3 = inlined_call_operand.vmem [shape: bf16[32,256], index: 3, kind: input, shape index: {}]
  %s4 = inlined_call_operand.vmem [shape: f32[1,256], index: 4, kind: input, shape index: {}]
  %s5 = inlined_call_operand.vmem [shape: bf16[256,256], index: 5, kind: input, shape index: {}]
  %s6 = inlined_call_operand.vmem [shape: f32[1,256], index: 6, kind: input, shape index: {}]
  %s7 = inlined_call_operand.vmem [shape: bf16[256,1], index: 7, kind: input, shape index: {}]
  %s8 = inlined_call_operand.<no memory space> [shape: f32[1,1], index: 8, kind: input, shape index: {}]
  %s9 = inlined_call_operand.vmem [shape: f32[16,1], index: 9, kind: output, shape index: {}]
  %s10 = sld [smem:[#allocation0]]
  $region46: #{_lambda_.55} parent=0
    _
  %s12 = ssub.s32 1, %s10
  %s13 = scalar_select 0, %s12, %s10
  %v14 = vstv %s8
  %15 = vst [vmem:[#allocation2] sm:$0x1] %v14
  // Predicated region
  $region2: #{_lambda_.55} parent=0 // pred_check
    _
  $region3: #{_lambda_.55} parent=0 // pred_check_branch
    %17 = sbr.rel (0) target = $region5
  $region4: #{_lambda_.55} parent=0 // pred_region
    _
  $region5: #{_lambda_.55} parent=0 // pred_fallthru
    _
  // Predicated region
  $region6: #{_lambda_.55} parent=0 // pred_check
    _
  $region7: #{_lambda_.55} parent=0 // pred_check_branch
    %19 = sbr.rel (0) target = $region9
  $region8: #{_lambda_.55} parent=0 // pred_region
    _
  $region9: #{_lambda_.55} parent=0 // pred_fallthru
    _
  // Predicated region
  $region10: #{_lambda_.55} parent=0 // pred_check
    _
  $region11: #{_lambda_.55} parent=0 // pred_check_branch
    %21 = sbr.rel (0) target = $region13
  $region12: #{_lambda_.55} parent=0 // pred_region
    _
  $region13: #{_lambda_.55} parent=0 // pred_fallthru
    _
  // Predicated region
  $region14: #{_lambda_.55} parent=0 // pred_check
    _
  $region15: #{_lambda_.55} parent=0 // pred_check_branch
    %23 = sbr.rel (0) target = $region17
  $region16: #{_lambda_.55} parent=0 // pred_region
    _
  $region17: #{_lambda_.55} parent=0 // pred_fallthru
    _
  // Predicated region
  $region18: #{_lambda_.55} parent=0 // pred_check
    _
  $region19: #{_lambda_.55} parent=0 // pred_check_branch
    %25 = sbr.rel (0) target = $region21
  $region20: #{_lambda_.55} parent=0 // pred_region
    _
  $region21: #{_lambda_.55} parent=0 // pred_fallthru
    _
  // Predicated region
  $region22: #{_lambda_.55} parent=0 // pred_check
    _
  $region23: #{_lambda_.55} parent=0 // pred_check_branch
    %27 = sbr.rel (0) target = $region25
  $region24: #{_lambda_.55} parent=0 // pred_region
    _
  $region25: #{_lambda_.55} parent=0 // pred_fallthru
    _
  // Predicated region
  $region26: #{_lambda_.55} parent=0 // pred_check
    _
  $region27: #{_lambda_.55} parent=0 // pred_check_branch
    %29 = sbr.rel (0) target = $region29
  $region28: #{_lambda_.55} parent=0 // pred_region
    _
  $region29: #{_lambda_.55} parent=0 // pred_fallthru
    _
  // Predicated region
  $region30: #{_lambda_.55} parent=0 // pred_check
    _
  $region31: #{_lambda_.55} parent=0 // pred_check_branch
    %31 = sbr.rel (0) target = $region33
  $region32: #{_lambda_.55} parent=0 // pred_region
    _
  $region33: #{_lambda_.55} parent=0 // pred_fallthru
    _
  // Predicated region
  $region34: #{_lambda_.55} parent=0 // pred_check
    _
  $region35: #{_lambda_.55} parent=0 // pred_check_branch
    %33 = sbr.rel (0) target = $region37
  $region36: #{_lambda_.55} parent=0 // pred_region
    _
  $region37: #{_lambda_.55} parent=0 // pred_fallthru
    _
  %v35 = vld [vmem:[%s0] sm:$0xff]
  %v36 = vld [vmem:[%s0 + $0x8] sm:$0xff]
  %vm37 = vcmask 261120
  %v38 = vsel %vm37, %v35, 0.0
  %39 = vadd.xlane.f32.xlu0 %v38
  %v40 = vpop.xlane.xlu0 %39
  %v41 = vsel %vm37, %v36, 0.0
  %42 = vadd.xlane.f32.xlu0 %v41
  %v43 = vpop.xlane.xlu0 %42
  %v44 = vrcp.pop 32.0
  %v45 = vmul.f32 %v40, %v44
  %v46 = vmul.f32 %v43, %v44
  %v47 = vsub.f32 %v35, %v45
  %v48 = vsub.f32 %v36, %v46
  %v49 = vmul.f32 %v47, %v47
  %v50 = vmul.f32 %v48, %v48
  %v51 = vsel %vm37, %v49, 0.0
  %52 = vadd.xlane.f32.xlu0 %v51
  %v53 = vpop.xlane.xlu0 %52
  %v54 = vsel %vm37, %v50, 0.0
  %55 = vadd.xlane.f32.xlu0 %v54
  %v56 = vpop.xlane.xlu0 %55
  %v57 = vmul.f32 %v53, %v44
  %v58 = vmul.f32 %v56, %v44
  %v59 = vadd.f32 %v57, 1e-05
  %v60 = vadd.f32 %v58, 1e-05
  %v61 = vrsqrt.pop %v59
  %v62 = vrsqrt.pop %v60
  %v63 = vmul.f32 %v47, %v61
  %v64 = vmul.f32 %v48, %v62
  %v65 = vld [vmem:[%s1] sm:$0x1]
  %v67 = vlaneseq
  %v68 = vshrl.u32 %v67, 7
  %v69 = vsub.s32 0, %v68
  %v70 = vrot.slane %v65, %v69
  %v72 = vmul.f32 %v63, %v70
  %v73 = vmul.f32 %v64, %v70
  %v74 = vld [vmem:[%s2] sm:$0x1]
  %v76 = vlaneseq
  %v77 = vshrl.u32 %v76, 7
  %v78 = vsub.s32 0, %v77
  %v79 = vrot.slane %v74, %v78
  %v81 = vadd.f32 %v72, %v79
  %v82 = vadd.f32 %v73, %v79
  %v83 = vpack.c.bf16 %v82, %v81
  %v84 = vld [vmem:[%s3] sm:$0xff]
  %v85 = vld [vmem:[%s3 + $0x8] sm:$0xff]
  %v86 = vld [vmem:[%s3 + $0x10] sm:$0xff]
  %v87 = vld [vmem:[%s3 + $0x18] sm:$0xff]
  %v88 = vld [vmem:[%s4] sm:$0x3]
  %v90 = vlaneseq
  %v91 = vshrl.u32 %v90, 7
  %v92 = vsub.s32 0, %v91
  %v93 = vrot.slane %v88, %v92
  %v94 = vlaneseq
  %v95 = vshrl.u32 %v94, 7
  %v96 = vsub.s32 1, %v95
  %v97 = vrot.slane %v88, %v96
  %v104 = vunpack.c.l.b16 %v84
  %v105 = vunpack.c.h.b16 %v84
  %v106 = vunpack.c.l.b16 %v85
  %v107 = vunpack.c.h.b16 %v85
  %v108 = vunpack.c.l.b16 %v86
  %v109 = vunpack.c.h.b16 %v86
  %v110 = vunpack.c.l.b16 %v87
  %v111 = vunpack.c.h.b16 %v87
  %v112 = vpack.c.b16 %v106, %v104
  %v113 = vpack.c.b16 %v107, %v105
  %v114 = vpack.c.b16 %v110, %v108
  %v115 = vpack.c.b16 %v111, %v109
  %v121 = vsel %vm37, %v83, 0
  %123 = vmatprep.subr.bf16.mxu0 %v113
  %124 = vmatpush1.bf16.msra.mxu0 %v112
  %125 = vmatprep.subr.bf16.mxu0 %v115
  %126 = vmatpush1.bf16.msra.mxu0 %v114
  %127 = vmatprep.subr.bf16.mxu0 0
  %128 = vmatpush1.bf16.msra.mxu0 0
  %129 = vmatprep.subr.bf16.mxu0 0
  %130 = vmatpush1.bf16.msra.mxu0 0
  %131 = vmatprep.subr.bf16.mxu0 0
  %132 = vmatpush1.bf16.msra.mxu0 0
  %133 = vmatprep.subr.bf16.mxu0 0
  %134 = vmatpush1.bf16.msra.mxu0 0
  %135 = vmatprep.subr.bf16.mxu0 0
  %136 = vmatpush1.bf16.msra.mxu0 0
  %137 = vmatprep.subr.bf16.mxu0 0
  %138 = vmatpush1.bf16.msra.mxu0 0
  %139 = vmatprep.subr.bf16.mxu0 0
  %140 = vmatpush1.bf16.msra.mxu0 0
  %141 = vmatprep.subr.bf16.mxu0 0
  %142 = vmatpush1.bf16.msra.mxu0 0
  %143 = vmatprep.subr.bf16.mxu0 0
  %144 = vmatpush1.bf16.msra.mxu0 0
  %145 = vmatprep.subr.bf16.mxu0 0
  %146 = vmatpush1.bf16.msra.mxu0 0
  %147 = vmatprep.subr.bf16.mxu0 0
  %148 = vmatpush1.bf16.msra.mxu0 0
  %149 = vmatprep.subr.bf16.mxu0 0
  %150 = vmatpush1.bf16.msra.mxu0 0
  %151 = vmatprep.subr.bf16.mxu0 0
  %152 = vmatpush1.bf16.msra.mxu0 0
  %153 = vmatprep.subr.bf16.mxu0 0
  %154 = vmatpush1.bf16.msra.mxu0 0
  %155 = vmatprep.mubr.bf16.mxu0 0
  %156 = vmatmul.mubr.bf16.gmra.mrb[0].mxu0 %v121
  %v157 = vpop.f32.mrb[0].mxu0
  %v158 = vadd.f32 %v93, %v157
  %v159 = vpop.f32.mrb[0].mxu0
  %v160 = vadd.f32 %v97, %v159
  %v161 = vpop.f32.mrb[0].mxu0
  %v162 = vadd.f32 %v93, %v161
  %v163 = vpop.f32.mrb[0].mxu0
  %v164 = vadd.f32 %v97, %v163
  %165 = vdwg.mxu0
  %v166 = vmax.f32 %v158, 0.0
  %v167 = vmax.f32 %v160, 0.0
  %v168 = vmax.f32 %v162, 0.0
  %v169 = vmax.f32 %v164, 0.0
  %v170 = vpack.c.bf16 %v168, %v166
  %v171 = vpack.c.bf16 %v169, %v167
  %v172 = vld [vmem:[%s5] sm:$0xff]
  %v173 = vld [vmem:[%s5 + $0x8] sm:$0xff]
  %v174 = vld [vmem:[%s5 + $0x10] sm:$0xff]
  %v175 = vld [vmem:[%s5 + $0x18] sm:$0xff]
  %v176 = vld [vmem:[%s5 + $0x20] sm:$0xff]
  %v177 = vld [vmem:[%s5 + $0x28] sm:$0xff]
  %v178 = vld [vmem:[%s5 + $0x30] sm:$0xff]
  %v179 = vld [vmem:[%s5 + $0x38] sm:$0xff]
  %v180 = vld [vmem:[%s5 + $0x40] sm:$0xff]
  %v181 = vld [vmem:[%s5 + $0x48] sm:$0xff]
  %v182 = vld [vmem:[%s5 + $0x50] sm:$0xff]
  %v183 = vld [vmem:[%s5 + $0x58] sm:$0xff]
  %v184 = vld [vmem:[%s5 + $0x60] sm:$0xff]
  %v185 = vld [vmem:[%s5 + $0x68] sm:$0xff]
  %v186 = vld [vmem:[%s5 + $0x70] sm:$0xff]
  %v187 = vld [vmem:[%s5 + $0x78] sm:$0xff]
  %v188 = vld [vmem:[%s5 + $0x80] sm:$0xff]
  %v189 = vld [vmem:[%s5 + $0x88] sm:$0xff]
  %v190 = vld [vmem:[%s5 + $0x90] sm:$0xff]
  %v191 = vld [vmem:[%s5 + $0x98] sm:$0xff]
  %v192 = vld [vmem:[%s5 + $0xa0] sm:$0xff]
  %v193 = vld [vmem:[%s5 + $0xa8] sm:$0xff]
  %v194 = vld [vmem:[%s5 + $0xb0] sm:$0xff]
  %v195 = vld [vmem:[%s5 + $0xb8] sm:$0xff]
  %v196 = vld [vmem:[%s5 + $0xc0] sm:$0xff]
  %v197 = vld [vmem:[%s5 + $0xc8] sm:$0xff]
  %v198 = vld [vmem:[%s5 + $0xd0] sm:$0xff]
  %v199 = vld [vmem:[%s5 + $0xd8] sm:$0xff]
  %v200 = vld [vmem:[%s5 + $0xe0] sm:$0xff]
  %v201 = vld [vmem:[%s5 + $0xe8] sm:$0xff]
  %v202 = vld [vmem:[%s5 + $0xf0] sm:$0xff]
  %v203 = vld [vmem:[%s5 + $0xf8] sm:$0xff]
  %v204 = vld [vmem:[%s6] sm:$0x3]
  %v206 = vlaneseq
  %v207 = vshrl.u32 %v206, 7
  %v208 = vsub.s32 0, %v207
  %v209 = vrot.slane %v204, %v208
  %v210 = vlaneseq
  %v211 = vshrl.u32 %v210, 7
  %v212 = vsub.s32 1, %v211
  %v213 = vrot.slane %v204, %v212
  %v248 = vunpack.c.l.b16 %v172
  %v249 = vunpack.c.h.b16 %v172
  %v250 = vunpack.c.l.b16 %v173
  %v251 = vunpack.c.h.b16 %v173
  %v252 = vunpack.c.l.b16 %v174
  %v253 = vunpack.c.h.b16 %v174
  %v254 = vunpack.c.l.b16 %v175
  %v255 = vunpack.c.h.b16 %v175
  %v256 = vunpack.c.l.b16 %v176
  %v257 = vunpack.c.h.b16 %v176
  %v258 = vunpack.c.l.b16 %v177
  %v259 = vunpack.c.h.b16 %v177
  %v260 = vunpack.c.l.b16 %v178
  %v261 = vunpack.c.h.b16 %v178
  %v262 = vunpack.c.l.b16 %v179
  %v263 = vunpack.c.h.b16 %v179
  %v264 = vunpack.c.l.b16 %v180
  %v265 = vunpack.c.h.b16 %v180
  %v266 = vunpack.c.l.b16 %v181
  %v267 = vunpack.c.h.b16 %v181
  %v268 = vunpack.c.l.b16 %v182
  %v269 = vunpack.c.h.b16 %v182
  %v270 = vunpack.c.l.b16 %v183
  %v271 = vunpack.c.h.b16 %v183
  %v272 = vunpack.c.l.b16 %v184
  %v273 = vunpack.c.h.b16 %v184
  %v274 = vunpack.c.l.b16 %v185
  %v275 = vunpack.c.h.b16 %v185
  %v276 = vunpack.c.l.b16 %v186
  %v277 = vunpack.c.h.b16 %v186
  %v278 = vunpack.c.l.b16 %v187
  %v279 = vunpack.c.h.b16 %v187
  %v280 = vunpack.c.l.b16 %v188
  %v281 = vunpack.c.h.b16 %v188
  %v282 = vunpack.c.l.b16 %v189
  %v283 = vunpack.c.h.b16 %v189
  %v284 = vunpack.c.l.b16 %v190
  %v285 = vunpack.c.h.b16 %v190
  %v286 = vunpack.c.l.b16 %v191
  %v287 = vunpack.c.h.b16 %v191
  %v288 = vunpack.c.l.b16 %v192
  %v289 = vunpack.c.h.b16 %v192
  %v290 = vunpack.c.l.b16 %v193
  %v291 = vunpack.c.h.b16 %v193
  %v292 = vunpack.c.l.b16 %v194
  %v293 = vunpack.c.h.b16 %v194
  %v294 = vunpack.c.l.b16 %v195
  %v295 = vunpack.c.h.b16 %v195
  %v296 = vunpack.c.l.b16 %v196
  %v297 = vunpack.c.h.b16 %v196
  %v298 = vunpack.c.l.b16 %v197
  %v299 = vunpack.c.h.b16 %v197
  %v300 = vunpack.c.l.b16 %v198
  %v301 = vunpack.c.h.b16 %v198
  %v302 = vunpack.c.l.b16 %v199
  %v303 = vunpack.c.h.b16 %v199
  %v304 = vunpack.c.l.b16 %v200
  %v305 = vunpack.c.h.b16 %v200
  %v306 = vunpack.c.l.b16 %v201
  %v307 = vunpack.c.h.b16 %v201
  %v308 = vunpack.c.l.b16 %v202
  %v309 = vunpack.c.h.b16 %v202
  %v310 = vunpack.c.l.b16 %v203
  %v311 = vunpack.c.h.b16 %v203
  %v312 = vpack.c.b16 %v250, %v248
  %v313 = vpack.c.b16 %v251, %v249
  %v314 = vpack.c.b16 %v254, %v252
  %v315 = vpack.c.b16 %v255, %v253
  %v316 = vpack.c.b16 %v258, %v256
  %v317 = vpack.c.b16 %v259, %v257
  %v318 = vpack.c.b16 %v262, %v260
  %v319 = vpack.c.b16 %v263, %v261
  %v320 = vpack.c.b16 %v266, %v264
  %v321 = vpack.c.b16 %v267, %v265
  %v322 = vpack.c.b16 %v270, %v268
  %v323 = vpack.c.b16 %v271, %v269
  %v324 = vpack.c.b16 %v274, %v272
  %v325 = vpack.c.b16 %v275, %v273
  %v326 = vpack.c.b16 %v278, %v276
  %v327 = vpack.c.b16 %v279, %v277
  %v328 = vpack.c.b16 %v282, %v280
  %v329 = vpack.c.b16 %v283, %v281
  %v330 = vpack.c.b16 %v286, %v284
  %v331 = vpack.c.b16 %v287, %v285
  %v332 = vpack.c.b16 %v290, %v288
  %v333 = vpack.c.b16 %v291, %v289
  %v334 = vpack.c.b16 %v294, %v292
  %v335 = vpack.c.b16 %v295, %v293
  %v336 = vpack.c.b16 %v298, %v296
  %v337 = vpack.c.b16 %v299, %v297
  %v338 = vpack.c.b16 %v302, %v300
  %v339 = vpack.c.b16 %v303, %v301
  %v340 = vpack.c.b16 %v306, %v304
  %v341 = vpack.c.b16 %v307, %v305
  %v342 = vpack.c.b16 %v310, %v308
  %v343 = vpack.c.b16 %v311, %v309
  %376 = vmatprep.subr.bf16.mxu0 %v313
  %377 = vmatpush1.bf16.msra.mxu0 %v312
  %378 = vmatprep.subr.bf16.mxu0 %v315
  %379 = vmatpush1.bf16.msra.mxu0 %v314
  %380 = vmatprep.subr.bf16.mxu0 %v317
  %381 = vmatpush1.bf16.msra.mxu0 %v316
  %382 = vmatprep.subr.bf16.mxu0 %v319
  %383 = vmatpush1.bf16.msra.mxu0 %v318
  %384 = vmatprep.subr.bf16.mxu0 %v321
  %385 = vmatpush1.bf16.msra.mxu0 %v320
  %386 = vmatprep.subr.bf16.mxu0 %v323
  %387 = vmatpush1.bf16.msra.mxu0 %v322
  %388 = vmatprep.subr.bf16.mxu0 %v325
  %389 = vmatpush1.bf16.msra.mxu0 %v324
  %390 = vmatprep.subr.bf16.mxu0 %v327
  %391 = vmatpush1.bf16.msra.mxu0 %v326
  %392 = vmatprep.subr.bf16.mxu0 %v329
  %393 = vmatpush1.bf16.msra.mxu0 %v328
  %394 = vmatprep.subr.bf16.mxu0 %v331
  %395 = vmatpush1.bf16.msra.mxu0 %v330
  %396 = vmatprep.subr.bf16.mxu0 %v333
  %397 = vmatpush1.bf16.msra.mxu0 %v332
  %398 = vmatprep.subr.bf16.mxu0 %v335
  %399 = vmatpush1.bf16.msra.mxu0 %v334
  %400 = vmatprep.subr.bf16.mxu0 %v337
  %401 = vmatpush1.bf16.msra.mxu0 %v336
  %402 = vmatprep.subr.bf16.mxu0 %v339
  %403 = vmatpush1.bf16.msra.mxu0 %v338
  %404 = vmatprep.subr.bf16.mxu0 %v341
  %405 = vmatpush1.bf16.msra.mxu0 %v340
  %406 = vmatprep.subr.bf16.mxu0 %v343
  %407 = vmatpush1.bf16.msra.mxu0 %v342
  %408 = vmatprep.mubr.bf16.mxu0 %v171
  %409 = vmatmul.mubr.bf16.gmra.mrb[0].mxu0 %v170
  %v410 = vpop.f32.mrb[0].mxu0
  %v411 = vadd.f32 %v209, %v410
  %v412 = vpop.f32.mrb[0].mxu0
  %v413 = vadd.f32 %v213, %v412
  %v414 = vpop.f32.mrb[0].mxu0
  %v415 = vadd.f32 %v209, %v414
  %v416 = vpop.f32.mrb[0].mxu0
  %v417 = vadd.f32 %v213, %v416
  %418 = vdwg.mxu0
  %v419 = vmax.f32 %v411, 0.0
  %v420 = vmax.f32 %v413, 0.0
  %v421 = vmax.f32 %v415, 0.0
  %v422 = vmax.f32 %v417, 0.0
  %v423 = vpack.c.bf16 %v421, %v419
  %v424 = vpack.c.bf16 %v422, %v420
  %v425 = vld [vmem:[%s7] sm:$0xf]
  %v426 = vld [vmem:[%s7 + $0x4] sm:$0xf]
  %v427 = vld [vmem:[%s7 + $0x8] sm:$0xf]
  %v428 = vld [vmem:[%s7 + $0xc] sm:$0xf]
  %v429 = vld [vmem:[%s7 + $0x10] sm:$0xf]
  %v430 = vld [vmem:[%s7 + $0x14] sm:$0xf]
  %v431 = vld [vmem:[%s7 + $0x18] sm:$0xf]
  %v432 = vld [vmem:[%s7 + $0x1c] sm:$0xf]
  %v433 = vld [vmem:[%s7 + $0x20] sm:$0xf]
  %v434 = vld [vmem:[%s7 + $0x24] sm:$0xf]
  %v435 = vld [vmem:[%s7 + $0x28] sm:$0xf]
  %v436 = vld [vmem:[%s7 + $0x2c] sm:$0xf]
  %v437 = vld [vmem:[%s7 + $0x30] sm:$0xf]
  %v438 = vld [vmem:[%s7 + $0x34] sm:$0xf]
  %v439 = vld [vmem:[%s7 + $0x38] sm:$0xf]
  %v440 = vld [vmem:[%s7 + $0x3c] sm:$0xf]
  %v441 = vld [vmem:[%s7 + $0x40] sm:$0xf]
  %v442 = vld [vmem:[%s7 + $0x44] sm:$0xf]
  %v443 = vld [vmem:[%s7 + $0x48] sm:$0xf]
  %v444 = vld [vmem:[%s7 + $0x4c] sm:$0xf]
  %v445 = vld [vmem:[%s7 + $0x50] sm:$0xf]
  %v446 = vld [vmem:[%s7 + $0x54] sm:$0xf]
  %v447 = vld [vmem:[%s7 + $0x58] sm:$0xf]
  %v448 = vld [vmem:[%s7 + $0x5c] sm:$0xf]
  %v449 = vld [vmem:[%s7 + $0x60] sm:$0xf]
  %v450 = vld [vmem:[%s7 + $0x64] sm:$0xf]
  %v451 = vld [vmem:[%s7 + $0x68] sm:$0xf]
  %v452 = vld [vmem:[%s7 + $0x6c] sm:$0xf]
  %v453 = vld [vmem:[%s7 + $0x70] sm:$0xf]
  %v454 = vld [vmem:[%s7 + $0x74] sm:$0xf]
  %v455 = vld [vmem:[%s7 + $0x78] sm:$0xf]
  %v456 = vld [vmem:[%s7 + $0x7c] sm:$0xf]
  %v457 = vld [vmem:[#allocation2] sm:$0x1]
  %v459 = vlaneseq
  %v460 = vshrl.u32 %v459, 7
  %v461 = vsub.s32 0, %v460
  %v462 = vrot.slane %v457, %v461
  %v496 = vunpack.c.l.b16 %v425
  %v497 = vunpack.c.l.b16 %v426
  %v498 = vunpack.c.l.b16 %v427
  %v499 = vunpack.c.l.b16 %v428
  %v500 = vunpack.c.l.b16 %v429
  %v501 = vunpack.c.l.b16 %v430
  %v502 = vunpack.c.l.b16 %v431
  %v503 = vunpack.c.l.b16 %v432
  %v504 = vunpack.c.l.b16 %v433
  %v505 = vunpack.c.l.b16 %v434
  %v506 = vunpack.c.l.b16 %v435
  %v507 = vunpack.c.l.b16 %v436
  %v508 = vunpack.c.l.b16 %v437
  %v509 = vunpack.c.l.b16 %v438
  %v510 = vunpack.c.l.b16 %v439
  %v511 = vunpack.c.l.b16 %v440
  %v512 = vunpack.c.l.b16 %v441
  %v513 = vunpack.c.l.b16 %v442
  %v514 = vunpack.c.l.b16 %v443
  %v515 = vunpack.c.l.b16 %v444
  %v516 = vunpack.c.l.b16 %v445
  %v517 = vunpack.c.l.b16 %v446
  %v518 = vunpack.c.l.b16 %v447
  %v519 = vunpack.c.l.b16 %v448
  %v520 = vunpack.c.l.b16 %v449
  %v521 = vunpack.c.l.b16 %v450
  %v522 = vunpack.c.l.b16 %v451
  %v523 = vunpack.c.l.b16 %v452
  %v524 = vunpack.c.l.b16 %v453
  %v525 = vunpack.c.l.b16 %v454
  %v526 = vunpack.c.l.b16 %v455
  %v527 = vunpack.c.l.b16 %v456
  %v528 = vpack.c.b16 %v497, %v496
  %v529 = vpack.c.b16 %v499, %v498
  %v530 = vpack.c.b16 %v501, %v500
  %v531 = vpack.c.b16 %v503, %v502
  %v532 = vpack.c.b16 %v505, %v504
  %v533 = vpack.c.b16 %v507, %v506
  %v534 = vpack.c.b16 %v509, %v508
  %v535 = vpack.c.b16 %v511, %v510
  %v536 = vpack.c.b16 %v513, %v512
  %v537 = vpack.c.b16 %v515, %v514
  %v538 = vpack.c.b16 %v517, %v516
  %v539 = vpack.c.b16 %v519, %v518
  %v540 = vpack.c.b16 %v521, %v520
  %v541 = vpack.c.b16 %v523, %v522
  %v542 = vpack.c.b16 %v525, %v524
  %v543 = vpack.c.b16 %v527, %v526
  %560 = vmatprep.subr.bf16.mxu0 0
  %561 = vmatpush1.bf16.msra.mxu0 %v528
  %562 = vmatprep.subr.bf16.mxu0 0
  %563 = vmatpush1.bf16.msra.mxu0 %v529
  %564 = vmatprep.subr.bf16.mxu0 0
  %565 = vmatpush1.bf16.msra.mxu0 %v530
  %566 = vmatprep.subr.bf16.mxu0 0
  %567 = vmatpush1.bf16.msra.mxu0 %v531
  %568 = vmatprep.subr.bf16.mxu0 0
  %569 = vmatpush1.bf16.msra.mxu0 %v532
  %570 = vmatprep.subr.bf16.mxu0 0
  %571 = vmatpush1.bf16.msra.mxu0 %v533
  %572 = vmatprep.subr.bf16.mxu0 0
  %573 = vmatpush1.bf16.msra.mxu0 %v534
  %574 = vmatprep.subr.bf16.mxu0 0
  %575 = vmatpush1.bf16.msra.mxu0 %v535
  %576 = vmatprep.subr.bf16.mxu0 0
  %577 = vmatpush1.bf16.msra.mxu0 %v536
  %578 = vmatprep.subr.bf16.mxu0 0
  %579 = vmatpush1.bf16.msra.mxu0 %v537
  %580 = vmatprep.subr.bf16.mxu0 0
  %581 = vmatpush1.bf16.msra.mxu0 %v538
  %582 = vmatprep.subr.bf16.mxu0 0
  %583 = vmatpush1.bf16.msra.mxu0 %v539
  %584 = vmatprep.subr.bf16.mxu0 0
  %585 = vmatpush1.bf16.msra.mxu0 %v540
  %586 = vmatprep.subr.bf16.mxu0 0
  %587 = vmatpush1.bf16.msra.mxu0 %v541
  %588 = vmatprep.subr.bf16.mxu0 0
  %589 = vmatpush1.bf16.msra.mxu0 %v542
  %590 = vmatprep.subr.bf16.mxu0 0
  %591 = vmatpush1.bf16.msra.mxu0 %v543
  %592 = vmatprep.mubr.bf16.mxu0 %v424
  %593 = vmatmul.mubr.bf16.gmra.mrb[0].mxu0 %v423
  %v594 = vpop.f32.mrb[0].mxu0
  %v595 = vadd.f32 %v462, %v594
  %v596 = vpop.f32.mrb[0].mxu0
  %v597 = vpop.f32.mrb[0].mxu0
  %v598 = vadd.f32 %v462, %v597
  %v599 = vpop.f32.mrb[0].mxu0
  %600 = vdwg.mxu0
  %vm601 = vcmask 7168
  %602 = vst.msk [vmem:[%s9] sm:$0xff] %vm601, %v595
  %603 = vst.msk [vmem:[%s9 + $0x8] sm:$0xff] %vm601, %v598
  // Predicated region
  $region38: #{_lambda_.55} parent=0 // pred_check
    _
  $region39: #{_lambda_.55} parent=0 // pred_check_branch
    %605 = sbr.rel (0) target = $region41
  $region40: #{_lambda_.55} parent=0 // pred_region
    _
  $region41: #{_lambda_.55} parent=0 // pred_fallthru
    _
  // Predicated region
  $region42: #{_lambda_.55} parent=0 // pred_check
    _
  $region43: #{_lambda_.55} parent=0 // pred_check_branch
    %607 = sbr.rel (0) target = $region45
  $region44: #{_lambda_.55} parent=0 // pred_region
    _
  $region45: #{_lambda_.55} parent=0 // pred_fallthru
    _

</llo_original>
